<compile_context>
chip_gen: v6e
topology: v6e:2x2x1
jax: 0.10.0
libtpu: 0.0.40
codegen_flags: <defaults>
</compile_context>

<pallas_src>
import jax
import jax.numpy as jnp
import numpy as np
from jax.experimental import pallas as pl
from jax.experimental.pallas import tpu as pltpu


def _round_up(x, m):
    return ((x + m - 1) // m) * m


def _make_rnn_kernel(num_layers):
    """Kernel body for one time step of a num_layers-deep vanilla RNN."""

    def kernel(x_ref, h0_ref, *rest):
        # rest = [wx_0, wh_0, b_0, ..., wx_{L-1}, wh_{L-1}, b_{L-1},
        #         top_out_ref, state_ref]
        w_refs = rest[: 3 * num_layers]
        top_out_ref = rest[3 * num_layers]
        state_ref = rest[3 * num_layers + 1]   # resident output block [L,Bp,Hp]

        t = pl.program_id(0)

        @pl.when(t == 0)
        def _():
            # Seed the resident state block with the initial hidden state.
            state_ref[...] = h0_ref[...]

        x = x_ref[0]  # [B_pad, E_pad] input to layer 0 at this time step
        for layer in range(num_layers):
            wx_ref = w_refs[3 * layer + 0]
            wh_ref = w_refs[3 * layer + 1]
            b_ref = w_refs[3 * layer + 2]
            h_old = state_ref[layer]  # [B_pad, H_pad]
            acc = jnp.dot(x, wx_ref[...],
                          preferred_element_type=jnp.float32,
                          precision=jax.lax.Precision.HIGHEST)
            acc = acc + jnp.dot(h_old, wh_ref[...],
                                preferred_element_type=jnp.float32,
                                precision=jax.lax.Precision.HIGHEST)
            acc = acc + b_ref[...]          # bias broadcasts over sublanes
            h_new = jnp.tanh(acc)           # EUP
            state_ref[layer] = h_new.astype(state_ref.dtype)
            x = h_new                       # feeds the next layer
        top_out_ref[0] = x.astype(top_out_ref.dtype)

    return kernel


def rnn_recurrence(x_emb, h0, weights, biases):
    """Fused recurrence over the whole sequence.

    x_emb:   [B, T, E] float32 (already embedded tokens)
    h0:      [L, B, H] float32 initial hidden state
    weights: list of L arrays, layer 0: [E + H, H], layers>0: [H + H, H]
             (rows ordered [input part; hidden part], matching torch.cat((x, h)))
    biases:  list of L arrays [1, H]

    Returns (top_states [B, T, H], final_state [L, B, H]).
    """
    B, T, E = x_emb.shape
    L, _, H = h0.shape

    B_pad = _round_up(B, 8)      # f32 sublane alignment
    H_pad = _round_up(H, 128)    # lane alignment (output / hidden axis)
    E_pad = _round_up(E, 128)    # lane alignment (input feature axis)

    # Time-major, padded inputs.
    x_t = jnp.transpose(x_emb, (1, 0, 2))                          # [T, B, E]
    x_t = jnp.pad(x_t, ((0, 0), (0, B_pad - B), (0, E_pad - E)))
    h0_p = jnp.pad(h0, ((0, 0), (0, B_pad - B), (0, H_pad - H)))

    w_inputs = []
    in_specs = [
        # x[t]: streamed per time step.
        pl.BlockSpec((1, B_pad, E_pad), lambda t: (t, 0, 0)),
        # h0: constant index_map -> loaded once, resident.
        pl.BlockSpec((L, B_pad, H_pad), lambda t: (0, 0, 0)),
    ]
    for layer in range(L):
        in_l = E if layer == 0 else H
        in_l_pad = E_pad if layer == 0 else H_pad
        w = weights[layer]
        # Split concat-weight into input part and hidden part; zero-pad.
        wx = jnp.pad(w[:in_l, :], ((0, in_l_pad - in_l), (0, H_pad - H)))
        wh = jnp.pad(w[in_l:, :], ((0, H_pad - H), (0, H_pad - H)))
        b = jnp.pad(biases[layer], ((0, 0), (0, H_pad - H)))
        w_inputs += [wx, wh, b]
        in_specs += [
            pl.BlockSpec((in_l_pad, H_pad), lambda t: (0, 0)),   # W_x resident
            pl.BlockSpec((H_pad, H_pad), lambda t: (0, 0)),      # W_h resident
            pl.BlockSpec((1, H_pad), lambda t: (0, 0)),          # bias resident
        ]

    out_shape = (
        jax.ShapeDtypeStruct((T, B_pad, H_pad), jnp.float32),  # top-layer h per step
        jax.ShapeDtypeStruct((L, B_pad, H_pad), jnp.float32),  # final hidden state
    )
    out_specs = (
        pl.BlockSpec((1, B_pad, H_pad), lambda t: (t, 0, 0)),  # streamed per step
        pl.BlockSpec((L, B_pad, H_pad), lambda t: (0, 0, 0)),  # resident carrier
    )

    top_pad, final_pad = pl.pallas_call(
        _make_rnn_kernel(L),
        out_shape=out_shape,
        grid_spec=pltpu.PrefetchScalarGridSpec(
            num_scalar_prefetch=0,
            grid=(T,),
            in_specs=in_specs,
            out_specs=out_specs,
        ),
        compiler_params=pltpu.CompilerParams(
            # The time axis is a true recurrence -> sequential.
            dimension_semantics=("arbitrary",),
        ),
    )(x_t, h0_p, *w_inputs)

    top_states = jnp.transpose(top_pad[:, :B, :H], (1, 0, 2))  # [B, T, H]
    final_state = final_pad[:, :B, :H]
    return top_states, final_state


def rnn_forward(xTokens, initial_hidden_state, emb_matrix, out_w, out_b,
                weights, biases):
    """Train-mode forward of the PyTorch `RNN` module (cell_type='RNN').

    Returns (logits [B, T, vocab], current_state [L, B, H]).
    """
    # Embedding lookup (glue: gather in plain JAX).
    x_emb = jnp.take(emb_matrix, xTokens, axis=0)          # [B, T, E]
    top_states, current_state = rnn_recurrence(
        x_emb, initial_hidden_state, weights, biases)
    # Per-step output Linear == one batched matmul over all time steps.
    logits = jnp.einsum("bth,hv->btv", top_states, out_w,
                        precision=jax.lax.Precision.HIGHEST) + out_b
    return logits, current_state


if __name__ == "__main__":
    batch = 2
    seq = 8
    input_size = 16          # embedding_size
    hidden = 32
    num_layers = 2
    vocab = 20

    key = jax.random.PRNGKey(0)
    keys = jax.random.split(key, 8)

    xTokens = jax.random.randint(keys[0], (batch, seq), 0, vocab)
    emb = jax.random.normal(keys[1], (vocab, input_size), dtype=jnp.float32)
    h0 = jax.random.normal(keys[2], (num_layers, batch, hidden),
                           dtype=jnp.float32)

    # Cell parameters: variance-scaled weights, zero biases (as in the module).
    weights, biases = [], []
    for layer in range(num_layers):
        in_l = input_size if layer == 0 else hidden
        n = hidden + in_l
        w = (jax.random.normal(keys[3 + layer], (n, hidden), dtype=jnp.float32)
             / np.float32(np.sqrt(n)))
        weights.append(w)
        biases.append(jnp.zeros((1, hidden), dtype=jnp.float32))

    # Output layer (the `outputLayer` handle).
    out_w = (jax.random.normal(keys[6], (hidden, vocab), dtype=jnp.float32)
             / np.float32(np.sqrt(hidden)))
    out_b = jnp.zeros((vocab,), dtype=jnp.float32)

    logits, current_state = rnn_forward(xTokens, h0, emb, out_w, out_b,
                                        weights, biases)
    logits, current_state = jax.block_until_ready((logits, current_state))

    # Pure-JAX reference replicating the PyTorch RNN.forward (train mode).
    x_emb = jnp.take(emb, xTokens, axis=0)
    h_old = h0
    ref_logits = []
    for t in range(seq):
        x = x_emb[:, t, :]
        h_new = []
        for layer in range(num_layers):
            xh = jnp.concatenate([x, h_old[layer]], axis=1)
            out = jnp.tanh(
                jnp.dot(xh, weights[layer],
                        precision=jax.lax.Precision.HIGHEST) + biases[layer])
            h_new.append(out)
            x = out
        ref_logits.append(
            jnp.dot(x, out_w, precision=jax.lax.Precision.HIGHEST) + out_b)
        h_old = jnp.stack(h_new, axis=0)
    ref_logits = jnp.stack(ref_logits, axis=1)
    ref_state = h_old

    np.testing.assert_allclose(np.asarray(logits), np.asarray(ref_logits),
                               rtol=1e-5, atol=1e-5)
    np.testing.assert_allclose(np.asarray(current_state),
                               np.asarray(ref_state), rtol=1e-5, atol=1e-5)

    # TODO(synk): is_train=False branch (argmax token feedback decoding) is not
    # implemented; only the train-mode forward pass is covered.
    print("KERNEL_OK")
</pallas_src>

<mosaic_0001>
module attributes {stable_mosaic.version = 11 : i64} {
  func.func @kernel(%arg0: i32, %arg1: memref<1x8x128xf32, #tpu.memory_space<vmem>>, %arg2: memref<2x8x128xf32, #tpu.memory_space<vmem>>, %arg3: memref<128x128xf32, #tpu.memory_space<vmem>>, %arg4: memref<128x128xf32, #tpu.memory_space<vmem>>, %arg5: memref<1x128xf32, #tpu.memory_space<vmem>>, %arg6: memref<128x128xf32, #tpu.memory_space<vmem>>, %arg7: memref<128x128xf32, #tpu.memory_space<vmem>>, %arg8: memref<1x128xf32, #tpu.memory_space<vmem>>, %arg9: memref<1x8x128xf32, #tpu.memory_space<vmem>>, %arg10: memref<2x8x128xf32, #tpu.memory_space<vmem>>) attributes {dimension_semantics = [#tpu.dimension_semantics<arbitrary>], iteration_bounds = array<i64: 8>, scalar_prefetch = 0 : i64, scratch_operands = 0 : i64, tpu.core_type = #tpu.core_type<tc>, window_params = [{transform_indices = @transform_0, window_bounds = array<i64: 1, 8, 128>}, {pipeline_mode = #tpu.pipeline_mode<synchronous>, transform_indices = @transform_1, window_bounds = array<i64: 2, 8, 128>}, {pipeline_mode = #tpu.pipeline_mode<synchronous>, transform_indices = @transform_2, window_bounds = array<i64: 128, 128>}, {pipeline_mode = #tpu.pipeline_mode<synchronous>, transform_indices = @transform_3, window_bounds = array<i64: 128, 128>}, {pipeline_mode = #tpu.pipeline_mode<synchronous>, transform_indices = @transform_4, window_bounds = array<i64: 1, 128>}, {pipeline_mode = #tpu.pipeline_mode<synchronous>, transform_indices = @transform_5, window_bounds = array<i64: 128, 128>}, {pipeline_mode = #tpu.pipeline_mode<synchronous>, transform_indices = @transform_6, window_bounds = array<i64: 128, 128>}, {pipeline_mode = #tpu.pipeline_mode<synchronous>, transform_indices = @transform_7, window_bounds = array<i64: 1, 128>}, {transform_indices = @transform_8, window_bounds = array<i64: 1, 8, 128>}, {pipeline_mode = #tpu.pipeline_mode<synchronous>, transform_indices = @transform_9, window_bounds = array<i64: 2, 8, 128>}]} {
    %c0_i32 = arith.constant 0 : i32
    %0 = arith.cmpi eq, %arg0, %c0_i32 : i32
    %1 = arith.extui %0 : i1 to i32
    %c0_i32_0 = arith.constant 0 : i32
    %2 = arith.cmpi ne, %1, %c0_i32_0 : i32
    scf.if %2 {
      %c0_32 = arith.constant 0 : index
      %c0_33 = arith.constant 0 : index
      %c0_34 = arith.constant 0 : index
      %36 = vector.load %arg2[%c0_32, %c0_33, %c0_34] : memref<2x8x128xf32, #tpu.memory_space<vmem>>, vector<2x8x128xf32>
      %c0_35 = arith.constant 0 : index
      %c0_36 = arith.constant 0 : index
      %c0_37 = arith.constant 0 : index
      %37 = vector.load %arg10[%c0_35, %c0_36, %c0_37] : memref<2x8x128xf32, #tpu.memory_space<vmem>>, vector<2x8x128xf32>
      tpu.vector_store %arg10[%c0_35, %c0_36, %c0_37], %36 {strides = array<i32>} : memref<2x8x128xf32, #tpu.memory_space<vmem>>, vector<2x8x128xf32>,
    } else {
    }
    %c0 = arith.constant 0 : index
    %c0_1 = arith.constant 0 : index
    %c0_2 = arith.constant 0 : index
    %3 = vector.load %arg1[%c0, %c0_1, %c0_2] : memref<1x8x128xf32, #tpu.memory_space<vmem>>, vector<1x8x128xf32>
    %4 = vector.shape_cast %3 : vector<1x8x128xf32> to vector<8x128xf32>
    %c0_3 = arith.constant 0 : index
    %c0_4 = arith.constant 0 : index
    %c0_5 = arith.constant 0 : index
    %5 = vector.load %arg10[%c0_3, %c0_4, %c0_5] : memref<2x8x128xf32, #tpu.memory_space<vmem>>, vector<1x8x128xf32>
    %6 = vector.shape_cast %5 : vector<1x8x128xf32> to vector<8x128xf32>
    %c0_6 = arith.constant 0 : index
    %c0_7 = arith.constant 0 : index
    %7 = vector.load %arg3[%c0_6, %c0_7] : memref<128x128xf32, #tpu.memory_space<vmem>>, vector<128x128xf32>
    %cst = arith.constant dense<0.000000e+00> : vector<8x128xf32>
    %8 = tpu.matmul %4, %7, %cst {dimension_numbers = #tpu.dot_dimension_numbers<[1], [0], [0], [1], [0, 0, 1, 1], [], []>, precision = #tpu.contract_precision<fp32>} : vector<8x128xf32>, vector<128x128xf32>, vector<8x128xf32> -> vector<8x128xf32>
    %c0_8 = arith.constant 0 : index
    %c0_9 = arith.constant 0 : index
    %9 = vector.load %arg4[%c0_8, %c0_9] : memref<128x128xf32, #tpu.memory_space<vmem>>, vector<128x128xf32>
    %cst_10 = arith.constant dense<0.000000e+00> : vector<8x128xf32>
    %10 = tpu.matmul %6, %9, %cst_10 {dimension_numbers = #tpu.dot_dimension_numbers<[1], [0], [0], [1], [0, 0, 1, 1], [], []>, precision = #tpu.contract_precision<fp32>} : vector<8x128xf32>, vector<128x128xf32>, vector<8x128xf32> -> vector<8x128xf32>
    %11 = arith.addf %8, %10 : vector<8x128xf32>
    %c0_11 = arith.constant 0 : index
    %c0_12 = arith.constant 0 : index
    %12 = vector.load %arg5[%c0_11, %c0_12] : memref<1x128xf32, #tpu.memory_space<vmem>>, vector<1x128xf32>
    %13 = vector.broadcast %12 : vector<1x128xf32> to vector<8x128xf32>
    %14 = arith.addf %11, %13 : vector<8x128xf32>
    %15 = math.tanh %14 : vector<8x128xf32>
    %c0_13 = arith.constant 0 : index
    %c0_14 = arith.constant 0 : index
    %c0_15 = arith.constant 0 : index
    %16 = vector.load %arg10[%c0_13, %c0_14, %c0_15] : memref<2x8x128xf32, #tpu.memory_space<vmem>>, vector<1x8x128xf32>
    %17 = vector.shape_cast %16 : vector<1x8x128xf32> to vector<8x128xf32>
    %18 = vector.shape_cast %15 : vector<8x128xf32> to vector<1x8x128xf32>
    tpu.vector_store %arg10[%c0_13, %c0_14, %c0_15], %18 {strides = array<i32>} : memref<2x8x128xf32, #tpu.memory_space<vmem>>, vector<1x8x128xf32>,
    %c1 = arith.constant 1 : index
    %c0_16 = arith.constant 0 : index
    %c0_17 = arith.constant 0 : index
    %19 = vector.load %arg10[%c1, %c0_16, %c0_17] : memref<2x8x128xf32, #tpu.memory_space<vmem>>, vector<1x8x128xf32>
    %20 = vector.shape_cast %19 : vector<1x8x128xf32> to vector<8x128xf32>
    %c0_18 = arith.constant 0 : index
    %c0_19 = arith.constant 0 : index
    %21 = vector.load %arg6[%c0_18, %c0_19] : memref<128x128xf32, #tpu.memory_space<vmem>>, vector<128x128xf32>
    %cst_20 = arith.constant dense<0.000000e+00> : vector<8x128xf32>
    %22 = tpu.matmul %15, %21, %cst_20 {dimension_numbers = #tpu.dot_dimension_numbers<[1], [0], [0], [1], [0, 0, 1, 1], [], []>, precision = #tpu.contract_precision<fp32>} : vector<8x128xf32>, vector<128x128xf32>, vector<8x128xf32> -> vector<8x128xf32>
    %c0_21 = arith.constant 0 : index
    %c0_22 = arith.constant 0 : index
    %23 = vector.load %arg7[%c0_21, %c0_22] : memref<128x128xf32, #tpu.memory_space<vmem>>, vector<128x128xf32>
    %cst_23 = arith.constant dense<0.000000e+00> : vector<8x128xf32>
    %24 = tpu.matmul %20, %23, %cst_23 {dimension_numbers = #tpu.dot_dimension_numbers<[1], [0], [0], [1], [0, 0, 1, 1], [], []>, precision = #tpu.contract_precision<fp32>} : vector<8x128xf32>, vector<128x128xf32>, vector<8x128xf32> -> vector<8x128xf32>
    %25 = arith.addf %22, %24 : vector<8x128xf32>
    %c0_24 = arith.constant 0 : index
    %c0_25 = arith.constant 0 : index
    %26 = vector.load %arg8[%c0_24, %c0_25] : memref<1x128xf32, #tpu.memory_space<vmem>>, vector<1x128xf32>
    %27 = vector.broadcast %26 : vector<1x128xf32> to vector<8x128xf32>
    %28 = arith.addf %25, %27 : vector<8x128xf32>
    %29 = math.tanh %28 : vector<8x128xf32>
    %c1_26 = arith.constant 1 : index
    %c0_27 = arith.constant 0 : index
    %c0_28 = arith.constant 0 : index
    %30 = vector.load %arg10[%c1_26, %c0_27, %c0_28] : memref<2x8x128xf32, #tpu.memory_space<vmem>>, vector<1x8x128xf32>
    %31 = vector.shape_cast %30 : vector<1x8x128xf32> to vector<8x128xf32>
    %32 = vector.shape_cast %29 : vector<8x128xf32> to vector<1x8x128xf32>
    tpu.vector_store %arg10[%c1_26, %c0_27, %c0_28], %32 {strides = array<i32>} : memref<2x8x128xf32, #tpu.memory_space<vmem>>, vector<1x8x128xf32>,
    %c0_29 = arith.constant 0 : index
    %c0_30 = arith.constant 0 : index
    %c0_31 = arith.constant 0 : index
    %33 = vector.load %arg9[%c0_29, %c0_30, %c0_31] : memref<1x8x128xf32, #tpu.memory_space<vmem>>, vector<1x8x128xf32>
    %34 = vector.shape_cast %33 : vector<1x8x128xf32> to vector<8x128xf32>
    %35 = vector.shape_cast %29 : vector<8x128xf32> to vector<1x8x128xf32>
    tpu.vector_store %arg9[%c0_29, %c0_30, %c0_31], %35 {strides = array<i32>} : memref<1x8x128xf32, #tpu.memory_space<vmem>>, vector<1x8x128xf32>,
    return
  }
  func.func @transform_0(%arg0: i32) -> (i32, i32, i32) {
    %c0_i32 = arith.constant 0 : i32
    %c0_i32_0 = arith.constant 0 : i32
    %c0_i32_1 = arith.constant 0 : i32
    return %arg0, %c0_i32, %c0_i32_0 : i32, i32, i32
  }
  func.func @transform_1(%arg0: i32) -> (i32, i32, i32) {
    %c0_i32 = arith.constant 0 : i32
    %c0_i32_0 = arith.constant 0 : i32
    %c0_i32_1 = arith.constant 0 : i32
    %c0_i32_2 = arith.constant 0 : i32
    return %c0_i32, %c0_i32_0, %c0_i32_1 : i32, i32, i32
  }
  func.func @transform_2(%arg0: i32) -> (i32, i32) {
    %c0_i32 = arith.constant 0 : i32
    %c0_i32_0 = arith.constant 0 : i32
    %c0_i32_1 = arith.constant 0 : i32
    return %c0_i32, %c0_i32_0 : i32, i32
  }
  func.func @transform_3(%arg0: i32) -> (i32, i32) {
    %c0_i32 = arith.constant 0 : i32
    %c0_i32_0 = arith.constant 0 : i32
    %c0_i32_1 = arith.constant 0 : i32
    return %c0_i32, %c0_i32_0 : i32, i32
  }
  func.func @transform_4(%arg0: i32) -> (i32, i32) {
    %c0_i32 = arith.constant 0 : i32
    %c0_i32_0 = arith.constant 0 : i32
    %c0_i32_1 = arith.constant 0 : i32
    return %c0_i32, %c0_i32_0 : i32, i32
  }
  func.func @transform_5(%arg0: i32) -> (i32, i32) {
    %c0_i32 = arith.constant 0 : i32
    %c0_i32_0 = arith.constant 0 : i32
    %c0_i32_1 = arith.constant 0 : i32
    return %c0_i32, %c0_i32_0 : i32, i32
  }
  func.func @transform_6(%arg0: i32) -> (i32, i32) {
    %c0_i32 = arith.constant 0 : i32
    %c0_i32_0 = arith.constant 0 : i32
    %c0_i32_1 = arith.constant 0 : i32
    return %c0_i32, %c0_i32_0 : i32, i32
  }
  func.func @transform_7(%arg0: i32) -> (i32, i32) {
    %c0_i32 = arith.constant 0 : i32
    %c0_i32_0 = arith.constant 0 : i32
    %c0_i32_1 = arith.constant 0 : i32
    return %c0_i32, %c0_i32_0 : i32, i32
  }
  func.func @transform_8(%arg0: i32) -> (i32, i32, i32) {
    %c0_i32 = arith.constant 0 : i32
    %c0_i32_0 = arith.constant 0 : i32
    %c0_i32_1 = arith.constant 0 : i32
    return %arg0, %c0_i32, %c0_i32_0 : i32, i32, i32
  }
  func.func @transform_9(%arg0: i32) -> (i32, i32, i32) {
    %c0_i32 = arith.constant 0 : i32
    %c0_i32_0 = arith.constant 0 : i32
    %c0_i32_1 = arith.constant 0 : i32
    %c0_i32_2 = arith.constant 0 : i32
    return %c0_i32, %c0_i32_0, %c0_i32_1 : i32, i32, i32
  }
}

</mosaic_0001>

<llo_original>
// kernel: tpu_custom_call.1
$region0: #{tpu_custom_call.1}
  #allocation0 [shape = 'u32[]', space=smem, size = 0x4, offset = 0x4, fixed_abs, tag = 'smem constant byte address 0x4 - core index']
  #allocation1 [shape = 'u32[144,128]{1,0:T(1,128)}', space=vmem, size = 0x12000, scoped, tag = 'internal scratch']
  %s0 = inlined_call_operand.hbm [shape: f32[8,8,128], index: 0, kind: input, shape index: {}]
  %s1 = inlined_call_operand.hbm [shape: f32[2,8,128], index: 1, kind: input, shape index: {}]
  %s2 = inlined_call_operand.hbm [shape: f32[128,128], index: 2, kind: input, shape index: {}]
  %s3 = inlined_call_operand.hbm [shape: f32[128,128], index: 3, kind: input, shape index: {}]
  %s4 = inlined_call_operand.vmem [shape: f32[1,128], index: 4, kind: input, shape index: {}]
  %s5 = inlined_call_operand.hbm [shape: f32[128,128], index: 5, kind: input, shape index: {}]
  %s6 = inlined_call_operand.hbm [shape: f32[128,128], index: 6, kind: input, shape index: {}]
  %s7 = inlined_call_operand.vmem [shape: f32[1,128], index: 7, kind: input, shape index: {}]
  %s8 = inlined_call_operand.hbm [shape: f32[8,8,128], index: 8, kind: output, shape index: {0}]
  %s9 = inlined_call_operand.hbm [shape: f32[2,8,128], index: 9, kind: output, shape index: {1}]
  %10 = xla_tuple %s8, %s9
  %s11 = sld [smem:[#allocation0]]
  $region101: #{tpu_custom_call.1} parent=0
    _
  %s13 = ssub.s32 1, %s11
  %s14 = scalar_select 0, %s13, %s11
  $region1: #{tpu_custom_call.1} parent=0
    #allocation2 [shape = 'u8[8192]{0}', space=vmem, size = 0x2000, scoped, tag = 'input window, operand 0']
    #allocation3 [shape = 's32[2]{0}', space=sflag, size = 0x8, scoped, tag = 'scoped memory for tpu_custom_call.1']
    #allocation4 [shape = 's32[2]{0}', space=sflag, size = 0x8, scoped, tag = 'scoped memory for tpu_custom_call.1']
    #allocation5 [shape = 'u8[8192]{0}', space=vmem, size = 0x2000, scoped, tag = 'input window, operand 1, single buffered']
    #allocation6 [shape = 's32[1]{0}', space=sflag, size = 0x4, scoped, tag = 'scoped memory for tpu_custom_call.1']
    #allocation7 [shape = 'u8[65536]{0}', space=vmem, size = 0x10000, scoped, tag = 'input window, operand 2, single buffered']
    #allocation8 [shape = 'u8[65536]{0}', space=vmem, size = 0x10000, scoped, tag = 'input window, operand 3, single buffered']
    #allocation9 [shape = 's32[1]{0}', space=sflag, size = 0x4, scoped, tag = 'scoped memory for tpu_custom_call.1']
    #allocation10 [shape = 'u8[65536]{0}', space=vmem, size = 0x10000, scoped, tag = 'input window, operand 5, single buffered']
    #allocation11 [shape = 'u8[65536]{0}', space=vmem, size = 0x10000, scoped, tag = 'input window, operand 6, single buffered']
    #allocation12 [shape = 's32[1]{0}', space=sflag, size = 0x4, scoped, tag = 'scoped memory for tpu_custom_call.1']
    #allocation13 [shape = 'u8[8192]{0}', space=vmem, size = 0x2000, scoped, tag = 'output window, operand 0']
    #allocation14 [shape = 'u8[8192]{0}', space=vmem, size = 0x2000, scoped, tag = 'output window, operand 1, single buffered']
    #allocation15 [shape = 's32[1]{0}', space=sflag, size = 0x4, scoped, tag = 'scoped memory for tpu_custom_call.1']
    %15 = vsyncpa [#allocation3], 0
    %s16 = scalar_lea.sflag [#allocation3], 1
    %17 = vsyncpa %s16, 0
    %18 = vsyncpa [#allocation6], 0
    %19 = vsyncpa [#allocation9], 0
    %20 = vsyncpa [#allocation12], 0
    %21 = vsyncpa [#allocation4], 0
    %s22 = scalar_lea.sflag [#allocation4], 1
    %23 = vsyncpa %s22, 0
    %24 = vsyncpa [#allocation15], 0
    loop: start=0, step=1, limit=10
    $region2: #{tpu_custom_call.1} parent=1 // loop_pre_header
      _
    $region3: #{tpu_custom_call.1} parent=1 // loop_header
      %s26 = sphi 0, %s30
      %p27 = scmp.ge.s32.totalorder %s26, 10
      %s36 = sphi 0, %s38
      %s39 = sphi 0, %s36
      %s40 = sphi 0, %s39
      %s56 = sphi 0, %s40
      %s60 = sphi 0, %s60
      %s62 = sphi 0, %s60
      %s63 = sphi 0, %s62
      %s77 = sphi 0, %s63
      %s81 = sphi 0, %s81
      %s83 = sphi 0, %s81
      %s84 = sphi 0, %s83
      %s98 = sphi 0, %s84
      %s102 = sphi 0, %s102
      %s104 = sphi 0, %s102
      %s105 = sphi 0, %s104
      %s119 = sphi 0, %s105
      %s123 = sphi 0, %s123
      %s125 = sphi 0, %s123
      %s126 = sphi 0, %s125
      %s140 = sphi 0, %s126
      %s144 = sphi 0, %s144
      %s146 = sphi 0, %s144
      %s147 = sphi 0, %s146
      %s161 = sphi 0, %s147
      %s165 = sphi 0, %s165
      %s167 = sphi 0, %s165
      %s168 = sphi 0, %s167
      %s182 = sphi 0, %s168
      %s186 = sphi 0, %s186
      %s188 = sphi 0, %s186
      %s189 = sphi 0, %s188
      %s203 = sphi 0, %s189
      %s209 = sphi 0, %s211
      %s212 = sphi 0, %s209
      %s213 = sphi 0, %s212
      %s229 = sphi 0, %s213
      %s233 = sphi 0, %s233
      %s235 = sphi 0, %s233
      %s236 = sphi 0, %s235
      %s250 = sphi 0, %s236
    $region4: #{tpu_custom_call.1} parent=1 // loop_header_branch
      %29 = sbr.rel (%p27) target = $region8
    $region5: #{tpu_custom_call.1} parent=1 // loop_body
      %s31 = ssub.s32 %s26, 1
      %s32 = ssub.s32 %s26, 2
      %s33 = sadd.s32 %s26, 1
      %s34 = ssub.s32 %s26, %s33
      %p35 = scmp.eq.s32.totalorder %s34, 0
      %s37 = sadd.s32 %s36, 1
      %s38 = scalar_select %p35, %s36, %s37
      %p41 = pneg %p35
      %p42 = scmp.eq.s32.totalorder %s26, 7
      %p43 = por %p41, %p42
      %p44 = scmp.ne.s32.totalorder %s36, %s39
      %p45 = scmp.eq.s32.totalorder %s26, 0
      %p46 = por %p44, %p45
      %p47 = scmp.ne.s32.totalorder %s36, %s39
      %p48 = scmp.eq.s32.totalorder %s31, 7
      %p49 = por %p47, %p48
      %p50 = scmp.ne.s32.totalorder %s39, %s40
      %p51 = scmp.eq.s32.totalorder %s31, 0
      %p52 = por %p50, %p51
      %p53 = scmp.ne.s32.totalorder %s39, %s40
      %p54 = scmp.eq.s32.totalorder %s32, 7
      %p55 = por %p53, %p54
      %p57 = scmp.ne.s32.totalorder %s40, %s56
      %p58 = scmp.eq.s32.totalorder %s32, 0
      %p59 = por %p57, %p58
      %s61 = sadd.s32 %s60, 1
      %p64 = scmp.eq.s32.totalorder %s26, 7
      %p65 = scmp.ne.s32.totalorder %s60, %s62
      %p66 = scmp.eq.s32.totalorder %s26, 0
      %p67 = por %p65, %p66
      %p68 = scmp.ne.s32.totalorder %s60, %s62
      %p69 = scmp.eq.s32.totalorder %s31, 7
      %p70 = por %p68, %p69
      %p71 = scmp.ne.s32.totalorder %s62, %s63
      %p72 = scmp.eq.s32.totalorder %s31, 0
      %p73 = por %p71, %p72
      %p74 = scmp.ne.s32.totalorder %s62, %s63
      %p75 = scmp.eq.s32.totalorder %s32, 7
      %p76 = por %p74, %p75
      %p78 = scmp.ne.s32.totalorder %s63, %s77
      %p79 = scmp.eq.s32.totalorder %s32, 0
      %p80 = por %p78, %p79
      %s82 = sadd.s32 %s81, 1
      %p85 = scmp.eq.s32.totalorder %s26, 7
      %p86 = scmp.ne.s32.totalorder %s81, %s83
      %p87 = scmp.eq.s32.totalorder %s26, 0
      %p88 = por %p86, %p87
      %p89 = scmp.ne.s32.totalorder %s81, %s83
      %p90 = scmp.eq.s32.totalorder %s31, 7
      %p91 = por %p89, %p90
      %p92 = scmp.ne.s32.totalorder %s83, %s84
      %p93 = scmp.eq.s32.totalorder %s31, 0
      %p94 = por %p92, %p93
      %p95 = scmp.ne.s32.totalorder %s83, %s84
      %p96 = scmp.eq.s32.totalorder %s32, 7
      %p97 = por %p95, %p96
      %p99 = scmp.ne.s32.totalorder %s84, %s98
      %p100 = scmp.eq.s32.totalorder %s32, 0
      %p101 = por %p99, %p100
      %s103 = sadd.s32 %s102, 1
      %p106 = scmp.eq.s32.totalorder %s26, 7
      %p107 = scmp.ne.s32.totalorder %s102, %s104
      %p108 = scmp.eq.s32.totalorder %s26, 0
      %p109 = por %p107, %p108
      %p110 = scmp.ne.s32.totalorder %s102, %s104
      %p111 = scmp.eq.s32.totalorder %s31, 7
      %p112 = por %p110, %p111
      %p113 = scmp.ne.s32.totalorder %s104, %s105
      %p114 = scmp.eq.s32.totalorder %s31, 0
      %p115 = por %p113, %p114
      %p116 = scmp.ne.s32.totalorder %s104, %s105
      %p117 = scmp.eq.s32.totalorder %s32, 7
      %p118 = por %p116, %p117
      %p120 = scmp.ne.s32.totalorder %s105, %s119
      %p121 = scmp.eq.s32.totalorder %s32, 0
      %p122 = por %p120, %p121
      %s124 = sadd.s32 %s123, 1
      %p127 = scmp.eq.s32.totalorder %s26, 7
      %p128 = scmp.ne.s32.totalorder %s123, %s125
      %p129 = scmp.eq.s32.totalorder %s26, 0
      %p130 = por %p128, %p129
      %p131 = scmp.ne.s32.totalorder %s123, %s125
      %p132 = scmp.eq.s32.totalorder %s31, 7
      %p133 = por %p131, %p132
      %p134 = scmp.ne.s32.totalorder %s125, %s126
      %p135 = scmp.eq.s32.totalorder %s31, 0
      %p136 = por %p134, %p135
      %p137 = scmp.ne.s32.totalorder %s125, %s126
      %p138 = scmp.eq.s32.totalorder %s32, 7
      %p139 = por %p137, %p138
      %p141 = scmp.ne.s32.totalorder %s126, %s140
      %p142 = scmp.eq.s32.totalorder %s32, 0
      %p143 = por %p141, %p142
      %s145 = sadd.s32 %s144, 1
      %p148 = scmp.eq.s32.totalorder %s26, 7
      %p149 = scmp.ne.s32.totalorder %s144, %s146
      %p150 = scmp.eq.s32.totalorder %s26, 0
      %p151 = por %p149, %p150
      %p152 = scmp.ne.s32.totalorder %s144, %s146
      %p153 = scmp.eq.s32.totalorder %s31, 7
      %p154 = por %p152, %p153
      %p155 = scmp.ne.s32.totalorder %s146, %s147
      %p156 = scmp.eq.s32.totalorder %s31, 0
      %p157 = por %p155, %p156
      %p158 = scmp.ne.s32.totalorder %s146, %s147
      %p159 = scmp.eq.s32.totalorder %s32, 7
      %p160 = por %p158, %p159
      %p162 = scmp.ne.s32.totalorder %s147, %s161
      %p163 = scmp.eq.s32.totalorder %s32, 0
      %p164 = por %p162, %p163
      %s166 = sadd.s32 %s165, 1
      %p169 = scmp.eq.s32.totalorder %s26, 7
      %p170 = scmp.ne.s32.totalorder %s165, %s167
      %p171 = scmp.eq.s32.totalorder %s26, 0
      %p172 = por %p170, %p171
      %p173 = scmp.ne.s32.totalorder %s165, %s167
      %p174 = scmp.eq.s32.totalorder %s31, 7
      %p175 = por %p173, %p174
      %p176 = scmp.ne.s32.totalorder %s167, %s168
      %p177 = scmp.eq.s32.totalorder %s31, 0
      %p178 = por %p176, %p177
      %p179 = scmp.ne.s32.totalorder %s167, %s168
      %p180 = scmp.eq.s32.totalorder %s32, 7
      %p181 = por %p179, %p180
      %p183 = scmp.ne.s32.totalorder %s168, %s182
      %p184 = scmp.eq.s32.totalorder %s32, 0
      %p185 = por %p183, %p184
      %s187 = sadd.s32 %s186, 1
      %p190 = scmp.eq.s32.totalorder %s26, 7
      %p191 = scmp.ne.s32.totalorder %s186, %s188
      %p192 = scmp.eq.s32.totalorder %s26, 0
      %p193 = por %p191, %p192
      %p194 = scmp.ne.s32.totalorder %s186, %s188
      %p195 = scmp.eq.s32.totalorder %s31, 7
      %p196 = por %p194, %p195
      %p197 = scmp.ne.s32.totalorder %s188, %s189
      %p198 = scmp.eq.s32.totalorder %s31, 0
      %p199 = por %p197, %p198
      %p200 = scmp.ne.s32.totalorder %s188, %s189
      %p201 = scmp.eq.s32.totalorder %s32, 7
      %p202 = por %p200, %p201
      %p204 = scmp.ne.s32.totalorder %s189, %s203
      %p205 = scmp.eq.s32.totalorder %s32, 0
      %p206 = por %p204, %p205
      %s207 = ssub.s32 %s26, %s33
      %p208 = scmp.eq.s32.totalorder %s207, 0
      %s210 = sadd.s32 %s209, 1
      %s211 = scalar_select %p208, %s209, %s210
      %p214 = pneg %p208
      %p215 = scmp.eq.s32.totalorder %s26, 7
      %p216 = por %p214, %p215
      %p217 = scmp.ne.s32.totalorder %s209, %s212
      %p218 = scmp.eq.s32.totalorder %s26, 0
      %p219 = por %p217, %p218
      %p220 = scmp.ne.s32.totalorder %s209, %s212
      %p221 = scmp.eq.s32.totalorder %s31, 7
      %p222 = por %p220, %p221
      %p223 = scmp.ne.s32.totalorder %s212, %s213
      %p224 = scmp.eq.s32.totalorder %s31, 0
      %p225 = por %p223, %p224
      %p226 = scmp.ne.s32.totalorder %s212, %s213
      %p227 = scmp.eq.s32.totalorder %s32, 7
      %p228 = por %p226, %p227
      %p230 = scmp.ne.s32.totalorder %s213, %s229
      %p231 = scmp.eq.s32.totalorder %s32, 0
      %p232 = por %p230, %p231
      %s234 = sadd.s32 %s233, 1
      %p237 = scmp.eq.s32.totalorder %s26, 7
      %p238 = scmp.ne.s32.totalorder %s233, %s235
      %p239 = scmp.eq.s32.totalorder %s26, 0
      %p240 = por %p238, %p239
      %p241 = scmp.ne.s32.totalorder %s233, %s235
      %p242 = scmp.eq.s32.totalorder %s31, 7
      %p243 = por %p241, %p242
      %p244 = scmp.ne.s32.totalorder %s235, %s236
      %p245 = scmp.eq.s32.totalorder %s31, 0
      %p246 = por %p244, %p245
      %p247 = scmp.ne.s32.totalorder %s235, %s236
      %p248 = scmp.eq.s32.totalorder %s32, 7
      %p249 = por %p247, %p248
      %p251 = scmp.ne.s32.totalorder %s236, %s250
      %p252 = scmp.eq.s32.totalorder %s32, 0
      %p253 = por %p251, %p252
      %p254 = scmp.le.s32.totalorder 1, %s26
      %p255 = scmp.lt.s32.totalorder %s26, 9
      %p256 = pnand %p254, %p255
      %p257 = pneg %p256
      // Predicated region
      $region9: #{tpu_custom_call.1} parent=5 // pred_check
        _
      $region10: #{tpu_custom_call.1} parent=5 // pred_check_branch
        %259 = sbr.rel (%p256) target = $region12
      $region11: #{tpu_custom_call.1} parent=5 // pred_region
        %s260 = ssub.s32 %s26, 1
        // Predicated region
        $region13: #{tpu_custom_call.1} parent=11 // pred_check
          %p261 = pneg %p73
        $region14: #{tpu_custom_call.1} parent=11 // pred_check_branch
          %263 = sbr.rel (%p261) target = $region16
        $region15: #{tpu_custom_call.1} parent=11 // pred_region
          %s265 = ssub.s32 256, 256
          %266 = vsyncadd [#allocation6], %s265
          %s267 = sshll.u32 [#allocation5], 4
          %s268 = int_to_ptr.vmem [resolvable:$true] %s267
          %273 = dma.hbm_to_vmem [thread:$0]  %s1, 256, %s268, [#allocation6], 128, 128, 8
        $region16: #{tpu_custom_call.1} parent=11 // pred_fallthru
          _
        // Predicated region
        $region17: #{tpu_custom_call.1} parent=11 // pred_check
          %p274 = pneg %p94
        $region18: #{tpu_custom_call.1} parent=11 // pred_check_branch
          %276 = sbr.rel (%p274) target = $region20
        $region19: #{tpu_custom_call.1} parent=11 // pred_region
          %s278 = ssub.s32 2048, 2048
          %279 = vsyncadd [#allocation6], %s278
          %s280 = sshll.u32 [#allocation7], 4
          %s281 = int_to_ptr.vmem [resolvable:$true] %s280
          %286 = dma.hbm_to_vmem [thread:$0]  %s2, 2048, %s281, [#allocation6], 128, 128, 8
        $region20: #{tpu_custom_call.1} parent=11 // pred_fallthru
          _
        // Predicated region
        $region21: #{tpu_custom_call.1} parent=11 // pred_check
          %p287 = pneg %p115
        $region22: #{tpu_custom_call.1} parent=11 // pred_check_branch
          %289 = sbr.rel (%p287) target = $region24
        $region23: #{tpu_custom_call.1} parent=11 // pred_region
          %s291 = ssub.s32 2048, 2048
          %292 = vsyncadd [#allocation9], %s291
          %s293 = sshll.u32 [#allocation8], 4
          %s294 = int_to_ptr.vmem [resolvable:$true] %s293
          %299 = dma.hbm_to_vmem [thread:$0]  %s3, 2048, %s294, [#allocation9], 128, 128, 8
        $region24: #{tpu_custom_call.1} parent=11 // pred_fallthru
          _
        // Predicated region
        $region25: #{tpu_custom_call.1} parent=11 // pred_check
          %p300 = pneg %p136
        $region26: #{tpu_custom_call.1} parent=11 // pred_check_branch
          %302 = sbr.rel (%p300) target = $region28
        $region27: #{tpu_custom_call.1} parent=11 // pred_region
          _
        $region28: #{tpu_custom_call.1} parent=11 // pred_fallthru
          _
        // Predicated region
        $region29: #{tpu_custom_call.1} parent=11 // pred_check
          %p303 = pneg %p157
        $region30: #{tpu_custom_call.1} parent=11 // pred_check_branch
          %305 = sbr.rel (%p303) target = $region32
        $region31: #{tpu_custom_call.1} parent=11 // pred_region
          %s307 = ssub.s32 2048, 2048
          %308 = vsyncadd [#allocation9], %s307
          %s309 = sshll.u32 [#allocation10], 4
          %s310 = int_to_ptr.vmem [resolvable:$true] %s309
          %315 = dma.hbm_to_vmem [thread:$0]  %s5, 2048, %s310, [#allocation9], 128, 128, 8
        $region32: #{tpu_custom_call.1} parent=11 // pred_fallthru
          _
        // Predicated region
        $region33: #{tpu_custom_call.1} parent=11 // pred_check
          %p316 = pneg %p178
        $region34: #{tpu_custom_call.1} parent=11 // pred_check_branch
          %318 = sbr.rel (%p316) target = $region36
        $region35: #{tpu_custom_call.1} parent=11 // pred_region
          %s320 = ssub.s32 2048, 2048
          %321 = vsyncadd [#allocation12], %s320
          %s322 = sshll.u32 [#allocation11], 4
          %s323 = int_to_ptr.vmem [resolvable:$true] %s322
          %328 = dma.hbm_to_vmem [thread:$0]  %s6, 2048, %s323, [#allocation12], 128, 128, 8
        $region36: #{tpu_custom_call.1} parent=11 // pred_fallthru
          _
        // Predicated region
        $region37: #{tpu_custom_call.1} parent=11 // pred_check
          %p329 = pneg %p199
        $region38: #{tpu_custom_call.1} parent=11 // pred_check_branch
          %331 = sbr.rel (%p329) target = $region40
        $region39: #{tpu_custom_call.1} parent=11 // pred_region
          _
        $region40: #{tpu_custom_call.1} parent=11 // pred_fallthru
          _
      $region12: #{tpu_custom_call.1} parent=5 // pred_fallthru
        _
      %p332 = scmp.lt.s32.totalorder %s26, 8
      // Predicated region
      $region41: #{tpu_custom_call.1} parent=5 // pred_check
        %p333 = pneg %p332
      $region42: #{tpu_custom_call.1} parent=5 // pred_check_branch
        %335 = sbr.rel (%p333) target = $region44
      $region43: #{tpu_custom_call.1} parent=5 // pred_region
        // Predicated region
        $region45: #{tpu_custom_call.1} parent=43 // pred_check
          %p336 = pneg %p46
        $region46: #{tpu_custom_call.1} parent=43 // pred_check_branch
          %338 = sbr.rel (%p336) target = $region48
        $region47: #{tpu_custom_call.1} parent=43 // pred_region
          %s339 = sand.u32 %s36, 1
          %s340 = scalar_lea.sflag [#allocation3], %s339
          %s341 = sand.u32 %s36, 1
          %s342 = smul.addr %s341, 8
          %s343 = scalar_lea.vmem [#allocation2], %s342
          %s345 = ssub.s32 128, 128
          %346 = vsyncadd %s340, %s345
          %s347 = smul.addr %s26, 128
          %s348 = scalar_lea.hbm %s0, %s347
          %s350 = sshll.u32 %s343, 4
          %s351 = int_to_ptr.vmem [resolvable:$true] %s350
          %353 = dma.hbm_to_vmem [thread:$0]  %s348, 128, %s351, %s340
        $region48: #{tpu_custom_call.1} parent=43 // pred_fallthru
          _
      $region44: #{tpu_custom_call.1} parent=5 // pred_fallthru
        _
      %p354 = scmp.le.s32.totalorder 1, %s26
      %p355 = scmp.lt.s32.totalorder %s26, 9
      %p356 = pnand %p354, %p355
      %p357 = pneg %p356
      // Predicated region
      $region49: #{tpu_custom_call.1} parent=5 // pred_check
        _
      $region50: #{tpu_custom_call.1} parent=5 // pred_check_branch
        %359 = sbr.rel (%p356) target = $region52
      $region51: #{tpu_custom_call.1} parent=5 // pred_region
        %s360 = ssub.s32 %s26, 1
        %s361 = sand.u32 %s39, 1
        %s362 = scalar_lea.sflag [#allocation3], %s361
        %s363 = sand.u32 %s39, 1
        %s364 = smul.addr %s363, 8
        %s365 = scalar_lea.vmem [#allocation2], %s364
        // Predicated region
        $region53: #{tpu_custom_call.1} parent=51 // pred_check
          %p366 = pneg %p52
        $region54: #{tpu_custom_call.1} parent=51 // pred_check_branch
          %368 = sbr.rel (%p366) target = $region56
        $region55: #{tpu_custom_call.1} parent=51 // pred_region
          %369 = dma.done %s362, 128
        $region56: #{tpu_custom_call.1} parent=51 // pred_fallthru
          _
        // Predicated region
        $region57: #{tpu_custom_call.1} parent=51 // pred_check
          %p370 = pneg %p73
        $region58: #{tpu_custom_call.1} parent=51 // pred_check_branch
          %372 = sbr.rel (%p370) target = $region60
        $region59: #{tpu_custom_call.1} parent=51 // pred_region
          %373 = dma.done [#allocation6], 256
        $region60: #{tpu_custom_call.1} parent=51 // pred_fallthru
          _
        // Predicated region
        $region61: #{tpu_custom_call.1} parent=51 // pred_check
          %p374 = pneg %p94
        $region62: #{tpu_custom_call.1} parent=51 // pred_check_branch
          %376 = sbr.rel (%p374) target = $region64
        $region63: #{tpu_custom_call.1} parent=51 // pred_region
          %377 = dma.done [#allocation6], 2048
        $region64: #{tpu_custom_call.1} parent=51 // pred_fallthru
          _
        // Predicated region
        $region65: #{tpu_custom_call.1} parent=51 // pred_check
          %p378 = pneg %p115
        $region66: #{tpu_custom_call.1} parent=51 // pred_check_branch
          %380 = sbr.rel (%p378) target = $region68
        $region67: #{tpu_custom_call.1} parent=51 // pred_region
          %381 = dma.done [#allocation9], 2048
        $region68: #{tpu_custom_call.1} parent=51 // pred_fallthru
          _
        // Predicated region
        $region69: #{tpu_custom_call.1} parent=51 // pred_check
          %p382 = pneg %p157
        $region70: #{tpu_custom_call.1} parent=51 // pred_check_branch
          %384 = sbr.rel (%p382) target = $region72
        $region71: #{tpu_custom_call.1} parent=51 // pred_region
          %385 = dma.done [#allocation9], 2048
        $region72: #{tpu_custom_call.1} parent=51 // pred_fallthru
          _
        // Predicated region
        $region73: #{tpu_custom_call.1} parent=51 // pred_check
          %p386 = pneg %p178
        $region74: #{tpu_custom_call.1} parent=51 // pred_check_branch
          %388 = sbr.rel (%p386) target = $region76
        $region75: #{tpu_custom_call.1} parent=51 // pred_region
          %389 = dma.done [#allocation12], 2048
        $region76: #{tpu_custom_call.1} parent=51 // pred_fallthru
          _
        %s390 = sand.u32 %s39, 1
        %s391 = scalar_lea.sflag [#allocation3], %s390
        %s392 = sand.u32 %s39, 1
        %s393 = smul.addr %s392, 8
        %s394 = scalar_lea.vmem [#allocation2], %s393
        %p395 = pneg %p52
        %p396 = pneg %p49
        %p397 = pneg %p73
        %p398 = pneg %p70
        %p399 = pneg %p94
        %p400 = pneg %p91
        %p401 = pneg %p115
        %p402 = pneg %p112
        %p403 = pneg %p136
        %p404 = pneg %p133
        %p405 = pneg %p157
        %p406 = pneg %p154
        %p407 = pneg %p178
        %p408 = pneg %p175
        %p409 = pneg %p199
        %p410 = pneg %p196
        %p411 = pneg %p225
        %p412 = pneg %p222
        %s413 = sand.u32 %s212, 1
        %s414 = scalar_lea.sflag [#allocation4], %s413
        %s415 = sand.u32 %s212, 1
        %s416 = smul.addr %s415, 8
        %s417 = scalar_lea.vmem [#allocation13], %s416
        %p418 = pneg %p246
        %p419 = pneg %p243
        %p420 = scmp.eq.s32.totalorder %s31, 0
        // Predicated region
        $region77: #{tpu_custom_call.1} parent=51 // pred_check
          %p421 = pneg %p420
        $region78: #{tpu_custom_call.1} parent=51 // pred_check_branch
          %423 = sbr.rel (%p421) target = $region80
        $region79: #{tpu_custom_call.1} parent=51 // pred_region
          %v424 = vld [vmem:[#allocation5] sm:$0xff]
          %v425 = vld [vmem:[#allocation5 + $0x8] sm:$0xff]
          %426 = vst [vmem:[#allocation14] sm:$0xff] %v424
          %427 = vst [vmem:[#allocation14 + $0x8] sm:$0xff] %v425
        $region80: #{tpu_custom_call.1} parent=51 // pred_fallthru
          _
        %v428 = vld [vmem:[%s365] sm:$0xff]
        %v429 = vld [vmem:[#allocation14] sm:$0xff]
        %v430 = vld [vmem:[#allocation7] sm:$0xff]
        %v431 = vld [vmem:[#allocation7 + $0x8] sm:$0xff]
        %v432 = vld [vmem:[#allocation7 + $0x10] sm:$0xff]
        %v433 = vld [vmem:[#allocation7 + $0x18] sm:$0xff]
        %v434 = vld [vmem:[#allocation7 + $0x20] sm:$0xff]
        %v435 = vld [vmem:[#allocation7 + $0x28] sm:$0xff]
        %v436 = vld [vmem:[#allocation7 + $0x30] sm:$0xff]
        %v437 = vld [vmem:[#allocation7 + $0x38] sm:$0xff]
        %v438 = vld [vmem:[#allocation7 + $0x40] sm:$0xff]
        %v439 = vld [vmem:[#allocation7 + $0x48] sm:$0xff]
        %v440 = vld [vmem:[#allocation7 + $0x50] sm:$0xff]
        %v441 = vld [vmem:[#allocation7 + $0x58] sm:$0xff]
        %v442 = vld [vmem:[#allocation7 + $0x60] sm:$0xff]
        %v443 = vld [vmem:[#allocation7 + $0x68] sm:$0xff]
        %v444 = vld [vmem:[#allocation7 + $0x70] sm:$0xff]
        %v445 = vld [vmem:[#allocation7 + $0x78] sm:$0xff]
        %v446 = vld [vmem:[#allocation8] sm:$0xff]
        %v447 = vld [vmem:[#allocation8 + $0x8] sm:$0xff]
        %v448 = vld [vmem:[#allocation8 + $0x10] sm:$0xff]
        %v449 = vld [vmem:[#allocation8 + $0x18] sm:$0xff]
        %v450 = vld [vmem:[#allocation8 + $0x20] sm:$0xff]
        %v451 = vld [vmem:[#allocation8 + $0x28] sm:$0xff]
        %v452 = vld [vmem:[#allocation8 + $0x30] sm:$0xff]
        %v453 = vld [vmem:[#allocation8 + $0x38] sm:$0xff]
        %v454 = vld [vmem:[#allocation8 + $0x40] sm:$0xff]
        %v455 = vld [vmem:[#allocation8 + $0x48] sm:$0xff]
        %v456 = vld [vmem:[#allocation8 + $0x50] sm:$0xff]
        %v457 = vld [vmem:[#allocation8 + $0x58] sm:$0xff]
        %v458 = vld [vmem:[#allocation8 + $0x60] sm:$0xff]
        %v459 = vld [vmem:[#allocation8 + $0x68] sm:$0xff]
        %v460 = vld [vmem:[#allocation8 + $0x70] sm:$0xff]
        %v461 = vld [vmem:[#allocation8 + $0x78] sm:$0xff]
        %462 = vmatprep.subr.mxu0 0.0
        %v463 = vand.u32 %v461, 4294901760
        %464 = vmatpush1.msra.mxu0 %v463
        %465 = vmatprep.subr.mxu0 0.0
        %v466 = vand.u32 %v460, 4294901760
        %467 = vmatpush1.msra.mxu0 %v466
        %468 = vmatprep.subr.mxu0 0.0
        %v469 = vand.u32 %v459, 4294901760
        %470 = vmatpush1.msra.mxu0 %v469
        %471 = vmatprep.subr.mxu0 0.0
        %v472 = vand.u32 %v458, 4294901760
        %473 = vmatpush1.msra.mxu0 %v472
        %474 = vmatprep.subr.mxu0 0.0
        %v475 = vand.u32 %v457, 4294901760
        %476 = vmatpush1.msra.mxu0 %v475
        %477 = vmatprep.subr.mxu0 0.0
        %v478 = vand.u32 %v456, 4294901760
        %479 = vmatpush1.msra.mxu0 %v478
        %480 = vmatprep.subr.mxu0 0.0
        %v481 = vand.u32 %v455, 4294901760
        %482 = vmatpush1.msra.mxu0 %v481
        %483 = vmatprep.subr.mxu0 0.0
        %v484 = vand.u32 %v454, 4294901760
        %485 = vmatpush1.msra.mxu0 %v484
        %486 = vmatprep.subr.mxu0 0.0
        %v487 = vand.u32 %v453, 4294901760
        %488 = vmatpush1.msra.mxu0 %v487
        %489 = vmatprep.subr.mxu0 0.0
        %v490 = vand.u32 %v452, 4294901760
        %491 = vmatpush1.msra.mxu0 %v490
        %492 = vmatprep.subr.mxu0 0.0
        %v493 = vand.u32 %v451, 4294901760
        %494 = vmatpush1.msra.mxu0 %v493
        %495 = vmatprep.subr.mxu0 0.0
        %v496 = vand.u32 %v450, 4294901760
        %497 = vmatpush1.msra.mxu0 %v496
        %498 = vmatprep.subr.mxu0 0.0
        %v499 = vand.u32 %v449, 4294901760
        %500 = vmatpush1.msra.mxu0 %v499
        %501 = vmatprep.subr.mxu0 0.0
        %v502 = vand.u32 %v448, 4294901760
        %503 = vmatpush1.msra.mxu0 %v502
        %504 = vmatprep.subr.mxu0 0.0
        %v505 = vand.u32 %v447, 4294901760
        %506 = vmatpush1.msra.mxu0 %v505
        %507 = vmatprep.subr.mxu0 0.0
        %v508 = vand.u32 %v446, 4294901760
        %509 = vmatpush1.msra.mxu0 %v508
        %510 = vmatprep.subr.mxu0 0.0
        %511 = vmatpush2.msra.mxu0 0.0
        %512 = vmatprep.subr.mxu0 0.0
        %513 = vmatpush2.msra.mxu0 0.0
        %514 = vmatprep.subr.mxu0 0.0
        %515 = vmatpush2.msra.mxu0 0.0
        %516 = vmatprep.subr.mxu0 0.0
        %517 = vmatpush2.msra.mxu0 0.0
        %518 = vmatprep.subr.mxu0 0.0
        %519 = vmatpush2.msra.mxu0 0.0
        %520 = vmatprep.subr.mxu0 0.0
        %521 = vmatpush2.msra.mxu0 0.0
        %522 = vmatprep.subr.mxu0 0.0
        %523 = vmatpush2.msra.mxu0 0.0
        %524 = vmatprep.subr.mxu0 0.0
        %525 = vmatpush2.msra.mxu0 0.0
        %526 = vmatprep.subr.mxu0 0.0
        %527 = vmatpush2.msra.mxu0 0.0
        %528 = vmatprep.subr.mxu0 0.0
        %529 = vmatpush2.msra.mxu0 0.0
        %530 = vmatprep.subr.mxu0 0.0
        %531 = vmatpush2.msra.mxu0 0.0
        %532 = vmatprep.subr.mxu0 0.0
        %533 = vmatpush2.msra.mxu0 0.0
        %534 = vmatprep.subr.mxu0 0.0
        %535 = vmatpush2.msra.mxu0 0.0
        %536 = vmatprep.subr.mxu0 0.0
        %537 = vmatpush2.msra.mxu0 0.0
        %538 = vmatprep.subr.mxu0 0.0
        %539 = vmatpush2.msra.mxu0 0.0
        %540 = vmatprep.subr.mxu0 0.0
        %541 = vmatpush2.msra.mxu0 0.0
        %542 = vmatprep.mubr.f32.mxu0 0.0
        %v543 = vand.u32 %v429, 4294901760
        %v544 = vsub.f32 %v429, %v543
        %v545 = vand.u32 %v544, 4294901760
        %v546 = vsub.f32 %v544, %v545
        %v547 = vand.u32 %v546, 4294901760
        %548 = vmatmul.mubr.f32.gmra.mxu0 %v547
        %v549 = vpop.f32.mrf.mxu0
        %v550 = vadd.f32 0.0, %v549
        %v551 = vpop.f32.mrf.mxu0
        %552 = vdwg.mxu0
        %553 = vmatprep.subr.mxu0 0.0
        %v554 = vand.u32 %v461, 4294901760
        %v555 = vsub.f32 %v461, %v554
        %v556 = vand.u32 %v555, 4294901760
        %v557 = vsub.f32 %v555, %v556
        %v558 = vand.u32 %v557, 4294901760
        %559 = vmatpush1.msra.mxu0 %v558
        %560 = vmatprep.subr.mxu0 0.0
        %v561 = vand.u32 %v460, 4294901760
        %v562 = vsub.f32 %v460, %v561
        %v563 = vand.u32 %v562, 4294901760
        %v564 = vsub.f32 %v562, %v563
        %v565 = vand.u32 %v564, 4294901760
        %566 = vmatpush1.msra.mxu0 %v565
        %567 = vmatprep.subr.mxu0 0.0
        %v568 = vand.u32 %v459, 4294901760
        %v569 = vsub.f32 %v459, %v568
        %v570 = vand.u32 %v569, 4294901760
        %v571 = vsub.f32 %v569, %v570
        %v572 = vand.u32 %v571, 4294901760
        %573 = vmatpush1.msra.mxu0 %v572
        %574 = vmatprep.subr.mxu0 0.0
        %v575 = vand.u32 %v458, 4294901760
        %v576 = vsub.f32 %v458, %v575
        %v577 = vand.u32 %v576, 4294901760
        %v578 = vsub.f32 %v576, %v577
        %v579 = vand.u32 %v578, 4294901760
        %580 = vmatpush1.msra.mxu0 %v579
        %581 = vmatprep.subr.mxu0 0.0
        %v582 = vand.u32 %v457, 4294901760
        %v583 = vsub.f32 %v457, %v582
        %v584 = vand.u32 %v583, 4294901760
        %v585 = vsub.f32 %v583, %v584
        %v586 = vand.u32 %v585, 4294901760
        %587 = vmatpush1.msra.mxu0 %v586
        %588 = vmatprep.subr.mxu0 0.0
        %v589 = vand.u32 %v456, 4294901760
        %v590 = vsub.f32 %v456, %v589
        %v591 = vand.u32 %v590, 4294901760
        %v592 = vsub.f32 %v590, %v591
        %v593 = vand.u32 %v592, 4294901760
        %594 = vmatpush1.msra.mxu0 %v593
        %595 = vmatprep.subr.mxu0 0.0
        %v596 = vand.u32 %v455, 4294901760
        %v597 = vsub.f32 %v455, %v596
        %v598 = vand.u32 %v597, 4294901760
        %v599 = vsub.f32 %v597, %v598
        %v600 = vand.u32 %v599, 4294901760
        %601 = vmatpush1.msra.mxu0 %v600
        %602 = vmatprep.subr.mxu0 0.0
        %v603 = vand.u32 %v454, 4294901760
        %v604 = vsub.f32 %v454, %v603
        %v605 = vand.u32 %v604, 4294901760
        %v606 = vsub.f32 %v604, %v605
        %v607 = vand.u32 %v606, 4294901760
        %608 = vmatpush1.msra.mxu0 %v607
        %609 = vmatprep.subr.mxu0 0.0
        %v610 = vand.u32 %v453, 4294901760
        %v611 = vsub.f32 %v453, %v610
        %v612 = vand.u32 %v611, 4294901760
        %v613 = vsub.f32 %v611, %v612
        %v614 = vand.u32 %v613, 4294901760
        %615 = vmatpush1.msra.mxu0 %v614
        %616 = vmatprep.subr.mxu0 0.0
        %v617 = vand.u32 %v452, 4294901760
        %v618 = vsub.f32 %v452, %v617
        %v619 = vand.u32 %v618, 4294901760
        %v620 = vsub.f32 %v618, %v619
        %v621 = vand.u32 %v620, 4294901760
        %622 = vmatpush1.msra.mxu0 %v621
        %623 = vmatprep.subr.mxu0 0.0
        %v624 = vand.u32 %v451, 4294901760
        %v625 = vsub.f32 %v451, %v624
        %v626 = vand.u32 %v625, 4294901760
        %v627 = vsub.f32 %v625, %v626
        %v628 = vand.u32 %v627, 4294901760
        %629 = vmatpush1.msra.mxu0 %v628
        %630 = vmatprep.subr.mxu0 0.0
        %v631 = vand.u32 %v450, 4294901760
        %v632 = vsub.f32 %v450, %v631
        %v633 = vand.u32 %v632, 4294901760
        %v634 = vsub.f32 %v632, %v633
        %v635 = vand.u32 %v634, 4294901760
        %636 = vmatpush1.msra.mxu0 %v635
        %637 = vmatprep.subr.mxu0 0.0
        %v638 = vand.u32 %v449, 4294901760
        %v639 = vsub.f32 %v449, %v638
        %v640 = vand.u32 %v639, 4294901760
        %v641 = vsub.f32 %v639, %v640
        %v642 = vand.u32 %v641, 4294901760
        %643 = vmatpush1.msra.mxu0 %v642
        %644 = vmatprep.subr.mxu0 0.0
        %v645 = vand.u32 %v448, 4294901760
        %v646 = vsub.f32 %v448, %v645
        %v647 = vand.u32 %v646, 4294901760
        %v648 = vsub.f32 %v646, %v647
        %v649 = vand.u32 %v648, 4294901760
        %650 = vmatpush1.msra.mxu0 %v649
        %651 = vmatprep.subr.mxu0 0.0
        %v652 = vand.u32 %v447, 4294901760
        %v653 = vsub.f32 %v447, %v652
        %v654 = vand.u32 %v653, 4294901760
        %v655 = vsub.f32 %v653, %v654
        %v656 = vand.u32 %v655, 4294901760
        %657 = vmatpush1.msra.mxu0 %v656
        %658 = vmatprep.subr.mxu0 0.0
        %v659 = vand.u32 %v446, 4294901760
        %v660 = vsub.f32 %v446, %v659
        %v661 = vand.u32 %v660, 4294901760
        %v662 = vsub.f32 %v660, %v661
        %v663 = vand.u32 %v662, 4294901760
        %664 = vmatpush1.msra.mxu0 %v663
        %665 = vmatprep.subr.mxu0 0.0
        %666 = vmatpush2.msra.mxu0 0.0
        %667 = vmatprep.subr.mxu0 0.0
        %668 = vmatpush2.msra.mxu0 0.0
        %669 = vmatprep.subr.mxu0 0.0
        %670 = vmatpush2.msra.mxu0 0.0
        %671 = vmatprep.subr.mxu0 0.0
        %672 = vmatpush2.msra.mxu0 0.0
        %673 = vmatprep.subr.mxu0 0.0
        %674 = vmatpush2.msra.mxu0 0.0
        %675 = vmatprep.subr.mxu0 0.0
        %676 = vmatpush2.msra.mxu0 0.0
        %677 = vmatprep.subr.mxu0 0.0
        %678 = vmatpush2.msra.mxu0 0.0
        %679 = vmatprep.subr.mxu0 0.0
        %680 = vmatpush2.msra.mxu0 0.0
        %681 = vmatprep.subr.mxu0 0.0
        %682 = vmatpush2.msra.mxu0 0.0
        %683 = vmatprep.subr.mxu0 0.0
        %684 = vmatpush2.msra.mxu0 0.0
        %685 = vmatprep.subr.mxu0 0.0
        %686 = vmatpush2.msra.mxu0 0.0
        %687 = vmatprep.subr.mxu0 0.0
        %688 = vmatpush2.msra.mxu0 0.0
        %689 = vmatprep.subr.mxu0 0.0
        %690 = vmatpush2.msra.mxu0 0.0
        %691 = vmatprep.subr.mxu0 0.0
        %692 = vmatpush2.msra.mxu0 0.0
        %693 = vmatprep.subr.mxu0 0.0
        %694 = vmatpush2.msra.mxu0 0.0
        %695 = vmatprep.subr.mxu0 0.0
        %696 = vmatpush2.msra.mxu0 0.0
        %697 = vmatprep.mubr.f32.mxu0 0.0
        %v698 = vand.u32 %v429, 4294901760
        %699 = vmatmul.mubr.f32.gmra.mxu0 %v698
        %v700 = vpop.f32.mrf.mxu0
        %v701 = vadd.f32 %v550, %v700
        %v702 = vpop.f32.mrf.mxu0
        %703 = vdwg.mxu0
        %704 = vmatprep.subr.mxu0 0.0
        %v705 = vand.u32 %v461, 4294901760
        %v706 = vsub.f32 %v461, %v705
        %707 = vmatpush1.msra.mxu0 %v706
        %708 = vmatprep.subr.mxu0 0.0
        %v709 = vand.u32 %v460, 4294901760
        %v710 = vsub.f32 %v460, %v709
        %711 = vmatpush1.msra.mxu0 %v710
        %712 = vmatprep.subr.mxu0 0.0
        %v713 = vand.u32 %v459, 4294901760
        %v714 = vsub.f32 %v459, %v713
        %715 = vmatpush1.msra.mxu0 %v714
        %716 = vmatprep.subr.mxu0 0.0
        %v717 = vand.u32 %v458, 4294901760
        %v718 = vsub.f32 %v458, %v717
        %719 = vmatpush1.msra.mxu0 %v718
        %720 = vmatprep.subr.mxu0 0.0
        %v721 = vand.u32 %v457, 4294901760
        %v722 = vsub.f32 %v457, %v721
        %723 = vmatpush1.msra.mxu0 %v722
        %724 = vmatprep.subr.mxu0 0.0
        %v725 = vand.u32 %v456, 4294901760
        %v726 = vsub.f32 %v456, %v725
        %727 = vmatpush1.msra.mxu0 %v726
        %728 = vmatprep.subr.mxu0 0.0
        %v729 = vand.u32 %v455, 4294901760
        %v730 = vsub.f32 %v455, %v729
        %731 = vmatpush1.msra.mxu0 %v730
        %732 = vmatprep.subr.mxu0 0.0
        %v733 = vand.u32 %v454, 4294901760
        %v734 = vsub.f32 %v454, %v733
        %735 = vmatpush1.msra.mxu0 %v734
        %736 = vmatprep.subr.mxu0 0.0
        %v737 = vand.u32 %v453, 4294901760
        %v738 = vsub.f32 %v453, %v737
        %739 = vmatpush1.msra.mxu0 %v738
        %740 = vmatprep.subr.mxu0 0.0
        %v741 = vand.u32 %v452, 4294901760
        %v742 = vsub.f32 %v452, %v741
        %743 = vmatpush1.msra.mxu0 %v742
        %744 = vmatprep.subr.mxu0 0.0
        %v745 = vand.u32 %v451, 4294901760
        %v746 = vsub.f32 %v451, %v745
        %747 = vmatpush1.msra.mxu0 %v746
        %748 = vmatprep.subr.mxu0 0.0
        %v749 = vand.u32 %v450, 4294901760
        %v750 = vsub.f32 %v450, %v749
        %751 = vmatpush1.msra.mxu0 %v750
        %752 = vmatprep.subr.mxu0 0.0
        %v753 = vand.u32 %v449, 4294901760
        %v754 = vsub.f32 %v449, %v753
        %755 = vmatpush1.msra.mxu0 %v754
        %756 = vmatprep.subr.mxu0 0.0
        %v757 = vand.u32 %v448, 4294901760
        %v758 = vsub.f32 %v448, %v757
        %759 = vmatpush1.msra.mxu0 %v758
        %760 = vmatprep.subr.mxu0 0.0
        %v761 = vand.u32 %v447, 4294901760
        %v762 = vsub.f32 %v447, %v761
        %763 = vmatpush1.msra.mxu0 %v762
        %764 = vmatprep.subr.mxu0 0.0
        %v765 = vand.u32 %v446, 4294901760
        %v766 = vsub.f32 %v446, %v765
        %767 = vmatpush1.msra.mxu0 %v766
        %768 = vmatprep.subr.mxu0 0.0
        %769 = vmatpush2.msra.mxu0 0.0
        %770 = vmatprep.subr.mxu0 0.0
        %771 = vmatpush2.msra.mxu0 0.0
        %772 = vmatprep.subr.mxu0 0.0
        %773 = vmatpush2.msra.mxu0 0.0
        %774 = vmatprep.subr.mxu0 0.0
        %775 = vmatpush2.msra.mxu0 0.0
        %776 = vmatprep.subr.mxu0 0.0
        %777 = vmatpush2.msra.mxu0 0.0
        %778 = vmatprep.subr.mxu0 0.0
        %779 = vmatpush2.msra.mxu0 0.0
        %780 = vmatprep.subr.mxu0 0.0
        %781 = vmatpush2.msra.mxu0 0.0
        %782 = vmatprep.subr.mxu0 0.0
        %783 = vmatpush2.msra.mxu0 0.0
        %784 = vmatprep.subr.mxu0 0.0
        %785 = vmatpush2.msra.mxu0 0.0
        %786 = vmatprep.subr.mxu0 0.0
        %787 = vmatpush2.msra.mxu0 0.0
        %788 = vmatprep.subr.mxu0 0.0
        %789 = vmatpush2.msra.mxu0 0.0
        %790 = vmatprep.subr.mxu0 0.0
        %791 = vmatpush2.msra.mxu0 0.0
        %792 = vmatprep.subr.mxu0 0.0
        %793 = vmatpush2.msra.mxu0 0.0
        %794 = vmatprep.subr.mxu0 0.0
        %795 = vmatpush2.msra.mxu0 0.0
        %796 = vmatprep.subr.mxu0 0.0
        %797 = vmatpush2.msra.mxu0 0.0
        %798 = vmatprep.subr.mxu0 0.0
        %799 = vmatpush2.msra.mxu0 0.0
        %800 = vmatprep.mubr.f32.mxu0 0.0
        %v801 = vand.u32 %v429, 4294901760
        %v802 = vsub.f32 %v429, %v801
        %803 = vmatmul.mubr.f32.gmra.mxu0 %v802
        %v804 = vpop.f32.mrf.mxu0
        %v805 = vadd.f32 %v701, %v804
        %v806 = vpop.f32.mrf.mxu0
        %807 = vdwg.mxu0
        %808 = vmatprep.subr.mxu0 0.0
        %v809 = vand.u32 %v461, 4294901760
        %810 = vmatpush1.msra.mxu0 %v809
        %811 = vmatprep.subr.mxu0 0.0
        %v812 = vand.u32 %v460, 4294901760
        %813 = vmatpush1.msra.mxu0 %v812
        %814 = vmatprep.subr.mxu0 0.0
        %v815 = vand.u32 %v459, 4294901760
        %816 = vmatpush1.msra.mxu0 %v815
        %817 = vmatprep.subr.mxu0 0.0
        %v818 = vand.u32 %v458, 4294901760
        %819 = vmatpush1.msra.mxu0 %v818
        %820 = vmatprep.subr.mxu0 0.0
        %v821 = vand.u32 %v457, 4294901760
        %822 = vmatpush1.msra.mxu0 %v821
        %823 = vmatprep.subr.mxu0 0.0
        %v824 = vand.u32 %v456, 4294901760
        %825 = vmatpush1.msra.mxu0 %v824
        %826 = vmatprep.subr.mxu0 0.0
        %v827 = vand.u32 %v455, 4294901760
        %828 = vmatpush1.msra.mxu0 %v827
        %829 = vmatprep.subr.mxu0 0.0
        %v830 = vand.u32 %v454, 4294901760
        %831 = vmatpush1.msra.mxu0 %v830
        %832 = vmatprep.subr.mxu0 0.0
        %v833 = vand.u32 %v453, 4294901760
        %834 = vmatpush1.msra.mxu0 %v833
        %835 = vmatprep.subr.mxu0 0.0
        %v836 = vand.u32 %v452, 4294901760
        %837 = vmatpush1.msra.mxu0 %v836
        %838 = vmatprep.subr.mxu0 0.0
        %v839 = vand.u32 %v451, 4294901760
        %840 = vmatpush1.msra.mxu0 %v839
        %841 = vmatprep.subr.mxu0 0.0
        %v842 = vand.u32 %v450, 4294901760
        %843 = vmatpush1.msra.mxu0 %v842
        %844 = vmatprep.subr.mxu0 0.0
        %v845 = vand.u32 %v449, 4294901760
        %846 = vmatpush1.msra.mxu0 %v845
        %847 = vmatprep.subr.mxu0 0.0
        %v848 = vand.u32 %v448, 4294901760
        %849 = vmatpush1.msra.mxu0 %v848
        %850 = vmatprep.subr.mxu0 0.0
        %v851 = vand.u32 %v447, 4294901760
        %852 = vmatpush1.msra.mxu0 %v851
        %853 = vmatprep.subr.mxu0 0.0
        %v854 = vand.u32 %v446, 4294901760
        %855 = vmatpush1.msra.mxu0 %v854
        %856 = vmatprep.subr.mxu0 0.0
        %857 = vmatpush2.msra.mxu0 0.0
        %858 = vmatprep.subr.mxu0 0.0
        %859 = vmatpush2.msra.mxu0 0.0
        %860 = vmatprep.subr.mxu0 0.0
        %861 = vmatpush2.msra.mxu0 0.0
        %862 = vmatprep.subr.mxu0 0.0
        %863 = vmatpush2.msra.mxu0 0.0
        %864 = vmatprep.subr.mxu0 0.0
        %865 = vmatpush2.msra.mxu0 0.0
        %866 = vmatprep.subr.mxu0 0.0
        %867 = vmatpush2.msra.mxu0 0.0
        %868 = vmatprep.subr.mxu0 0.0
        %869 = vmatpush2.msra.mxu0 0.0
        %870 = vmatprep.subr.mxu0 0.0
        %871 = vmatpush2.msra.mxu0 0.0
        %872 = vmatprep.subr.mxu0 0.0
        %873 = vmatpush2.msra.mxu0 0.0
        %874 = vmatprep.subr.mxu0 0.0
        %875 = vmatpush2.msra.mxu0 0.0
        %876 = vmatprep.subr.mxu0 0.0
        %877 = vmatpush2.msra.mxu0 0.0
        %878 = vmatprep.subr.mxu0 0.0
        %879 = vmatpush2.msra.mxu0 0.0
        %880 = vmatprep.subr.mxu0 0.0
        %881 = vmatpush2.msra.mxu0 0.0
        %882 = vmatprep.subr.mxu0 0.0
        %883 = vmatpush2.msra.mxu0 0.0
        %884 = vmatprep.subr.mxu0 0.0
        %885 = vmatpush2.msra.mxu0 0.0
        %886 = vmatprep.subr.mxu0 0.0
        %887 = vmatpush2.msra.mxu0 0.0
        %888 = vmatprep.mubr.f32.mxu0 0.0
        %v889 = vand.u32 %v429, 4294901760
        %v890 = vsub.f32 %v429, %v889
        %v891 = vand.u32 %v890, 4294901760
        %892 = vmatmul.mubr.f32.gmra.mxu0 %v891
        %v893 = vpop.f32.mrf.mxu0
        %v894 = vadd.f32 %v805, %v893
        %v895 = vpop.f32.mrf.mxu0
        %896 = vdwg.mxu0
        %897 = vmatprep.subr.mxu0 0.0
        %v898 = vand.u32 %v461, 4294901760
        %v899 = vsub.f32 %v461, %v898
        %v900 = vand.u32 %v899, 4294901760
        %901 = vmatpush1.msra.mxu0 %v900
        %902 = vmatprep.subr.mxu0 0.0
        %v903 = vand.u32 %v460, 4294901760
        %v904 = vsub.f32 %v460, %v903
        %v905 = vand.u32 %v904, 4294901760
        %906 = vmatpush1.msra.mxu0 %v905
        %907 = vmatprep.subr.mxu0 0.0
        %v908 = vand.u32 %v459, 4294901760
        %v909 = vsub.f32 %v459, %v908
        %v910 = vand.u32 %v909, 4294901760
        %911 = vmatpush1.msra.mxu0 %v910
        %912 = vmatprep.subr.mxu0 0.0
        %v913 = vand.u32 %v458, 4294901760
        %v914 = vsub.f32 %v458, %v913
        %v915 = vand.u32 %v914, 4294901760
        %916 = vmatpush1.msra.mxu0 %v915
        %917 = vmatprep.subr.mxu0 0.0
        %v918 = vand.u32 %v457, 4294901760
        %v919 = vsub.f32 %v457, %v918
        %v920 = vand.u32 %v919, 4294901760
        %921 = vmatpush1.msra.mxu0 %v920
        %922 = vmatprep.subr.mxu0 0.0
        %v923 = vand.u32 %v456, 4294901760
        %v924 = vsub.f32 %v456, %v923
        %v925 = vand.u32 %v924, 4294901760
        %926 = vmatpush1.msra.mxu0 %v925
        %927 = vmatprep.subr.mxu0 0.0
        %v928 = vand.u32 %v455, 4294901760
        %v929 = vsub.f32 %v455, %v928
        %v930 = vand.u32 %v929, 4294901760
        %931 = vmatpush1.msra.mxu0 %v930
        %932 = vmatprep.subr.mxu0 0.0
        %v933 = vand.u32 %v454, 4294901760
        %v934 = vsub.f32 %v454, %v933
        %v935 = vand.u32 %v934, 4294901760
        %936 = vmatpush1.msra.mxu0 %v935
        %937 = vmatprep.subr.mxu0 0.0
        %v938 = vand.u32 %v453, 4294901760
        %v939 = vsub.f32 %v453, %v938
        %v940 = vand.u32 %v939, 4294901760
        %941 = vmatpush1.msra.mxu0 %v940
        %942 = vmatprep.subr.mxu0 0.0
        %v943 = vand.u32 %v452, 4294901760
        %v944 = vsub.f32 %v452, %v943
        %v945 = vand.u32 %v944, 4294901760
        %946 = vmatpush1.msra.mxu0 %v945
        %947 = vmatprep.subr.mxu0 0.0
        %v948 = vand.u32 %v451, 4294901760
        %v949 = vsub.f32 %v451, %v948
        %v950 = vand.u32 %v949, 4294901760
        %951 = vmatpush1.msra.mxu0 %v950
        %952 = vmatprep.subr.mxu0 0.0
        %v953 = vand.u32 %v450, 4294901760
        %v954 = vsub.f32 %v450, %v953
        %v955 = vand.u32 %v954, 4294901760
        %956 = vmatpush1.msra.mxu0 %v955
        %957 = vmatprep.subr.mxu0 0.0
        %v958 = vand.u32 %v449, 4294901760
        %v959 = vsub.f32 %v449, %v958
        %v960 = vand.u32 %v959, 4294901760
        %961 = vmatpush1.msra.mxu0 %v960
        %962 = vmatprep.subr.mxu0 0.0
        %v963 = vand.u32 %v448, 4294901760
        %v964 = vsub.f32 %v448, %v963
        %v965 = vand.u32 %v964, 4294901760
        %966 = vmatpush1.msra.mxu0 %v965
        %967 = vmatprep.subr.mxu0 0.0
        %v968 = vand.u32 %v447, 4294901760
        %v969 = vsub.f32 %v447, %v968
        %v970 = vand.u32 %v969, 4294901760
        %971 = vmatpush1.msra.mxu0 %v970
        %972 = vmatprep.subr.mxu0 0.0
        %v973 = vand.u32 %v446, 4294901760
        %v974 = vsub.f32 %v446, %v973
        %v975 = vand.u32 %v974, 4294901760
        %976 = vmatpush1.msra.mxu0 %v975
        %977 = vmatprep.subr.mxu0 0.0
        %978 = vmatpush2.msra.mxu0 0.0
        %979 = vmatprep.subr.mxu0 0.0
        %980 = vmatpush2.msra.mxu0 0.0
        %981 = vmatprep.subr.mxu0 0.0
        %982 = vmatpush2.msra.mxu0 0.0
        %983 = vmatprep.subr.mxu0 0.0
        %984 = vmatpush2.msra.mxu0 0.0
        %985 = vmatprep.subr.mxu0 0.0
        %986 = vmatpush2.msra.mxu0 0.0
        %987 = vmatprep.subr.mxu0 0.0
        %988 = vmatpush2.msra.mxu0 0.0
        %989 = vmatprep.subr.mxu0 0.0
        %990 = vmatpush2.msra.mxu0 0.0
        %991 = vmatprep.subr.mxu0 0.0
        %992 = vmatpush2.msra.mxu0 0.0
        %993 = vmatprep.subr.mxu0 0.0
        %994 = vmatpush2.msra.mxu0 0.0
        %995 = vmatprep.subr.mxu0 0.0
        %996 = vmatpush2.msra.mxu0 0.0
        %997 = vmatprep.subr.mxu0 0.0
        %998 = vmatpush2.msra.mxu0 0.0
        %999 = vmatprep.subr.mxu0 0.0
        %1000 = vmatpush2.msra.mxu0 0.0
        %1001 = vmatprep.subr.mxu0 0.0
        %1002 = vmatpush2.msra.mxu0 0.0
        %1003 = vmatprep.subr.mxu0 0.0
        %1004 = vmatpush2.msra.mxu0 0.0
        %1005 = vmatprep.subr.mxu0 0.0
        %1006 = vmatpush2.msra.mxu0 0.0
        %1007 = vmatprep.subr.mxu0 0.0
        %1008 = vmatpush2.msra.mxu0 0.0
        %1009 = vmatprep.mubr.f32.mxu0 0.0
        %v1010 = vand.u32 %v429, 4294901760
        %1011 = vmatmul.mubr.f32.gmra.mxu0 %v1010
        %v1012 = vpop.f32.mrf.mxu0
        %v1013 = vadd.f32 %v894, %v1012
        %v1014 = vpop.f32.mrf.mxu0
        %1015 = vdwg.mxu0
        %1016 = vmatprep.subr.mxu0 0.0
        %v1017 = vand.u32 %v461, 4294901760
        %1018 = vmatpush1.msra.mxu0 %v1017
        %1019 = vmatprep.subr.mxu0 0.0
        %v1020 = vand.u32 %v460, 4294901760
        %1021 = vmatpush1.msra.mxu0 %v1020
        %1022 = vmatprep.subr.mxu0 0.0
        %v1023 = vand.u32 %v459, 4294901760
        %1024 = vmatpush1.msra.mxu0 %v1023
        %1025 = vmatprep.subr.mxu0 0.0
        %v1026 = vand.u32 %v458, 4294901760
        %1027 = vmatpush1.msra.mxu0 %v1026
        %1028 = vmatprep.subr.mxu0 0.0
        %v1029 = vand.u32 %v457, 4294901760
        %1030 = vmatpush1.msra.mxu0 %v1029
        %1031 = vmatprep.subr.mxu0 0.0
        %v1032 = vand.u32 %v456, 4294901760
        %1033 = vmatpush1.msra.mxu0 %v1032
        %1034 = vmatprep.subr.mxu0 0.0
        %v1035 = vand.u32 %v455, 4294901760
        %1036 = vmatpush1.msra.mxu0 %v1035
        %1037 = vmatprep.subr.mxu0 0.0
        %v1038 = vand.u32 %v454, 4294901760
        %1039 = vmatpush1.msra.mxu0 %v1038
        %1040 = vmatprep.subr.mxu0 0.0
        %v1041 = vand.u32 %v453, 4294901760
        %1042 = vmatpush1.msra.mxu0 %v1041
        %1043 = vmatprep.subr.mxu0 0.0
        %v1044 = vand.u32 %v452, 4294901760
        %1045 = vmatpush1.msra.mxu0 %v1044
        %1046 = vmatprep.subr.mxu0 0.0
        %v1047 = vand.u32 %v451, 4294901760
        %1048 = vmatpush1.msra.mxu0 %v1047
        %1049 = vmatprep.subr.mxu0 0.0
        %v1050 = vand.u32 %v450, 4294901760
        %1051 = vmatpush1.msra.mxu0 %v1050
        %1052 = vmatprep.subr.mxu0 0.0
        %v1053 = vand.u32 %v449, 4294901760
        %1054 = vmatpush1.msra.mxu0 %v1053
        %1055 = vmatprep.subr.mxu0 0.0
        %v1056 = vand.u32 %v448, 4294901760
        %1057 = vmatpush1.msra.mxu0 %v1056
        %1058 = vmatprep.subr.mxu0 0.0
        %v1059 = vand.u32 %v447, 4294901760
        %1060 = vmatpush1.msra.mxu0 %v1059
        %1061 = vmatprep.subr.mxu0 0.0
        %v1062 = vand.u32 %v446, 4294901760
        %1063 = vmatpush1.msra.mxu0 %v1062
        %1064 = vmatprep.subr.mxu0 0.0
        %1065 = vmatpush2.msra.mxu0 0.0
        %1066 = vmatprep.subr.mxu0 0.0
        %1067 = vmatpush2.msra.mxu0 0.0
        %1068 = vmatprep.subr.mxu0 0.0
        %1069 = vmatpush2.msra.mxu0 0.0
        %1070 = vmatprep.subr.mxu0 0.0
        %1071 = vmatpush2.msra.mxu0 0.0
        %1072 = vmatprep.subr.mxu0 0.0
        %1073 = vmatpush2.msra.mxu0 0.0
        %1074 = vmatprep.subr.mxu0 0.0
        %1075 = vmatpush2.msra.mxu0 0.0
        %1076 = vmatprep.subr.mxu0 0.0
        %1077 = vmatpush2.msra.mxu0 0.0
        %1078 = vmatprep.subr.mxu0 0.0
        %1079 = vmatpush2.msra.mxu0 0.0
        %1080 = vmatprep.subr.mxu0 0.0
        %1081 = vmatpush2.msra.mxu0 0.0
        %1082 = vmatprep.subr.mxu0 0.0
        %1083 = vmatpush2.msra.mxu0 0.0
        %1084 = vmatprep.subr.mxu0 0.0
        %1085 = vmatpush2.msra.mxu0 0.0
        %1086 = vmatprep.subr.mxu0 0.0
        %1087 = vmatpush2.msra.mxu0 0.0
        %1088 = vmatprep.subr.mxu0 0.0
        %1089 = vmatpush2.msra.mxu0 0.0
        %1090 = vmatprep.subr.mxu0 0.0
        %1091 = vmatpush2.msra.mxu0 0.0
        %1092 = vmatprep.subr.mxu0 0.0
        %1093 = vmatpush2.msra.mxu0 0.0
        %1094 = vmatprep.subr.mxu0 0.0
        %1095 = vmatpush2.msra.mxu0 0.0
        %1096 = vmatprep.mubr.f32.mxu0 0.0
        %v1097 = vand.u32 %v429, 4294901760
        %1098 = vmatmul.mubr.f32.gmra.mxu0 %v1097
        %v1099 = vpop.f32.mrf.mxu0
        %v1100 = vadd.f32 %v1013, %v1099
        %v1101 = vpop.f32.mrf.mxu0
        %1102 = vdwg.mxu0
        %1103 = vmatprep.subr.mxu0 0.0
        %v1104 = vand.u32 %v445, 4294901760
        %1105 = vmatpush1.msra.mxu0 %v1104
        %1106 = vmatprep.subr.mxu0 0.0
        %v1107 = vand.u32 %v444, 4294901760
        %1108 = vmatpush1.msra.mxu0 %v1107
        %1109 = vmatprep.subr.mxu0 0.0
        %v1110 = vand.u32 %v443, 4294901760
        %1111 = vmatpush1.msra.mxu0 %v1110
        %1112 = vmatprep.subr.mxu0 0.0
        %v1113 = vand.u32 %v442, 4294901760
        %1114 = vmatpush1.msra.mxu0 %v1113
        %1115 = vmatprep.subr.mxu0 0.0
        %v1116 = vand.u32 %v441, 4294901760
        %1117 = vmatpush1.msra.mxu0 %v1116
        %1118 = vmatprep.subr.mxu0 0.0
        %v1119 = vand.u32 %v440, 4294901760
        %1120 = vmatpush1.msra.mxu0 %v1119
        %1121 = vmatprep.subr.mxu0 0.0
        %v1122 = vand.u32 %v439, 4294901760
        %1123 = vmatpush1.msra.mxu0 %v1122
        %1124 = vmatprep.subr.mxu0 0.0
        %v1125 = vand.u32 %v438, 4294901760
        %1126 = vmatpush1.msra.mxu0 %v1125
        %1127 = vmatprep.subr.mxu0 0.0
        %v1128 = vand.u32 %v437, 4294901760
        %1129 = vmatpush1.msra.mxu0 %v1128
        %1130 = vmatprep.subr.mxu0 0.0
        %v1131 = vand.u32 %v436, 4294901760
        %1132 = vmatpush1.msra.mxu0 %v1131
        %1133 = vmatprep.subr.mxu0 0.0
        %v1134 = vand.u32 %v435, 4294901760
        %1135 = vmatpush1.msra.mxu0 %v1134
        %1136 = vmatprep.subr.mxu0 0.0
        %v1137 = vand.u32 %v434, 4294901760
        %1138 = vmatpush1.msra.mxu0 %v1137
        %1139 = vmatprep.subr.mxu0 0.0
        %v1140 = vand.u32 %v433, 4294901760
        %1141 = vmatpush1.msra.mxu0 %v1140
        %1142 = vmatprep.subr.mxu0 0.0
        %v1143 = vand.u32 %v432, 4294901760
        %1144 = vmatpush1.msra.mxu0 %v1143
        %1145 = vmatprep.subr.mxu0 0.0
        %v1146 = vand.u32 %v431, 4294901760
        %1147 = vmatpush1.msra.mxu0 %v1146
        %1148 = vmatprep.subr.mxu0 0.0
        %v1149 = vand.u32 %v430, 4294901760
        %1150 = vmatpush1.msra.mxu0 %v1149
        %1151 = vmatprep.subr.mxu0 0.0
        %1152 = vmatpush2.msra.mxu0 0.0
        %1153 = vmatprep.subr.mxu0 0.0
        %1154 = vmatpush2.msra.mxu0 0.0
        %1155 = vmatprep.subr.mxu0 0.0
        %1156 = vmatpush2.msra.mxu0 0.0
        %1157 = vmatprep.subr.mxu0 0.0
        %1158 = vmatpush2.msra.mxu0 0.0
        %1159 = vmatprep.subr.mxu0 0.0
        %1160 = vmatpush2.msra.mxu0 0.0
        %1161 = vmatprep.subr.mxu0 0.0
        %1162 = vmatpush2.msra.mxu0 0.0
        %1163 = vmatprep.subr.mxu0 0.0
        %1164 = vmatpush2.msra.mxu0 0.0
        %1165 = vmatprep.subr.mxu0 0.0
        %1166 = vmatpush2.msra.mxu0 0.0
        %1167 = vmatprep.subr.mxu0 0.0
        %1168 = vmatpush2.msra.mxu0 0.0
        %1169 = vmatprep.subr.mxu0 0.0
        %1170 = vmatpush2.msra.mxu0 0.0
        %1171 = vmatprep.subr.mxu0 0.0
        %1172 = vmatpush2.msra.mxu0 0.0
        %1173 = vmatprep.subr.mxu0 0.0
        %1174 = vmatpush2.msra.mxu0 0.0
        %1175 = vmatprep.subr.mxu0 0.0
        %1176 = vmatpush2.msra.mxu0 0.0
        %1177 = vmatprep.subr.mxu0 0.0
        %1178 = vmatpush2.msra.mxu0 0.0
        %1179 = vmatprep.subr.mxu0 0.0
        %1180 = vmatpush2.msra.mxu0 0.0
        %1181 = vmatprep.subr.mxu0 0.0
        %1182 = vmatpush2.msra.mxu0 0.0
        %1183 = vmatprep.mubr.f32.mxu0 0.0
        %v1184 = vand.u32 %v428, 4294901760
        %v1185 = vsub.f32 %v428, %v1184
        %v1186 = vand.u32 %v1185, 4294901760
        %v1187 = vsub.f32 %v1185, %v1186
        %v1188 = vand.u32 %v1187, 4294901760
        %1189 = vmatmul.mubr.f32.gmra.mxu0 %v1188
        %v1190 = vpop.f32.mrf.mxu0
        %v1191 = vadd.f32 %v1100, %v1190
        %v1192 = vpop.f32.mrf.mxu0
        %1193 = vdwg.mxu0
        %1194 = vmatprep.subr.mxu0 0.0
        %v1195 = vand.u32 %v445, 4294901760
        %v1196 = vsub.f32 %v445, %v1195
        %v1197 = vand.u32 %v1196, 4294901760
        %v1198 = vsub.f32 %v1196, %v1197
        %v1199 = vand.u32 %v1198, 4294901760
        %1200 = vmatpush1.msra.mxu0 %v1199
        %1201 = vmatprep.subr.mxu0 0.0
        %v1202 = vand.u32 %v444, 4294901760
        %v1203 = vsub.f32 %v444, %v1202
        %v1204 = vand.u32 %v1203, 4294901760
        %v1205 = vsub.f32 %v1203, %v1204
        %v1206 = vand.u32 %v1205, 4294901760
        %1207 = vmatpush1.msra.mxu0 %v1206
        %1208 = vmatprep.subr.mxu0 0.0
        %v1209 = vand.u32 %v443, 4294901760
        %v1210 = vsub.f32 %v443, %v1209
        %v1211 = vand.u32 %v1210, 4294901760
        %v1212 = vsub.f32 %v1210, %v1211
        %v1213 = vand.u32 %v1212, 4294901760
        %1214 = vmatpush1.msra.mxu0 %v1213
        %1215 = vmatprep.subr.mxu0 0.0
        %v1216 = vand.u32 %v442, 4294901760
        %v1217 = vsub.f32 %v442, %v1216
        %v1218 = vand.u32 %v1217, 4294901760
        %v1219 = vsub.f32 %v1217, %v1218
        %v1220 = vand.u32 %v1219, 4294901760
        %1221 = vmatpush1.msra.mxu0 %v1220
        %1222 = vmatprep.subr.mxu0 0.0
        %v1223 = vand.u32 %v441, 4294901760
        %v1224 = vsub.f32 %v441, %v1223
        %v1225 = vand.u32 %v1224, 4294901760
        %v1226 = vsub.f32 %v1224, %v1225
        %v1227 = vand.u32 %v1226, 4294901760
        %1228 = vmatpush1.msra.mxu0 %v1227
        %1229 = vmatprep.subr.mxu0 0.0
        %v1230 = vand.u32 %v440, 4294901760
        %v1231 = vsub.f32 %v440, %v1230
        %v1232 = vand.u32 %v1231, 4294901760
        %v1233 = vsub.f32 %v1231, %v1232
        %v1234 = vand.u32 %v1233, 4294901760
        %1235 = vmatpush1.msra.mxu0 %v1234
        %1236 = vmatprep.subr.mxu0 0.0
        %v1237 = vand.u32 %v439, 4294901760
        %v1238 = vsub.f32 %v439, %v1237
        %v1239 = vand.u32 %v1238, 4294901760
        %v1240 = vsub.f32 %v1238, %v1239
        %v1241 = vand.u32 %v1240, 4294901760
        %1242 = vmatpush1.msra.mxu0 %v1241
        %1243 = vmatprep.subr.mxu0 0.0
        %v1244 = vand.u32 %v438, 4294901760
        %v1245 = vsub.f32 %v438, %v1244
        %v1246 = vand.u32 %v1245, 4294901760
        %v1247 = vsub.f32 %v1245, %v1246
        %v1248 = vand.u32 %v1247, 4294901760
        %1249 = vmatpush1.msra.mxu0 %v1248
        %1250 = vmatprep.subr.mxu0 0.0
        %v1251 = vand.u32 %v437, 4294901760
        %v1252 = vsub.f32 %v437, %v1251
        %v1253 = vand.u32 %v1252, 4294901760
        %v1254 = vsub.f32 %v1252, %v1253
        %v1255 = vand.u32 %v1254, 4294901760
        %1256 = vmatpush1.msra.mxu0 %v1255
        %1257 = vmatprep.subr.mxu0 0.0
        %v1258 = vand.u32 %v436, 4294901760
        %v1259 = vsub.f32 %v436, %v1258
        %v1260 = vand.u32 %v1259, 4294901760
        %v1261 = vsub.f32 %v1259, %v1260
        %v1262 = vand.u32 %v1261, 4294901760
        %1263 = vmatpush1.msra.mxu0 %v1262
        %1264 = vmatprep.subr.mxu0 0.0
        %v1265 = vand.u32 %v435, 4294901760
        %v1266 = vsub.f32 %v435, %v1265
        %v1267 = vand.u32 %v1266, 4294901760
        %v1268 = vsub.f32 %v1266, %v1267
        %v1269 = vand.u32 %v1268, 4294901760
        %1270 = vmatpush1.msra.mxu0 %v1269
        %1271 = vmatprep.subr.mxu0 0.0
        %v1272 = vand.u32 %v434, 4294901760
        %v1273 = vsub.f32 %v434, %v1272
        %v1274 = vand.u32 %v1273, 4294901760
        %v1275 = vsub.f32 %v1273, %v1274
        %v1276 = vand.u32 %v1275, 4294901760
        %1277 = vmatpush1.msra.mxu0 %v1276
        %1278 = vmatprep.subr.mxu0 0.0
        %v1279 = vand.u32 %v433, 4294901760
        %v1280 = vsub.f32 %v433, %v1279
        %v1281 = vand.u32 %v1280, 4294901760
        %v1282 = vsub.f32 %v1280, %v1281
        %v1283 = vand.u32 %v1282, 4294901760
        %1284 = vmatpush1.msra.mxu0 %v1283
        %1285 = vmatprep.subr.mxu0 0.0
        %v1286 = vand.u32 %v432, 4294901760
        %v1287 = vsub.f32 %v432, %v1286
        %v1288 = vand.u32 %v1287, 4294901760
        %v1289 = vsub.f32 %v1287, %v1288
        %v1290 = vand.u32 %v1289, 4294901760
        %1291 = vmatpush1.msra.mxu0 %v1290
        %1292 = vmatprep.subr.mxu0 0.0
        %v1293 = vand.u32 %v431, 4294901760
        %v1294 = vsub.f32 %v431, %v1293
        %v1295 = vand.u32 %v1294, 4294901760
        %v1296 = vsub.f32 %v1294, %v1295
        %v1297 = vand.u32 %v1296, 4294901760
        %1298 = vmatpush1.msra.mxu0 %v1297
        %1299 = vmatprep.subr.mxu0 0.0
        %v1300 = vand.u32 %v430, 4294901760
        %v1301 = vsub.f32 %v430, %v1300
        %v1302 = vand.u32 %v1301, 4294901760
        %v1303 = vsub.f32 %v1301, %v1302
        %v1304 = vand.u32 %v1303, 4294901760
        %1305 = vmatpush1.msra.mxu0 %v1304
        %1306 = vmatprep.subr.mxu0 0.0
        %1307 = vmatpush2.msra.mxu0 0.0
        %1308 = vmatprep.subr.mxu0 0.0
        %1309 = vmatpush2.msra.mxu0 0.0
        %1310 = vmatprep.subr.mxu0 0.0
        %1311 = vmatpush2.msra.mxu0 0.0
        %1312 = vmatprep.subr.mxu0 0.0
        %1313 = vmatpush2.msra.mxu0 0.0
        %1314 = vmatprep.subr.mxu0 0.0
        %1315 = vmatpush2.msra.mxu0 0.0
        %1316 = vmatprep.subr.mxu0 0.0
        %1317 = vmatpush2.msra.mxu0 0.0
        %1318 = vmatprep.subr.mxu0 0.0
        %1319 = vmatpush2.msra.mxu0 0.0
        %1320 = vmatprep.subr.mxu0 0.0
        %1321 = vmatpush2.msra.mxu0 0.0
        %1322 = vmatprep.subr.mxu0 0.0
        %1323 = vmatpush2.msra.mxu0 0.0
        %1324 = vmatprep.subr.mxu0 0.0
        %1325 = vmatpush2.msra.mxu0 0.0
        %1326 = vmatprep.subr.mxu0 0.0
        %1327 = vmatpush2.msra.mxu0 0.0
        %1328 = vmatprep.subr.mxu0 0.0
        %1329 = vmatpush2.msra.mxu0 0.0
        %1330 = vmatprep.subr.mxu0 0.0
        %1331 = vmatpush2.msra.mxu0 0.0
        %1332 = vmatprep.subr.mxu0 0.0
        %1333 = vmatpush2.msra.mxu0 0.0
        %1334 = vmatprep.subr.mxu0 0.0
        %1335 = vmatpush2.msra.mxu0 0.0
        %1336 = vmatprep.subr.mxu0 0.0
        %1337 = vmatpush2.msra.mxu0 0.0
        %1338 = vmatprep.mubr.f32.mxu0 0.0
        %v1339 = vand.u32 %v428, 4294901760
        %1340 = vmatmul.mubr.f32.gmra.mxu0 %v1339
        %v1341 = vpop.f32.mrf.mxu0
        %v1342 = vadd.f32 %v1191, %v1341
        %v1343 = vpop.f32.mrf.mxu0
        %1344 = vdwg.mxu0
        %1345 = vmatprep.subr.mxu0 0.0
        %v1346 = vand.u32 %v445, 4294901760
        %v1347 = vsub.f32 %v445, %v1346
        %1348 = vmatpush1.msra.mxu0 %v1347
        %1349 = vmatprep.subr.mxu0 0.0
        %v1350 = vand.u32 %v444, 4294901760
        %v1351 = vsub.f32 %v444, %v1350
        %1352 = vmatpush1.msra.mxu0 %v1351
        %1353 = vmatprep.subr.mxu0 0.0
        %v1354 = vand.u32 %v443, 4294901760
        %v1355 = vsub.f32 %v443, %v1354
        %1356 = vmatpush1.msra.mxu0 %v1355
        %1357 = vmatprep.subr.mxu0 0.0
        %v1358 = vand.u32 %v442, 4294901760
        %v1359 = vsub.f32 %v442, %v1358
        %1360 = vmatpush1.msra.mxu0 %v1359
        %1361 = vmatprep.subr.mxu0 0.0
        %v1362 = vand.u32 %v441, 4294901760
        %v1363 = vsub.f32 %v441, %v1362
        %1364 = vmatpush1.msra.mxu0 %v1363
        %1365 = vmatprep.subr.mxu0 0.0
        %v1366 = vand.u32 %v440, 4294901760
        %v1367 = vsub.f32 %v440, %v1366
        %1368 = vmatpush1.msra.mxu0 %v1367
        %1369 = vmatprep.subr.mxu0 0.0
        %v1370 = vand.u32 %v439, 4294901760
        %v1371 = vsub.f32 %v439, %v1370
        %1372 = vmatpush1.msra.mxu0 %v1371
        %1373 = vmatprep.subr.mxu0 0.0
        %v1374 = vand.u32 %v438, 4294901760
        %v1375 = vsub.f32 %v438, %v1374
        %1376 = vmatpush1.msra.mxu0 %v1375
        %1377 = vmatprep.subr.mxu0 0.0
        %v1378 = vand.u32 %v437, 4294901760
        %v1379 = vsub.f32 %v437, %v1378
        %1380 = vmatpush1.msra.mxu0 %v1379
        %1381 = vmatprep.subr.mxu0 0.0
        %v1382 = vand.u32 %v436, 4294901760
        %v1383 = vsub.f32 %v436, %v1382
        %1384 = vmatpush1.msra.mxu0 %v1383
        %1385 = vmatprep.subr.mxu0 0.0
        %v1386 = vand.u32 %v435, 4294901760
        %v1387 = vsub.f32 %v435, %v1386
        %1388 = vmatpush1.msra.mxu0 %v1387
        %1389 = vmatprep.subr.mxu0 0.0
        %v1390 = vand.u32 %v434, 4294901760
        %v1391 = vsub.f32 %v434, %v1390
        %1392 = vmatpush1.msra.mxu0 %v1391
        %1393 = vmatprep.subr.mxu0 0.0
        %v1394 = vand.u32 %v433, 4294901760
        %v1395 = vsub.f32 %v433, %v1394
        %1396 = vmatpush1.msra.mxu0 %v1395
        %1397 = vmatprep.subr.mxu0 0.0
        %v1398 = vand.u32 %v432, 4294901760
        %v1399 = vsub.f32 %v432, %v1398
        %1400 = vmatpush1.msra.mxu0 %v1399
        %1401 = vmatprep.subr.mxu0 0.0
        %v1402 = vand.u32 %v431, 4294901760
        %v1403 = vsub.f32 %v431, %v1402
        %1404 = vmatpush1.msra.mxu0 %v1403
        %1405 = vmatprep.subr.mxu0 0.0
        %v1406 = vand.u32 %v430, 4294901760
        %v1407 = vsub.f32 %v430, %v1406
        %1408 = vmatpush1.msra.mxu0 %v1407
        %1409 = vmatprep.subr.mxu0 0.0
        %1410 = vmatpush2.msra.mxu0 0.0
        %1411 = vmatprep.subr.mxu0 0.0
        %1412 = vmatpush2.msra.mxu0 0.0
        %1413 = vmatprep.subr.mxu0 0.0
        %1414 = vmatpush2.msra.mxu0 0.0
        %1415 = vmatprep.subr.mxu0 0.0
        %1416 = vmatpush2.msra.mxu0 0.0
        %1417 = vmatprep.subr.mxu0 0.0
        %1418 = vmatpush2.msra.mxu0 0.0
        %1419 = vmatprep.subr.mxu0 0.0
        %1420 = vmatpush2.msra.mxu0 0.0
        %1421 = vmatprep.subr.mxu0 0.0
        %1422 = vmatpush2.msra.mxu0 0.0
        %1423 = vmatprep.subr.mxu0 0.0
        %1424 = vmatpush2.msra.mxu0 0.0
        %1425 = vmatprep.subr.mxu0 0.0
        %1426 = vmatpush2.msra.mxu0 0.0
        %1427 = vmatprep.subr.mxu0 0.0
        %1428 = vmatpush2.msra.mxu0 0.0
        %1429 = vmatprep.subr.mxu0 0.0
        %1430 = vmatpush2.msra.mxu0 0.0
        %1431 = vmatprep.subr.mxu0 0.0
        %1432 = vmatpush2.msra.mxu0 0.0
        %1433 = vmatprep.subr.mxu0 0.0
        %1434 = vmatpush2.msra.mxu0 0.0
        %1435 = vmatprep.subr.mxu0 0.0
        %1436 = vmatpush2.msra.mxu0 0.0
        %1437 = vmatprep.subr.mxu0 0.0
        %1438 = vmatpush2.msra.mxu0 0.0
        %1439 = vmatprep.subr.mxu0 0.0
        %1440 = vmatpush2.msra.mxu0 0.0
        %1441 = vmatprep.mubr.f32.mxu0 0.0
        %v1442 = vand.u32 %v428, 4294901760
        %v1443 = vsub.f32 %v428, %v1442
        %1444 = vmatmul.mubr.f32.gmra.mxu0 %v1443
        %v1445 = vpop.f32.mrf.mxu0
        %v1446 = vadd.f32 %v1342, %v1445
        %v1447 = vpop.f32.mrf.mxu0
        %1448 = vdwg.mxu0
        %1449 = vmatprep.subr.mxu0 0.0
        %v1450 = vand.u32 %v445, 4294901760
        %1451 = vmatpush1.msra.mxu0 %v1450
        %1452 = vmatprep.subr.mxu0 0.0
        %v1453 = vand.u32 %v444, 4294901760
        %1454 = vmatpush1.msra.mxu0 %v1453
        %1455 = vmatprep.subr.mxu0 0.0
        %v1456 = vand.u32 %v443, 4294901760
        %1457 = vmatpush1.msra.mxu0 %v1456
        %1458 = vmatprep.subr.mxu0 0.0
        %v1459 = vand.u32 %v442, 4294901760
        %1460 = vmatpush1.msra.mxu0 %v1459
        %1461 = vmatprep.subr.mxu0 0.0
        %v1462 = vand.u32 %v441, 4294901760
        %1463 = vmatpush1.msra.mxu0 %v1462
        %1464 = vmatprep.subr.mxu0 0.0
        %v1465 = vand.u32 %v440, 4294901760
        %1466 = vmatpush1.msra.mxu0 %v1465
        %1467 = vmatprep.subr.mxu0 0.0
        %v1468 = vand.u32 %v439, 4294901760
        %1469 = vmatpush1.msra.mxu0 %v1468
        %1470 = vmatprep.subr.mxu0 0.0
        %v1471 = vand.u32 %v438, 4294901760
        %1472 = vmatpush1.msra.mxu0 %v1471
        %1473 = vmatprep.subr.mxu0 0.0
        %v1474 = vand.u32 %v437, 4294901760
        %1475 = vmatpush1.msra.mxu0 %v1474
        %1476 = vmatprep.subr.mxu0 0.0
        %v1477 = vand.u32 %v436, 4294901760
        %1478 = vmatpush1.msra.mxu0 %v1477
        %1479 = vmatprep.subr.mxu0 0.0
        %v1480 = vand.u32 %v435, 4294901760
        %1481 = vmatpush1.msra.mxu0 %v1480
        %1482 = vmatprep.subr.mxu0 0.0
        %v1483 = vand.u32 %v434, 4294901760
        %1484 = vmatpush1.msra.mxu0 %v1483
        %1485 = vmatprep.subr.mxu0 0.0
        %v1486 = vand.u32 %v433, 4294901760
        %1487 = vmatpush1.msra.mxu0 %v1486
        %1488 = vmatprep.subr.mxu0 0.0
        %v1489 = vand.u32 %v432, 4294901760
        %1490 = vmatpush1.msra.mxu0 %v1489
        %1491 = vmatprep.subr.mxu0 0.0
        %v1492 = vand.u32 %v431, 4294901760
        %1493 = vmatpush1.msra.mxu0 %v1492
        %1494 = vmatprep.subr.mxu0 0.0
        %v1495 = vand.u32 %v430, 4294901760
        %1496 = vmatpush1.msra.mxu0 %v1495
        %1497 = vmatprep.subr.mxu0 0.0
        %1498 = vmatpush2.msra.mxu0 0.0
        %1499 = vmatprep.subr.mxu0 0.0
        %1500 = vmatpush2.msra.mxu0 0.0
        %1501 = vmatprep.subr.mxu0 0.0
        %1502 = vmatpush2.msra.mxu0 0.0
        %1503 = vmatprep.subr.mxu0 0.0
        %1504 = vmatpush2.msra.mxu0 0.0
        %1505 = vmatprep.subr.mxu0 0.0
        %1506 = vmatpush2.msra.mxu0 0.0
        %1507 = vmatprep.subr.mxu0 0.0
        %1508 = vmatpush2.msra.mxu0 0.0
        %1509 = vmatprep.subr.mxu0 0.0
        %1510 = vmatpush2.msra.mxu0 0.0
        %1511 = vmatprep.subr.mxu0 0.0
        %1512 = vmatpush2.msra.mxu0 0.0
        %1513 = vmatprep.subr.mxu0 0.0
        %1514 = vmatpush2.msra.mxu0 0.0
        %1515 = vmatprep.subr.mxu0 0.0
        %1516 = vmatpush2.msra.mxu0 0.0
        %1517 = vmatprep.subr.mxu0 0.0
        %1518 = vmatpush2.msra.mxu0 0.0
        %1519 = vmatprep.subr.mxu0 0.0
        %1520 = vmatpush2.msra.mxu0 0.0
        %1521 = vmatprep.subr.mxu0 0.0
        %1522 = vmatpush2.msra.mxu0 0.0
        %1523 = vmatprep.subr.mxu0 0.0
        %1524 = vmatpush2.msra.mxu0 0.0
        %1525 = vmatprep.subr.mxu0 0.0
        %1526 = vmatpush2.msra.mxu0 0.0
        %1527 = vmatprep.subr.mxu0 0.0
        %1528 = vmatpush2.msra.mxu0 0.0
        %1529 = vmatprep.mubr.f32.mxu0 0.0
        %v1530 = vand.u32 %v428, 4294901760
        %v1531 = vsub.f32 %v428, %v1530
        %v1532 = vand.u32 %v1531, 4294901760
        %1533 = vmatmul.mubr.f32.gmra.mxu0 %v1532
        %v1534 = vpop.f32.mrf.mxu0
        %v1535 = vadd.f32 %v1446, %v1534
        %v1536 = vpop.f32.mrf.mxu0
        %1537 = vdwg.mxu0
        %1538 = vmatprep.subr.mxu0 0.0
        %v1539 = vand.u32 %v445, 4294901760
        %v1540 = vsub.f32 %v445, %v1539
        %v1541 = vand.u32 %v1540, 4294901760
        %1542 = vmatpush1.msra.mxu0 %v1541
        %1543 = vmatprep.subr.mxu0 0.0
        %v1544 = vand.u32 %v444, 4294901760
        %v1545 = vsub.f32 %v444, %v1544
        %v1546 = vand.u32 %v1545, 4294901760
        %1547 = vmatpush1.msra.mxu0 %v1546
        %1548 = vmatprep.subr.mxu0 0.0
        %v1549 = vand.u32 %v443, 4294901760
        %v1550 = vsub.f32 %v443, %v1549
        %v1551 = vand.u32 %v1550, 4294901760
        %1552 = vmatpush1.msra.mxu0 %v1551
        %1553 = vmatprep.subr.mxu0 0.0
        %v1554 = vand.u32 %v442, 4294901760
        %v1555 = vsub.f32 %v442, %v1554
        %v1556 = vand.u32 %v1555, 4294901760
        %1557 = vmatpush1.msra.mxu0 %v1556
        %1558 = vmatprep.subr.mxu0 0.0
        %v1559 = vand.u32 %v441, 4294901760
        %v1560 = vsub.f32 %v441, %v1559
        %v1561 = vand.u32 %v1560, 4294901760
        %1562 = vmatpush1.msra.mxu0 %v1561
        %1563 = vmatprep.subr.mxu0 0.0
        %v1564 = vand.u32 %v440, 4294901760
        %v1565 = vsub.f32 %v440, %v1564
        %v1566 = vand.u32 %v1565, 4294901760
        %1567 = vmatpush1.msra.mxu0 %v1566
        %1568 = vmatprep.subr.mxu0 0.0
        %v1569 = vand.u32 %v439, 4294901760
        %v1570 = vsub.f32 %v439, %v1569
        %v1571 = vand.u32 %v1570, 4294901760
        %1572 = vmatpush1.msra.mxu0 %v1571
        %1573 = vmatprep.subr.mxu0 0.0
        %v1574 = vand.u32 %v438, 4294901760
        %v1575 = vsub.f32 %v438, %v1574
        %v1576 = vand.u32 %v1575, 4294901760
        %1577 = vmatpush1.msra.mxu0 %v1576
        %1578 = vmatprep.subr.mxu0 0.0
        %v1579 = vand.u32 %v437, 4294901760
        %v1580 = vsub.f32 %v437, %v1579
        %v1581 = vand.u32 %v1580, 4294901760
        %1582 = vmatpush1.msra.mxu0 %v1581
        %1583 = vmatprep.subr.mxu0 0.0
        %v1584 = vand.u32 %v436, 4294901760
        %v1585 = vsub.f32 %v436, %v1584
        %v1586 = vand.u32 %v1585, 4294901760
        %1587 = vmatpush1.msra.mxu0 %v1586
        %1588 = vmatprep.subr.mxu0 0.0
        %v1589 = vand.u32 %v435, 4294901760
        %v1590 = vsub.f32 %v435, %v1589
        %v1591 = vand.u32 %v1590, 4294901760
        %1592 = vmatpush1.msra.mxu0 %v1591
        %1593 = vmatprep.subr.mxu0 0.0
        %v1594 = vand.u32 %v434, 4294901760
        %v1595 = vsub.f32 %v434, %v1594
        %v1596 = vand.u32 %v1595, 4294901760
        %1597 = vmatpush1.msra.mxu0 %v1596
        %1598 = vmatprep.subr.mxu0 0.0
        %v1599 = vand.u32 %v433, 4294901760
        %v1600 = vsub.f32 %v433, %v1599
        %v1601 = vand.u32 %v1600, 4294901760
        %1602 = vmatpush1.msra.mxu0 %v1601
        %1603 = vmatprep.subr.mxu0 0.0
        %v1604 = vand.u32 %v432, 4294901760
        %v1605 = vsub.f32 %v432, %v1604
        %v1606 = vand.u32 %v1605, 4294901760
        %1607 = vmatpush1.msra.mxu0 %v1606
        %1608 = vmatprep.subr.mxu0 0.0
        %v1609 = vand.u32 %v431, 4294901760
        %v1610 = vsub.f32 %v431, %v1609
        %v1611 = vand.u32 %v1610, 4294901760
        %1612 = vmatpush1.msra.mxu0 %v1611
        %1613 = vmatprep.subr.mxu0 0.0
        %v1614 = vand.u32 %v430, 4294901760
        %v1615 = vsub.f32 %v430, %v1614
        %v1616 = vand.u32 %v1615, 4294901760
        %1617 = vmatpush1.msra.mxu0 %v1616
        %1618 = vmatprep.subr.mxu0 0.0
        %1619 = vmatpush2.msra.mxu0 0.0
        %1620 = vmatprep.subr.mxu0 0.0
        %1621 = vmatpush2.msra.mxu0 0.0
        %1622 = vmatprep.subr.mxu0 0.0
        %1623 = vmatpush2.msra.mxu0 0.0
        %1624 = vmatprep.subr.mxu0 0.0
        %1625 = vmatpush2.msra.mxu0 0.0
        %1626 = vmatprep.subr.mxu0 0.0
        %1627 = vmatpush2.msra.mxu0 0.0
        %1628 = vmatprep.subr.mxu0 0.0
        %1629 = vmatpush2.msra.mxu0 0.0
        %1630 = vmatprep.subr.mxu0 0.0
        %1631 = vmatpush2.msra.mxu0 0.0
        %1632 = vmatprep.subr.mxu0 0.0
        %1633 = vmatpush2.msra.mxu0 0.0
        %1634 = vmatprep.subr.mxu0 0.0
        %1635 = vmatpush2.msra.mxu0 0.0
        %1636 = vmatprep.subr.mxu0 0.0
        %1637 = vmatpush2.msra.mxu0 0.0
        %1638 = vmatprep.subr.mxu0 0.0
        %1639 = vmatpush2.msra.mxu0 0.0
        %1640 = vmatprep.subr.mxu0 0.0
        %1641 = vmatpush2.msra.mxu0 0.0
        %1642 = vmatprep.subr.mxu0 0.0
        %1643 = vmatpush2.msra.mxu0 0.0
        %1644 = vmatprep.subr.mxu0 0.0
        %1645 = vmatpush2.msra.mxu0 0.0
        %1646 = vmatprep.subr.mxu0 0.0
        %1647 = vmatpush2.msra.mxu0 0.0
        %1648 = vmatprep.subr.mxu0 0.0
        %1649 = vmatpush2.msra.mxu0 0.0
        %1650 = vmatprep.mubr.f32.mxu0 0.0
        %v1651 = vand.u32 %v428, 4294901760
        %1652 = vmatmul.mubr.f32.gmra.mxu0 %v1651
        %v1653 = vpop.f32.mrf.mxu0
        %v1654 = vadd.f32 %v1535, %v1653
        %v1655 = vpop.f32.mrf.mxu0
        %1656 = vdwg.mxu0
        %1657 = vmatprep.subr.mxu0 0.0
        %v1658 = vand.u32 %v445, 4294901760
        %1659 = vmatpush1.msra.mxu0 %v1658
        %1660 = vmatprep.subr.mxu0 0.0
        %v1661 = vand.u32 %v444, 4294901760
        %1662 = vmatpush1.msra.mxu0 %v1661
        %1663 = vmatprep.subr.mxu0 0.0
        %v1664 = vand.u32 %v443, 4294901760
        %1665 = vmatpush1.msra.mxu0 %v1664
        %1666 = vmatprep.subr.mxu0 0.0
        %v1667 = vand.u32 %v442, 4294901760
        %1668 = vmatpush1.msra.mxu0 %v1667
        %1669 = vmatprep.subr.mxu0 0.0
        %v1670 = vand.u32 %v441, 4294901760
        %1671 = vmatpush1.msra.mxu0 %v1670
        %1672 = vmatprep.subr.mxu0 0.0
        %v1673 = vand.u32 %v440, 4294901760
        %1674 = vmatpush1.msra.mxu0 %v1673
        %1675 = vmatprep.subr.mxu0 0.0
        %v1676 = vand.u32 %v439, 4294901760
        %1677 = vmatpush1.msra.mxu0 %v1676
        %1678 = vmatprep.subr.mxu0 0.0
        %v1679 = vand.u32 %v438, 4294901760
        %1680 = vmatpush1.msra.mxu0 %v1679
        %1681 = vmatprep.subr.mxu0 0.0
        %v1682 = vand.u32 %v437, 4294901760
        %1683 = vmatpush1.msra.mxu0 %v1682
        %1684 = vmatprep.subr.mxu0 0.0
        %v1685 = vand.u32 %v436, 4294901760
        %1686 = vmatpush1.msra.mxu0 %v1685
        %1687 = vmatprep.subr.mxu0 0.0
        %v1688 = vand.u32 %v435, 4294901760
        %1689 = vmatpush1.msra.mxu0 %v1688
        %1690 = vmatprep.subr.mxu0 0.0
        %v1691 = vand.u32 %v434, 4294901760
        %1692 = vmatpush1.msra.mxu0 %v1691
        %1693 = vmatprep.subr.mxu0 0.0
        %v1694 = vand.u32 %v433, 4294901760
        %1695 = vmatpush1.msra.mxu0 %v1694
        %1696 = vmatprep.subr.mxu0 0.0
        %v1697 = vand.u32 %v432, 4294901760
        %1698 = vmatpush1.msra.mxu0 %v1697
        %1699 = vmatprep.subr.mxu0 0.0
        %v1700 = vand.u32 %v431, 4294901760
        %1701 = vmatpush1.msra.mxu0 %v1700
        %1702 = vmatprep.subr.mxu0 0.0
        %v1703 = vand.u32 %v430, 4294901760
        %1704 = vmatpush1.msra.mxu0 %v1703
        %1705 = vmatprep.subr.mxu0 0.0
        %1706 = vmatpush2.msra.mxu0 0.0
        %1707 = vmatprep.subr.mxu0 0.0
        %1708 = vmatpush2.msra.mxu0 0.0
        %1709 = vmatprep.subr.mxu0 0.0
        %1710 = vmatpush2.msra.mxu0 0.0
        %1711 = vmatprep.subr.mxu0 0.0
        %1712 = vmatpush2.msra.mxu0 0.0
        %1713 = vmatprep.subr.mxu0 0.0
        %1714 = vmatpush2.msra.mxu0 0.0
        %1715 = vmatprep.subr.mxu0 0.0
        %1716 = vmatpush2.msra.mxu0 0.0
        %1717 = vmatprep.subr.mxu0 0.0
        %1718 = vmatpush2.msra.mxu0 0.0
        %1719 = vmatprep.subr.mxu0 0.0
        %1720 = vmatpush2.msra.mxu0 0.0
        %1721 = vmatprep.subr.mxu0 0.0
        %1722 = vmatpush2.msra.mxu0 0.0
        %1723 = vmatprep.subr.mxu0 0.0
        %1724 = vmatpush2.msra.mxu0 0.0
        %1725 = vmatprep.subr.mxu0 0.0
        %1726 = vmatpush2.msra.mxu0 0.0
        %1727 = vmatprep.subr.mxu0 0.0
        %1728 = vmatpush2.msra.mxu0 0.0
        %1729 = vmatprep.subr.mxu0 0.0
        %1730 = vmatpush2.msra.mxu0 0.0
        %1731 = vmatprep.subr.mxu0 0.0
        %1732 = vmatpush2.msra.mxu0 0.0
        %1733 = vmatprep.subr.mxu0 0.0
        %1734 = vmatpush2.msra.mxu0 0.0
        %1735 = vmatprep.subr.mxu0 0.0
        %1736 = vmatpush2.msra.mxu0 0.0
        %1737 = vmatprep.mubr.f32.mxu0 0.0
        %v1738 = vand.u32 %v428, 4294901760
        %1739 = vmatmul.mubr.f32.gmra.mxu0 %v1738
        %v1740 = vpop.f32.mrf.mxu0
        %v1741 = vadd.f32 %v1654, %v1740
        %v1742 = vpop.f32.mrf.mxu0
        %1743 = vdwg.mxu0
        %v1744 = vld [vmem:[%s4] sm:$0x1]
        %v1746 = vlaneseq
        %v1747 = vshrl.u32 %v1746, 7
        %v1748 = vsub.s32 0, %v1747
        %v1749 = vrot.slane %v1744, %v1748
        %v1751 = vadd.f32 %v1741, %v1749
        %v1752 = vtanh.pop %v1751
        %1753 = vst [vmem:[#allocation14] sm:$0xff] %v1752
        %s1754 = scalar_lea.vmem [#allocation14], 8
        %v1755 = vld [vmem:[%s1754] sm:$0xff]
        %v1756 = vld [vmem:[#allocation10] sm:$0xff]
        %v1757 = vld [vmem:[#allocation10 + $0x8] sm:$0xff]
        %v1758 = vld [vmem:[#allocation10 + $0x10] sm:$0xff]
        %v1759 = vld [vmem:[#allocation10 + $0x18] sm:$0xff]
        %v1760 = vld [vmem:[#allocation10 + $0x20] sm:$0xff]
        %v1761 = vld [vmem:[#allocation10 + $0x28] sm:$0xff]
        %v1762 = vld [vmem:[#allocation10 + $0x30] sm:$0xff]
        %v1763 = vld [vmem:[#allocation10 + $0x38] sm:$0xff]
        %v1764 = vld [vmem:[#allocation10 + $0x40] sm:$0xff]
        %v1765 = vld [vmem:[#allocation10 + $0x48] sm:$0xff]
        %v1766 = vld [vmem:[#allocation10 + $0x50] sm:$0xff]
        %v1767 = vld [vmem:[#allocation10 + $0x58] sm:$0xff]
        %v1768 = vld [vmem:[#allocation10 + $0x60] sm:$0xff]
        %v1769 = vld [vmem:[#allocation10 + $0x68] sm:$0xff]
        %v1770 = vld [vmem:[#allocation10 + $0x70] sm:$0xff]
        %v1771 = vld [vmem:[#allocation10 + $0x78] sm:$0xff]
        %v1772 = vld [vmem:[#allocation11] sm:$0xff]
        %v1773 = vld [vmem:[#allocation11 + $0x8] sm:$0xff]
        %v1774 = vld [vmem:[#allocation11 + $0x10] sm:$0xff]
        %v1775 = vld [vmem:[#allocation11 + $0x18] sm:$0xff]
        %v1776 = vld [vmem:[#allocation11 + $0x20] sm:$0xff]
        %v1777 = vld [vmem:[#allocation11 + $0x28] sm:$0xff]
        %v1778 = vld [vmem:[#allocation11 + $0x30] sm:$0xff]
        %v1779 = vld [vmem:[#allocation11 + $0x38] sm:$0xff]
        %v1780 = vld [vmem:[#allocation11 + $0x40] sm:$0xff]
        %v1781 = vld [vmem:[#allocation11 + $0x48] sm:$0xff]
        %v1782 = vld [vmem:[#allocation11 + $0x50] sm:$0xff]
        %v1783 = vld [vmem:[#allocation11 + $0x58] sm:$0xff]
        %v1784 = vld [vmem:[#allocation11 + $0x60] sm:$0xff]
        %v1785 = vld [vmem:[#allocation11 + $0x68] sm:$0xff]
        %v1786 = vld [vmem:[#allocation11 + $0x70] sm:$0xff]
        %v1787 = vld [vmem:[#allocation11 + $0x78] sm:$0xff]
        %1788 = vmatprep.subr.mxu0 0.0
        %v1789 = vand.u32 %v1787, 4294901760
        %1790 = vmatpush1.msra.mxu0 %v1789
        %1791 = vmatprep.subr.mxu0 0.0
        %v1792 = vand.u32 %v1786, 4294901760
        %1793 = vmatpush1.msra.mxu0 %v1792
        %1794 = vmatprep.subr.mxu0 0.0
        %v1795 = vand.u32 %v1785, 4294901760
        %1796 = vmatpush1.msra.mxu0 %v1795
        %1797 = vmatprep.subr.mxu0 0.0
        %v1798 = vand.u32 %v1784, 4294901760
        %1799 = vmatpush1.msra.mxu0 %v1798
        %1800 = vmatprep.subr.mxu0 0.0
        %v1801 = vand.u32 %v1783, 4294901760
        %1802 = vmatpush1.msra.mxu0 %v1801
        %1803 = vmatprep.subr.mxu0 0.0
        %v1804 = vand.u32 %v1782, 4294901760
        %1805 = vmatpush1.msra.mxu0 %v1804
        %1806 = vmatprep.subr.mxu0 0.0
        %v1807 = vand.u32 %v1781, 4294901760
        %1808 = vmatpush1.msra.mxu0 %v1807
        %1809 = vmatprep.subr.mxu0 0.0
        %v1810 = vand.u32 %v1780, 4294901760
        %1811 = vmatpush1.msra.mxu0 %v1810
        %1812 = vmatprep.subr.mxu0 0.0
        %v1813 = vand.u32 %v1779, 4294901760
        %1814 = vmatpush1.msra.mxu0 %v1813
        %1815 = vmatprep.subr.mxu0 0.0
        %v1816 = vand.u32 %v1778, 4294901760
        %1817 = vmatpush1.msra.mxu0 %v1816
        %1818 = vmatprep.subr.mxu0 0.0
        %v1819 = vand.u32 %v1777, 4294901760
        %1820 = vmatpush1.msra.mxu0 %v1819
        %1821 = vmatprep.subr.mxu0 0.0
        %v1822 = vand.u32 %v1776, 4294901760
        %1823 = vmatpush1.msra.mxu0 %v1822
        %1824 = vmatprep.subr.mxu0 0.0
        %v1825 = vand.u32 %v1775, 4294901760
        %1826 = vmatpush1.msra.mxu0 %v1825
        %1827 = vmatprep.subr.mxu0 0.0
        %v1828 = vand.u32 %v1774, 4294901760
        %1829 = vmatpush1.msra.mxu0 %v1828
        %1830 = vmatprep.subr.mxu0 0.0
        %v1831 = vand.u32 %v1773, 4294901760
        %1832 = vmatpush1.msra.mxu0 %v1831
        %1833 = vmatprep.subr.mxu0 0.0
        %v1834 = vand.u32 %v1772, 4294901760
        %1835 = vmatpush1.msra.mxu0 %v1834
        %1836 = vmatprep.subr.mxu0 0.0
        %1837 = vmatpush2.msra.mxu0 0.0
        %1838 = vmatprep.subr.mxu0 0.0
        %1839 = vmatpush2.msra.mxu0 0.0
        %1840 = vmatprep.subr.mxu0 0.0
        %1841 = vmatpush2.msra.mxu0 0.0
        %1842 = vmatprep.subr.mxu0 0.0
        %1843 = vmatpush2.msra.mxu0 0.0
        %1844 = vmatprep.subr.mxu0 0.0
        %1845 = vmatpush2.msra.mxu0 0.0
        %1846 = vmatprep.subr.mxu0 0.0
        %1847 = vmatpush2.msra.mxu0 0.0
        %1848 = vmatprep.subr.mxu0 0.0
        %1849 = vmatpush2.msra.mxu0 0.0
        %1850 = vmatprep.subr.mxu0 0.0
        %1851 = vmatpush2.msra.mxu0 0.0
        %1852 = vmatprep.subr.mxu0 0.0
        %1853 = vmatpush2.msra.mxu0 0.0
        %1854 = vmatprep.subr.mxu0 0.0
        %1855 = vmatpush2.msra.mxu0 0.0
        %1856 = vmatprep.subr.mxu0 0.0
        %1857 = vmatpush2.msra.mxu0 0.0
        %1858 = vmatprep.subr.mxu0 0.0
        %1859 = vmatpush2.msra.mxu0 0.0
        %1860 = vmatprep.subr.mxu0 0.0
        %1861 = vmatpush2.msra.mxu0 0.0
        %1862 = vmatprep.subr.mxu0 0.0
        %1863 = vmatpush2.msra.mxu0 0.0
        %1864 = vmatprep.subr.mxu0 0.0
        %1865 = vmatpush2.msra.mxu0 0.0
        %1866 = vmatprep.subr.mxu0 0.0
        %1867 = vmatpush2.msra.mxu0 0.0
        %1868 = vmatprep.mubr.f32.mxu0 0.0
        %v1869 = vand.u32 %v1755, 4294901760
        %v1870 = vsub.f32 %v1755, %v1869
        %v1871 = vand.u32 %v1870, 4294901760
        %v1872 = vsub.f32 %v1870, %v1871
        %v1873 = vand.u32 %v1872, 4294901760
        %1874 = vmatmul.mubr.f32.gmra.mxu0 %v1873
        %v1875 = vpop.f32.mrf.mxu0
        %v1876 = vadd.f32 0.0, %v1875
        %v1877 = vpop.f32.mrf.mxu0
        %1878 = vdwg.mxu0
        %1879 = vmatprep.subr.mxu0 0.0
        %v1880 = vand.u32 %v1787, 4294901760
        %v1881 = vsub.f32 %v1787, %v1880
        %v1882 = vand.u32 %v1881, 4294901760
        %v1883 = vsub.f32 %v1881, %v1882
        %v1884 = vand.u32 %v1883, 4294901760
        %1885 = vmatpush1.msra.mxu0 %v1884
        %1886 = vmatprep.subr.mxu0 0.0
        %v1887 = vand.u32 %v1786, 4294901760
        %v1888 = vsub.f32 %v1786, %v1887
        %v1889 = vand.u32 %v1888, 4294901760
        %v1890 = vsub.f32 %v1888, %v1889
        %v1891 = vand.u32 %v1890, 4294901760
        %1892 = vmatpush1.msra.mxu0 %v1891
        %1893 = vmatprep.subr.mxu0 0.0
        %v1894 = vand.u32 %v1785, 4294901760
        %v1895 = vsub.f32 %v1785, %v1894
        %v1896 = vand.u32 %v1895, 4294901760
        %v1897 = vsub.f32 %v1895, %v1896
        %v1898 = vand.u32 %v1897, 4294901760
        %1899 = vmatpush1.msra.mxu0 %v1898
        %1900 = vmatprep.subr.mxu0 0.0
        %v1901 = vand.u32 %v1784, 4294901760
        %v1902 = vsub.f32 %v1784, %v1901
        %v1903 = vand.u32 %v1902, 4294901760
        %v1904 = vsub.f32 %v1902, %v1903
        %v1905 = vand.u32 %v1904, 4294901760
        %1906 = vmatpush1.msra.mxu0 %v1905
        %1907 = vmatprep.subr.mxu0 0.0
        %v1908 = vand.u32 %v1783, 4294901760
        %v1909 = vsub.f32 %v1783, %v1908
        %v1910 = vand.u32 %v1909, 4294901760
        %v1911 = vsub.f32 %v1909, %v1910
        %v1912 = vand.u32 %v1911, 4294901760
        %1913 = vmatpush1.msra.mxu0 %v1912
        %1914 = vmatprep.subr.mxu0 0.0
        %v1915 = vand.u32 %v1782, 4294901760
        %v1916 = vsub.f32 %v1782, %v1915
        %v1917 = vand.u32 %v1916, 4294901760
        %v1918 = vsub.f32 %v1916, %v1917
        %v1919 = vand.u32 %v1918, 4294901760
        %1920 = vmatpush1.msra.mxu0 %v1919
        %1921 = vmatprep.subr.mxu0 0.0
        %v1922 = vand.u32 %v1781, 4294901760
        %v1923 = vsub.f32 %v1781, %v1922
        %v1924 = vand.u32 %v1923, 4294901760
        %v1925 = vsub.f32 %v1923, %v1924
        %v1926 = vand.u32 %v1925, 4294901760
        %1927 = vmatpush1.msra.mxu0 %v1926
        %1928 = vmatprep.subr.mxu0 0.0
        %v1929 = vand.u32 %v1780, 4294901760
        %v1930 = vsub.f32 %v1780, %v1929
        %v1931 = vand.u32 %v1930, 4294901760
        %v1932 = vsub.f32 %v1930, %v1931
        %v1933 = vand.u32 %v1932, 4294901760
        %1934 = vmatpush1.msra.mxu0 %v1933
        %1935 = vmatprep.subr.mxu0 0.0
        %v1936 = vand.u32 %v1779, 4294901760
        %v1937 = vsub.f32 %v1779, %v1936
        %v1938 = vand.u32 %v1937, 4294901760
        %v1939 = vsub.f32 %v1937, %v1938
        %v1940 = vand.u32 %v1939, 4294901760
        %1941 = vmatpush1.msra.mxu0 %v1940
        %1942 = vmatprep.subr.mxu0 0.0
        %v1943 = vand.u32 %v1778, 4294901760
        %v1944 = vsub.f32 %v1778, %v1943
        %v1945 = vand.u32 %v1944, 4294901760
        %v1946 = vsub.f32 %v1944, %v1945
        %v1947 = vand.u32 %v1946, 4294901760
        %1948 = vmatpush1.msra.mxu0 %v1947
        %1949 = vmatprep.subr.mxu0 0.0
        %v1950 = vand.u32 %v1777, 4294901760
        %v1951 = vsub.f32 %v1777, %v1950
        %v1952 = vand.u32 %v1951, 4294901760
        %v1953 = vsub.f32 %v1951, %v1952
        %v1954 = vand.u32 %v1953, 4294901760
        %1955 = vmatpush1.msra.mxu0 %v1954
        %1956 = vmatprep.subr.mxu0 0.0
        %v1957 = vand.u32 %v1776, 4294901760
        %v1958 = vsub.f32 %v1776, %v1957
        %v1959 = vand.u32 %v1958, 4294901760
        %v1960 = vsub.f32 %v1958, %v1959
        %v1961 = vand.u32 %v1960, 4294901760
        %1962 = vmatpush1.msra.mxu0 %v1961
        %1963 = vmatprep.subr.mxu0 0.0
        %v1964 = vand.u32 %v1775, 4294901760
        %v1965 = vsub.f32 %v1775, %v1964
        %v1966 = vand.u32 %v1965, 4294901760
        %v1967 = vsub.f32 %v1965, %v1966
        %v1968 = vand.u32 %v1967, 4294901760
        %1969 = vmatpush1.msra.mxu0 %v1968
        %1970 = vmatprep.subr.mxu0 0.0
        %v1971 = vand.u32 %v1774, 4294901760
        %v1972 = vsub.f32 %v1774, %v1971
        %v1973 = vand.u32 %v1972, 4294901760
        %v1974 = vsub.f32 %v1972, %v1973
        %v1975 = vand.u32 %v1974, 4294901760
        %1976 = vmatpush1.msra.mxu0 %v1975
        %1977 = vmatprep.subr.mxu0 0.0
        %v1978 = vand.u32 %v1773, 4294901760
        %v1979 = vsub.f32 %v1773, %v1978
        %v1980 = vand.u32 %v1979, 4294901760
        %v1981 = vsub.f32 %v1979, %v1980
        %v1982 = vand.u32 %v1981, 4294901760
        %1983 = vmatpush1.msra.mxu0 %v1982
        %1984 = vmatprep.subr.mxu0 0.0
        %v1985 = vand.u32 %v1772, 4294901760
        %v1986 = vsub.f32 %v1772, %v1985
        %v1987 = vand.u32 %v1986, 4294901760
        %v1988 = vsub.f32 %v1986, %v1987
        %v1989 = vand.u32 %v1988, 4294901760
        %1990 = vmatpush1.msra.mxu0 %v1989
        %1991 = vmatprep.subr.mxu0 0.0
        %1992 = vmatpush2.msra.mxu0 0.0
        %1993 = vmatprep.subr.mxu0 0.0
        %1994 = vmatpush2.msra.mxu0 0.0
        %1995 = vmatprep.subr.mxu0 0.0
        %1996 = vmatpush2.msra.mxu0 0.0
        %1997 = vmatprep.subr.mxu0 0.0
        %1998 = vmatpush2.msra.mxu0 0.0
        %1999 = vmatprep.subr.mxu0 0.0
        %2000 = vmatpush2.msra.mxu0 0.0
        %2001 = vmatprep.subr.mxu0 0.0
        %2002 = vmatpush2.msra.mxu0 0.0
        %2003 = vmatprep.subr.mxu0 0.0
        %2004 = vmatpush2.msra.mxu0 0.0
        %2005 = vmatprep.subr.mxu0 0.0
        %2006 = vmatpush2.msra.mxu0 0.0
        %2007 = vmatprep.subr.mxu0 0.0
        %2008 = vmatpush2.msra.mxu0 0.0
        %2009 = vmatprep.subr.mxu0 0.0
        %2010 = vmatpush2.msra.mxu0 0.0
        %2011 = vmatprep.subr.mxu0 0.0
        %2012 = vmatpush2.msra.mxu0 0.0
        %2013 = vmatprep.subr.mxu0 0.0
        %2014 = vmatpush2.msra.mxu0 0.0
        %2015 = vmatprep.subr.mxu0 0.0
        %2016 = vmatpush2.msra.mxu0 0.0
        %2017 = vmatprep.subr.mxu0 0.0
        %2018 = vmatpush2.msra.mxu0 0.0
        %2019 = vmatprep.subr.mxu0 0.0
        %2020 = vmatpush2.msra.mxu0 0.0
        %2021 = vmatprep.subr.mxu0 0.0
        %2022 = vmatpush2.msra.mxu0 0.0
        %2023 = vmatprep.mubr.f32.mxu0 0.0
        %v2024 = vand.u32 %v1755, 4294901760
        %2025 = vmatmul.mubr.f32.gmra.mxu0 %v2024
        %v2026 = vpop.f32.mrf.mxu0
        %v2027 = vadd.f32 %v1876, %v2026
        %v2028 = vpop.f32.mrf.mxu0
        %2029 = vdwg.mxu0
        %2030 = vmatprep.subr.mxu0 0.0
        %v2031 = vand.u32 %v1787, 4294901760
        %v2032 = vsub.f32 %v1787, %v2031
        %2033 = vmatpush1.msra.mxu0 %v2032
        %2034 = vmatprep.subr.mxu0 0.0
        %v2035 = vand.u32 %v1786, 4294901760
        %v2036 = vsub.f32 %v1786, %v2035
        %2037 = vmatpush1.msra.mxu0 %v2036
        %2038 = vmatprep.subr.mxu0 0.0
        %v2039 = vand.u32 %v1785, 4294901760
        %v2040 = vsub.f32 %v1785, %v2039
        %2041 = vmatpush1.msra.mxu0 %v2040
        %2042 = vmatprep.subr.mxu0 0.0
        %v2043 = vand.u32 %v1784, 4294901760
        %v2044 = vsub.f32 %v1784, %v2043
        %2045 = vmatpush1.msra.mxu0 %v2044
        %2046 = vmatprep.subr.mxu0 0.0
        %v2047 = vand.u32 %v1783, 4294901760
        %v2048 = vsub.f32 %v1783, %v2047
        %2049 = vmatpush1.msra.mxu0 %v2048
        %2050 = vmatprep.subr.mxu0 0.0
        %v2051 = vand.u32 %v1782, 4294901760
        %v2052 = vsub.f32 %v1782, %v2051
        %2053 = vmatpush1.msra.mxu0 %v2052
        %2054 = vmatprep.subr.mxu0 0.0
        %v2055 = vand.u32 %v1781, 4294901760
        %v2056 = vsub.f32 %v1781, %v2055
        %2057 = vmatpush1.msra.mxu0 %v2056
        %2058 = vmatprep.subr.mxu0 0.0
        %v2059 = vand.u32 %v1780, 4294901760
        %v2060 = vsub.f32 %v1780, %v2059
        %2061 = vmatpush1.msra.mxu0 %v2060
        %2062 = vmatprep.subr.mxu0 0.0
        %v2063 = vand.u32 %v1779, 4294901760
        %v2064 = vsub.f32 %v1779, %v2063
        %2065 = vmatpush1.msra.mxu0 %v2064
        %2066 = vmatprep.subr.mxu0 0.0
        %v2067 = vand.u32 %v1778, 4294901760
        %v2068 = vsub.f32 %v1778, %v2067
        %2069 = vmatpush1.msra.mxu0 %v2068
        %2070 = vmatprep.subr.mxu0 0.0
        %v2071 = vand.u32 %v1777, 4294901760
        %v2072 = vsub.f32 %v1777, %v2071
        %2073 = vmatpush1.msra.mxu0 %v2072
        %2074 = vmatprep.subr.mxu0 0.0
        %v2075 = vand.u32 %v1776, 4294901760
        %v2076 = vsub.f32 %v1776, %v2075
        %2077 = vmatpush1.msra.mxu0 %v2076
        %2078 = vmatprep.subr.mxu0 0.0
        %v2079 = vand.u32 %v1775, 4294901760
        %v2080 = vsub.f32 %v1775, %v2079
        %2081 = vmatpush1.msra.mxu0 %v2080
        %2082 = vmatprep.subr.mxu0 0.0
        %v2083 = vand.u32 %v1774, 4294901760
        %v2084 = vsub.f32 %v1774, %v2083
        %2085 = vmatpush1.msra.mxu0 %v2084
        %2086 = vmatprep.subr.mxu0 0.0
        %v2087 = vand.u32 %v1773, 4294901760
        %v2088 = vsub.f32 %v1773, %v2087
        %2089 = vmatpush1.msra.mxu0 %v2088
        %2090 = vmatprep.subr.mxu0 0.0
        %v2091 = vand.u32 %v1772, 4294901760
        %v2092 = vsub.f32 %v1772, %v2091
        %2093 = vmatpush1.msra.mxu0 %v2092
        %2094 = vmatprep.subr.mxu0 0.0
        %2095 = vmatpush2.msra.mxu0 0.0
        %2096 = vmatprep.subr.mxu0 0.0
        %2097 = vmatpush2.msra.mxu0 0.0
        %2098 = vmatprep.subr.mxu0 0.0
        %2099 = vmatpush2.msra.mxu0 0.0
        %2100 = vmatprep.subr.mxu0 0.0
        %2101 = vmatpush2.msra.mxu0 0.0
        %2102 = vmatprep.subr.mxu0 0.0
        %2103 = vmatpush2.msra.mxu0 0.0
        %2104 = vmatprep.subr.mxu0 0.0
        %2105 = vmatpush2.msra.mxu0 0.0
        %2106 = vmatprep.subr.mxu0 0.0
        %2107 = vmatpush2.msra.mxu0 0.0
        %2108 = vmatprep.subr.mxu0 0.0
        %2109 = vmatpush2.msra.mxu0 0.0
        %2110 = vmatprep.subr.mxu0 0.0
        %2111 = vmatpush2.msra.mxu0 0.0
        %2112 = vmatprep.subr.mxu0 0.0
        %2113 = vmatpush2.msra.mxu0 0.0
        %2114 = vmatprep.subr.mxu0 0.0
        %2115 = vmatpush2.msra.mxu0 0.0
        %2116 = vmatprep.subr.mxu0 0.0
        %2117 = vmatpush2.msra.mxu0 0.0
        %2118 = vmatprep.subr.mxu0 0.0
        %2119 = vmatpush2.msra.mxu0 0.0
        %2120 = vmatprep.subr.mxu0 0.0
        %2121 = vmatpush2.msra.mxu0 0.0
        %2122 = vmatprep.subr.mxu0 0.0
        %2123 = vmatpush2.msra.mxu0 0.0
        %2124 = vmatprep.subr.mxu0 0.0
        %2125 = vmatpush2.msra.mxu0 0.0
        %2126 = vmatprep.mubr.f32.mxu0 0.0
        %v2127 = vand.u32 %v1755, 4294901760
        %v2128 = vsub.f32 %v1755, %v2127
        %2129 = vmatmul.mubr.f32.gmra.mxu0 %v2128
        %v2130 = vpop.f32.mrf.mxu0
        %v2131 = vadd.f32 %v2027, %v2130
        %v2132 = vpop.f32.mrf.mxu0
        %2133 = vdwg.mxu0
        %2134 = vmatprep.subr.mxu0 0.0
        %v2135 = vand.u32 %v1787, 4294901760
        %2136 = vmatpush1.msra.mxu0 %v2135
        %2137 = vmatprep.subr.mxu0 0.0
        %v2138 = vand.u32 %v1786, 4294901760
        %2139 = vmatpush1.msra.mxu0 %v2138
        %2140 = vmatprep.subr.mxu0 0.0
        %v2141 = vand.u32 %v1785, 4294901760
        %2142 = vmatpush1.msra.mxu0 %v2141
        %2143 = vmatprep.subr.mxu0 0.0
        %v2144 = vand.u32 %v1784, 4294901760
        %2145 = vmatpush1.msra.mxu0 %v2144
        %2146 = vmatprep.subr.mxu0 0.0
        %v2147 = vand.u32 %v1783, 4294901760
        %2148 = vmatpush1.msra.mxu0 %v2147
        %2149 = vmatprep.subr.mxu0 0.0
        %v2150 = vand.u32 %v1782, 4294901760
        %2151 = vmatpush1.msra.mxu0 %v2150
        %2152 = vmatprep.subr.mxu0 0.0
        %v2153 = vand.u32 %v1781, 4294901760
        %2154 = vmatpush1.msra.mxu0 %v2153
        %2155 = vmatprep.subr.mxu0 0.0
        %v2156 = vand.u32 %v1780, 4294901760
        %2157 = vmatpush1.msra.mxu0 %v2156
        %2158 = vmatprep.subr.mxu0 0.0
        %v2159 = vand.u32 %v1779, 4294901760
        %2160 = vmatpush1.msra.mxu0 %v2159
        %2161 = vmatprep.subr.mxu0 0.0
        %v2162 = vand.u32 %v1778, 4294901760
        %2163 = vmatpush1.msra.mxu0 %v2162
        %2164 = vmatprep.subr.mxu0 0.0
        %v2165 = vand.u32 %v1777, 4294901760
        %2166 = vmatpush1.msra.mxu0 %v2165
        %2167 = vmatprep.subr.mxu0 0.0
        %v2168 = vand.u32 %v1776, 4294901760
        %2169 = vmatpush1.msra.mxu0 %v2168
        %2170 = vmatprep.subr.mxu0 0.0
        %v2171 = vand.u32 %v1775, 4294901760
        %2172 = vmatpush1.msra.mxu0 %v2171
        %2173 = vmatprep.subr.mxu0 0.0
        %v2174 = vand.u32 %v1774, 4294901760
        %2175 = vmatpush1.msra.mxu0 %v2174
        %2176 = vmatprep.subr.mxu0 0.0
        %v2177 = vand.u32 %v1773, 4294901760
        %2178 = vmatpush1.msra.mxu0 %v2177
        %2179 = vmatprep.subr.mxu0 0.0
        %v2180 = vand.u32 %v1772, 4294901760
        %2181 = vmatpush1.msra.mxu0 %v2180
        %2182 = vmatprep.subr.mxu0 0.0
        %2183 = vmatpush2.msra.mxu0 0.0
        %2184 = vmatprep.subr.mxu0 0.0
        %2185 = vmatpush2.msra.mxu0 0.0
        %2186 = vmatprep.subr.mxu0 0.0
        %2187 = vmatpush2.msra.mxu0 0.0
        %2188 = vmatprep.subr.mxu0 0.0
        %2189 = vmatpush2.msra.mxu0 0.0
        %2190 = vmatprep.subr.mxu0 0.0
        %2191 = vmatpush2.msra.mxu0 0.0
        %2192 = vmatprep.subr.mxu0 0.0
        %2193 = vmatpush2.msra.mxu0 0.0
        %2194 = vmatprep.subr.mxu0 0.0
        %2195 = vmatpush2.msra.mxu0 0.0
        %2196 = vmatprep.subr.mxu0 0.0
        %2197 = vmatpush2.msra.mxu0 0.0
        %2198 = vmatprep.subr.mxu0 0.0
        %2199 = vmatpush2.msra.mxu0 0.0
        %2200 = vmatprep.subr.mxu0 0.0
        %2201 = vmatpush2.msra.mxu0 0.0
        %2202 = vmatprep.subr.mxu0 0.0
        %2203 = vmatpush2.msra.mxu0 0.0
        %2204 = vmatprep.subr.mxu0 0.0
        %2205 = vmatpush2.msra.mxu0 0.0
        %2206 = vmatprep.subr.mxu0 0.0
        %2207 = vmatpush2.msra.mxu0 0.0
        %2208 = vmatprep.subr.mxu0 0.0
        %2209 = vmatpush2.msra.mxu0 0.0
        %2210 = vmatprep.subr.mxu0 0.0
        %2211 = vmatpush2.msra.mxu0 0.0
        %2212 = vmatprep.subr.mxu0 0.0
        %2213 = vmatpush2.msra.mxu0 0.0
        %2214 = vmatprep.mubr.f32.mxu0 0.0
        %v2215 = vand.u32 %v1755, 4294901760
        %v2216 = vsub.f32 %v1755, %v2215
        %v2217 = vand.u32 %v2216, 4294901760
        %2218 = vmatmul.mubr.f32.gmra.mxu0 %v2217
        %v2219 = vpop.f32.mrf.mxu0
        %v2220 = vadd.f32 %v2131, %v2219
        %v2221 = vpop.f32.mrf.mxu0
        %2222 = vdwg.mxu0
        %2223 = vmatprep.subr.mxu0 0.0
        %v2224 = vand.u32 %v1787, 4294901760
        %v2225 = vsub.f32 %v1787, %v2224
        %v2226 = vand.u32 %v2225, 4294901760
        %2227 = vmatpush1.msra.mxu0 %v2226
        %2228 = vmatprep.subr.mxu0 0.0
        %v2229 = vand.u32 %v1786, 4294901760
        %v2230 = vsub.f32 %v1786, %v2229
        %v2231 = vand.u32 %v2230, 4294901760
        %2232 = vmatpush1.msra.mxu0 %v2231
        %2233 = vmatprep.subr.mxu0 0.0
        %v2234 = vand.u32 %v1785, 4294901760
        %v2235 = vsub.f32 %v1785, %v2234
        %v2236 = vand.u32 %v2235, 4294901760
        %2237 = vmatpush1.msra.mxu0 %v2236
        %2238 = vmatprep.subr.mxu0 0.0
        %v2239 = vand.u32 %v1784, 4294901760
        %v2240 = vsub.f32 %v1784, %v2239
        %v2241 = vand.u32 %v2240, 4294901760
        %2242 = vmatpush1.msra.mxu0 %v2241
        %2243 = vmatprep.subr.mxu0 0.0
        %v2244 = vand.u32 %v1783, 4294901760
        %v2245 = vsub.f32 %v1783, %v2244
        %v2246 = vand.u32 %v2245, 4294901760
        %2247 = vmatpush1.msra.mxu0 %v2246
        %2248 = vmatprep.subr.mxu0 0.0
        %v2249 = vand.u32 %v1782, 4294901760
        %v2250 = vsub.f32 %v1782, %v2249
        %v2251 = vand.u32 %v2250, 4294901760
        %2252 = vmatpush1.msra.mxu0 %v2251
        %2253 = vmatprep.subr.mxu0 0.0
        %v2254 = vand.u32 %v1781, 4294901760
        %v2255 = vsub.f32 %v1781, %v2254
        %v2256 = vand.u32 %v2255, 4294901760
        %2257 = vmatpush1.msra.mxu0 %v2256
        %2258 = vmatprep.subr.mxu0 0.0
        %v2259 = vand.u32 %v1780, 4294901760
        %v2260 = vsub.f32 %v1780, %v2259
        %v2261 = vand.u32 %v2260, 4294901760
        %2262 = vmatpush1.msra.mxu0 %v2261
        %2263 = vmatprep.subr.mxu0 0.0
        %v2264 = vand.u32 %v1779, 4294901760
        %v2265 = vsub.f32 %v1779, %v2264
        %v2266 = vand.u32 %v2265, 4294901760
        %2267 = vmatpush1.msra.mxu0 %v2266
        %2268 = vmatprep.subr.mxu0 0.0
        %v2269 = vand.u32 %v1778, 4294901760
        %v2270 = vsub.f32 %v1778, %v2269
        %v2271 = vand.u32 %v2270, 4294901760
        %2272 = vmatpush1.msra.mxu0 %v2271
        %2273 = vmatprep.subr.mxu0 0.0
        %v2274 = vand.u32 %v1777, 4294901760
        %v2275 = vsub.f32 %v1777, %v2274
        %v2276 = vand.u32 %v2275, 4294901760
        %2277 = vmatpush1.msra.mxu0 %v2276
        %2278 = vmatprep.subr.mxu0 0.0
        %v2279 = vand.u32 %v1776, 4294901760
        %v2280 = vsub.f32 %v1776, %v2279
        %v2281 = vand.u32 %v2280, 4294901760
        %2282 = vmatpush1.msra.mxu0 %v2281
        %2283 = vmatprep.subr.mxu0 0.0
        %v2284 = vand.u32 %v1775, 4294901760
        %v2285 = vsub.f32 %v1775, %v2284
        %v2286 = vand.u32 %v2285, 4294901760
        %2287 = vmatpush1.msra.mxu0 %v2286
        %2288 = vmatprep.subr.mxu0 0.0
        %v2289 = vand.u32 %v1774, 4294901760
        %v2290 = vsub.f32 %v1774, %v2289
        %v2291 = vand.u32 %v2290, 4294901760
        %2292 = vmatpush1.msra.mxu0 %v2291
        %2293 = vmatprep.subr.mxu0 0.0
        %v2294 = vand.u32 %v1773, 4294901760
        %v2295 = vsub.f32 %v1773, %v2294
        %v2296 = vand.u32 %v2295, 4294901760
        %2297 = vmatpush1.msra.mxu0 %v2296
        %2298 = vmatprep.subr.mxu0 0.0
        %v2299 = vand.u32 %v1772, 4294901760
        %v2300 = vsub.f32 %v1772, %v2299
        %v2301 = vand.u32 %v2300, 4294901760
        %2302 = vmatpush1.msra.mxu0 %v2301
        %2303 = vmatprep.subr.mxu0 0.0
        %2304 = vmatpush2.msra.mxu0 0.0
        %2305 = vmatprep.subr.mxu0 0.0
        %2306 = vmatpush2.msra.mxu0 0.0
        %2307 = vmatprep.subr.mxu0 0.0
        %2308 = vmatpush2.msra.mxu0 0.0
        %2309 = vmatprep.subr.mxu0 0.0
        %2310 = vmatpush2.msra.mxu0 0.0
        %2311 = vmatprep.subr.mxu0 0.0
        %2312 = vmatpush2.msra.mxu0 0.0
        %2313 = vmatprep.subr.mxu0 0.0
        %2314 = vmatpush2.msra.mxu0 0.0
        %2315 = vmatprep.subr.mxu0 0.0
        %2316 = vmatpush2.msra.mxu0 0.0
        %2317 = vmatprep.subr.mxu0 0.0
        %2318 = vmatpush2.msra.mxu0 0.0
        %2319 = vmatprep.subr.mxu0 0.0
        %2320 = vmatpush2.msra.mxu0 0.0
        %2321 = vmatprep.subr.mxu0 0.0
        %2322 = vmatpush2.msra.mxu0 0.0
        %2323 = vmatprep.subr.mxu0 0.0
        %2324 = vmatpush2.msra.mxu0 0.0
        %2325 = vmatprep.subr.mxu0 0.0
        %2326 = vmatpush2.msra.mxu0 0.0
        %2327 = vmatprep.subr.mxu0 0.0
        %2328 = vmatpush2.msra.mxu0 0.0
        %2329 = vmatprep.subr.mxu0 0.0
        %2330 = vmatpush2.msra.mxu0 0.0
        %2331 = vmatprep.subr.mxu0 0.0
        %2332 = vmatpush2.msra.mxu0 0.0
        %2333 = vmatprep.subr.mxu0 0.0
        %2334 = vmatpush2.msra.mxu0 0.0
        %2335 = vmatprep.mubr.f32.mxu0 0.0
        %v2336 = vand.u32 %v1755, 4294901760
        %2337 = vmatmul.mubr.f32.gmra.mxu0 %v2336
        %v2338 = vpop.f32.mrf.mxu0
        %v2339 = vadd.f32 %v2220, %v2338
        %v2340 = vpop.f32.mrf.mxu0
        %2341 = vdwg.mxu0
        %2342 = vmatprep.subr.mxu0 0.0
        %v2343 = vand.u32 %v1787, 4294901760
        %2344 = vmatpush1.msra.mxu0 %v2343
        %2345 = vmatprep.subr.mxu0 0.0
        %v2346 = vand.u32 %v1786, 4294901760
        %2347 = vmatpush1.msra.mxu0 %v2346
        %2348 = vmatprep.subr.mxu0 0.0
        %v2349 = vand.u32 %v1785, 4294901760
        %2350 = vmatpush1.msra.mxu0 %v2349
        %2351 = vmatprep.subr.mxu0 0.0
        %v2352 = vand.u32 %v1784, 4294901760
        %2353 = vmatpush1.msra.mxu0 %v2352
        %2354 = vmatprep.subr.mxu0 0.0
        %v2355 = vand.u32 %v1783, 4294901760
        %2356 = vmatpush1.msra.mxu0 %v2355
        %2357 = vmatprep.subr.mxu0 0.0
        %v2358 = vand.u32 %v1782, 4294901760
        %2359 = vmatpush1.msra.mxu0 %v2358
        %2360 = vmatprep.subr.mxu0 0.0
        %v2361 = vand.u32 %v1781, 4294901760
        %2362 = vmatpush1.msra.mxu0 %v2361
        %2363 = vmatprep.subr.mxu0 0.0
        %v2364 = vand.u32 %v1780, 4294901760
        %2365 = vmatpush1.msra.mxu0 %v2364
        %2366 = vmatprep.subr.mxu0 0.0
        %v2367 = vand.u32 %v1779, 4294901760
        %2368 = vmatpush1.msra.mxu0 %v2367
        %2369 = vmatprep.subr.mxu0 0.0
        %v2370 = vand.u32 %v1778, 4294901760
        %2371 = vmatpush1.msra.mxu0 %v2370
        %2372 = vmatprep.subr.mxu0 0.0
        %v2373 = vand.u32 %v1777, 4294901760
        %2374 = vmatpush1.msra.mxu0 %v2373
        %2375 = vmatprep.subr.mxu0 0.0
        %v2376 = vand.u32 %v1776, 4294901760
        %2377 = vmatpush1.msra.mxu0 %v2376
        %2378 = vmatprep.subr.mxu0 0.0
        %v2379 = vand.u32 %v1775, 4294901760
        %2380 = vmatpush1.msra.mxu0 %v2379
        %2381 = vmatprep.subr.mxu0 0.0
        %v2382 = vand.u32 %v1774, 4294901760
        %2383 = vmatpush1.msra.mxu0 %v2382
        %2384 = vmatprep.subr.mxu0 0.0
        %v2385 = vand.u32 %v1773, 4294901760
        %2386 = vmatpush1.msra.mxu0 %v2385
        %2387 = vmatprep.subr.mxu0 0.0
        %v2388 = vand.u32 %v1772, 4294901760
        %2389 = vmatpush1.msra.mxu0 %v2388
        %2390 = vmatprep.subr.mxu0 0.0
        %2391 = vmatpush2.msra.mxu0 0.0
        %2392 = vmatprep.subr.mxu0 0.0
        %2393 = vmatpush2.msra.mxu0 0.0
        %2394 = vmatprep.subr.mxu0 0.0
        %2395 = vmatpush2.msra.mxu0 0.0
        %2396 = vmatprep.subr.mxu0 0.0
        %2397 = vmatpush2.msra.mxu0 0.0
        %2398 = vmatprep.subr.mxu0 0.0
        %2399 = vmatpush2.msra.mxu0 0.0
        %2400 = vmatprep.subr.mxu0 0.0
        %2401 = vmatpush2.msra.mxu0 0.0
        %2402 = vmatprep.subr.mxu0 0.0
        %2403 = vmatpush2.msra.mxu0 0.0
        %2404 = vmatprep.subr.mxu0 0.0
        %2405 = vmatpush2.msra.mxu0 0.0
        %2406 = vmatprep.subr.mxu0 0.0
        %2407 = vmatpush2.msra.mxu0 0.0
        %2408 = vmatprep.subr.mxu0 0.0
        %2409 = vmatpush2.msra.mxu0 0.0
        %2410 = vmatprep.subr.mxu0 0.0
        %2411 = vmatpush2.msra.mxu0 0.0
        %2412 = vmatprep.subr.mxu0 0.0
        %2413 = vmatpush2.msra.mxu0 0.0
        %2414 = vmatprep.subr.mxu0 0.0
        %2415 = vmatpush2.msra.mxu0 0.0
        %2416 = vmatprep.subr.mxu0 0.0
        %2417 = vmatpush2.msra.mxu0 0.0
        %2418 = vmatprep.subr.mxu0 0.0
        %2419 = vmatpush2.msra.mxu0 0.0
        %2420 = vmatprep.subr.mxu0 0.0
        %2421 = vmatpush2.msra.mxu0 0.0
        %2422 = vmatprep.mubr.f32.mxu0 0.0
        %v2423 = vand.u32 %v1755, 4294901760
        %2424 = vmatmul.mubr.f32.gmra.mxu0 %v2423
        %v2425 = vpop.f32.mrf.mxu0
        %v2426 = vadd.f32 %v2339, %v2425
        %v2427 = vpop.f32.mrf.mxu0
        %2428 = vdwg.mxu0
        %2429 = vmatprep.subr.mxu0 0.0
        %v2430 = vand.u32 %v1771, 4294901760
        %2431 = vmatpush1.msra.mxu0 %v2430
        %2432 = vmatprep.subr.mxu0 0.0
        %v2433 = vand.u32 %v1770, 4294901760
        %2434 = vmatpush1.msra.mxu0 %v2433
        %2435 = vmatprep.subr.mxu0 0.0
        %v2436 = vand.u32 %v1769, 4294901760
        %2437 = vmatpush1.msra.mxu0 %v2436
        %2438 = vmatprep.subr.mxu0 0.0
        %v2439 = vand.u32 %v1768, 4294901760
        %2440 = vmatpush1.msra.mxu0 %v2439
        %2441 = vmatprep.subr.mxu0 0.0
        %v2442 = vand.u32 %v1767, 4294901760
        %2443 = vmatpush1.msra.mxu0 %v2442
        %2444 = vmatprep.subr.mxu0 0.0
        %v2445 = vand.u32 %v1766, 4294901760
        %2446 = vmatpush1.msra.mxu0 %v2445
        %2447 = vmatprep.subr.mxu0 0.0
        %v2448 = vand.u32 %v1765, 4294901760
        %2449 = vmatpush1.msra.mxu0 %v2448
        %2450 = vmatprep.subr.mxu0 0.0
        %v2451 = vand.u32 %v1764, 4294901760
        %2452 = vmatpush1.msra.mxu0 %v2451
        %2453 = vmatprep.subr.mxu0 0.0
        %v2454 = vand.u32 %v1763, 4294901760
        %2455 = vmatpush1.msra.mxu0 %v2454
        %2456 = vmatprep.subr.mxu0 0.0
        %v2457 = vand.u32 %v1762, 4294901760
        %2458 = vmatpush1.msra.mxu0 %v2457
        %2459 = vmatprep.subr.mxu0 0.0
        %v2460 = vand.u32 %v1761, 4294901760
        %2461 = vmatpush1.msra.mxu0 %v2460
        %2462 = vmatprep.subr.mxu0 0.0
        %v2463 = vand.u32 %v1760, 4294901760
        %2464 = vmatpush1.msra.mxu0 %v2463
        %2465 = vmatprep.subr.mxu0 0.0
        %v2466 = vand.u32 %v1759, 4294901760
        %2467 = vmatpush1.msra.mxu0 %v2466
        %2468 = vmatprep.subr.mxu0 0.0
        %v2469 = vand.u32 %v1758, 4294901760
        %2470 = vmatpush1.msra.mxu0 %v2469
        %2471 = vmatprep.subr.mxu0 0.0
        %v2472 = vand.u32 %v1757, 4294901760
        %2473 = vmatpush1.msra.mxu0 %v2472
        %2474 = vmatprep.subr.mxu0 0.0
        %v2475 = vand.u32 %v1756, 4294901760
        %2476 = vmatpush1.msra.mxu0 %v2475
        %2477 = vmatprep.subr.mxu0 0.0
        %2478 = vmatpush2.msra.mxu0 0.0
        %2479 = vmatprep.subr.mxu0 0.0
        %2480 = vmatpush2.msra.mxu0 0.0
        %2481 = vmatprep.subr.mxu0 0.0
        %2482 = vmatpush2.msra.mxu0 0.0
        %2483 = vmatprep.subr.mxu0 0.0
        %2484 = vmatpush2.msra.mxu0 0.0
        %2485 = vmatprep.subr.mxu0 0.0
        %2486 = vmatpush2.msra.mxu0 0.0
        %2487 = vmatprep.subr.mxu0 0.0
        %2488 = vmatpush2.msra.mxu0 0.0
        %2489 = vmatprep.subr.mxu0 0.0
        %2490 = vmatpush2.msra.mxu0 0.0
        %2491 = vmatprep.subr.mxu0 0.0
        %2492 = vmatpush2.msra.mxu0 0.0
        %2493 = vmatprep.subr.mxu0 0.0
        %2494 = vmatpush2.msra.mxu0 0.0
        %2495 = vmatprep.subr.mxu0 0.0
        %2496 = vmatpush2.msra.mxu0 0.0
        %2497 = vmatprep.subr.mxu0 0.0
        %2498 = vmatpush2.msra.mxu0 0.0
        %2499 = vmatprep.subr.mxu0 0.0
        %2500 = vmatpush2.msra.mxu0 0.0
        %2501 = vmatprep.subr.mxu0 0.0
        %2502 = vmatpush2.msra.mxu0 0.0
        %2503 = vmatprep.subr.mxu0 0.0
        %2504 = vmatpush2.msra.mxu0 0.0
        %2505 = vmatprep.subr.mxu0 0.0
        %2506 = vmatpush2.msra.mxu0 0.0
        %2507 = vmatprep.subr.mxu0 0.0
        %2508 = vmatpush2.msra.mxu0 0.0
        %2509 = vmatprep.mubr.f32.mxu0 0.0
        %v2510 = vand.u32 %v1752, 4294901760
        %v2511 = vsub.f32 %v1752, %v2510
        %v2512 = vand.u32 %v2511, 4294901760
        %v2513 = vsub.f32 %v2511, %v2512
        %v2514 = vand.u32 %v2513, 4294901760
        %2515 = vmatmul.mubr.f32.gmra.mxu0 %v2514
        %v2516 = vpop.f32.mrf.mxu0
        %v2517 = vadd.f32 %v2426, %v2516
        %v2518 = vpop.f32.mrf.mxu0
        %2519 = vdwg.mxu0
        %2520 = vmatprep.subr.mxu0 0.0
        %v2521 = vand.u32 %v1771, 4294901760
        %v2522 = vsub.f32 %v1771, %v2521
        %v2523 = vand.u32 %v2522, 4294901760
        %v2524 = vsub.f32 %v2522, %v2523
        %v2525 = vand.u32 %v2524, 4294901760
        %2526 = vmatpush1.msra.mxu0 %v2525
        %2527 = vmatprep.subr.mxu0 0.0
        %v2528 = vand.u32 %v1770, 4294901760
        %v2529 = vsub.f32 %v1770, %v2528
        %v2530 = vand.u32 %v2529, 4294901760
        %v2531 = vsub.f32 %v2529, %v2530
        %v2532 = vand.u32 %v2531, 4294901760
        %2533 = vmatpush1.msra.mxu0 %v2532
        %2534 = vmatprep.subr.mxu0 0.0
        %v2535 = vand.u32 %v1769, 4294901760
        %v2536 = vsub.f32 %v1769, %v2535
        %v2537 = vand.u32 %v2536, 4294901760
        %v2538 = vsub.f32 %v2536, %v2537
        %v2539 = vand.u32 %v2538, 4294901760
        %2540 = vmatpush1.msra.mxu0 %v2539
        %2541 = vmatprep.subr.mxu0 0.0
        %v2542 = vand.u32 %v1768, 4294901760
        %v2543 = vsub.f32 %v1768, %v2542
        %v2544 = vand.u32 %v2543, 4294901760
        %v2545 = vsub.f32 %v2543, %v2544
        %v2546 = vand.u32 %v2545, 4294901760
        %2547 = vmatpush1.msra.mxu0 %v2546
        %2548 = vmatprep.subr.mxu0 0.0
        %v2549 = vand.u32 %v1767, 4294901760
        %v2550 = vsub.f32 %v1767, %v2549
        %v2551 = vand.u32 %v2550, 4294901760
        %v2552 = vsub.f32 %v2550, %v2551
        %v2553 = vand.u32 %v2552, 4294901760
        %2554 = vmatpush1.msra.mxu0 %v2553
        %2555 = vmatprep.subr.mxu0 0.0
        %v2556 = vand.u32 %v1766, 4294901760
        %v2557 = vsub.f32 %v1766, %v2556
        %v2558 = vand.u32 %v2557, 4294901760
        %v2559 = vsub.f32 %v2557, %v2558
        %v2560 = vand.u32 %v2559, 4294901760
        %2561 = vmatpush1.msra.mxu0 %v2560
        %2562 = vmatprep.subr.mxu0 0.0
        %v2563 = vand.u32 %v1765, 4294901760
        %v2564 = vsub.f32 %v1765, %v2563
        %v2565 = vand.u32 %v2564, 4294901760
        %v2566 = vsub.f32 %v2564, %v2565
        %v2567 = vand.u32 %v2566, 4294901760
        %2568 = vmatpush1.msra.mxu0 %v2567
        %2569 = vmatprep.subr.mxu0 0.0
        %v2570 = vand.u32 %v1764, 4294901760
        %v2571 = vsub.f32 %v1764, %v2570
        %v2572 = vand.u32 %v2571, 4294901760
        %v2573 = vsub.f32 %v2571, %v2572
        %v2574 = vand.u32 %v2573, 4294901760
        %2575 = vmatpush1.msra.mxu0 %v2574
        %2576 = vmatprep.subr.mxu0 0.0
        %v2577 = vand.u32 %v1763, 4294901760
        %v2578 = vsub.f32 %v1763, %v2577
        %v2579 = vand.u32 %v2578, 4294901760
        %v2580 = vsub.f32 %v2578, %v2579
        %v2581 = vand.u32 %v2580, 4294901760
        %2582 = vmatpush1.msra.mxu0 %v2581
        %2583 = vmatprep.subr.mxu0 0.0
        %v2584 = vand.u32 %v1762, 4294901760
        %v2585 = vsub.f32 %v1762, %v2584
        %v2586 = vand.u32 %v2585, 4294901760
        %v2587 = vsub.f32 %v2585, %v2586
        %v2588 = vand.u32 %v2587, 4294901760
        %2589 = vmatpush1.msra.mxu0 %v2588
        %2590 = vmatprep.subr.mxu0 0.0
        %v2591 = vand.u32 %v1761, 4294901760
        %v2592 = vsub.f32 %v1761, %v2591
        %v2593 = vand.u32 %v2592, 4294901760
        %v2594 = vsub.f32 %v2592, %v2593
        %v2595 = vand.u32 %v2594, 4294901760
        %2596 = vmatpush1.msra.mxu0 %v2595
        %2597 = vmatprep.subr.mxu0 0.0
        %v2598 = vand.u32 %v1760, 4294901760
        %v2599 = vsub.f32 %v1760, %v2598
        %v2600 = vand.u32 %v2599, 4294901760
        %v2601 = vsub.f32 %v2599, %v2600
        %v2602 = vand.u32 %v2601, 4294901760
        %2603 = vmatpush1.msra.mxu0 %v2602
        %2604 = vmatprep.subr.mxu0 0.0
        %v2605 = vand.u32 %v1759, 4294901760
        %v2606 = vsub.f32 %v1759, %v2605
        %v2607 = vand.u32 %v2606, 4294901760
        %v2608 = vsub.f32 %v2606, %v2607
        %v2609 = vand.u32 %v2608, 4294901760
        %2610 = vmatpush1.msra.mxu0 %v2609
        %2611 = vmatprep.subr.mxu0 0.0
        %v2612 = vand.u32 %v1758, 4294901760
        %v2613 = vsub.f32 %v1758, %v2612
        %v2614 = vand.u32 %v2613, 4294901760
        %v2615 = vsub.f32 %v2613, %v2614
        %v2616 = vand.u32 %v2615, 4294901760
        %2617 = vmatpush1.msra.mxu0 %v2616
        %2618 = vmatprep.subr.mxu0 0.0
        %v2619 = vand.u32 %v1757, 4294901760
        %v2620 = vsub.f32 %v1757, %v2619
        %v2621 = vand.u32 %v2620, 4294901760
        %v2622 = vsub.f32 %v2620, %v2621
        %v2623 = vand.u32 %v2622, 4294901760
        %2624 = vmatpush1.msra.mxu0 %v2623
        %2625 = vmatprep.subr.mxu0 0.0
        %v2626 = vand.u32 %v1756, 4294901760
        %v2627 = vsub.f32 %v1756, %v2626
        %v2628 = vand.u32 %v2627, 4294901760
        %v2629 = vsub.f32 %v2627, %v2628
        %v2630 = vand.u32 %v2629, 4294901760
        %2631 = vmatpush1.msra.mxu0 %v2630
        %2632 = vmatprep.subr.mxu0 0.0
        %2633 = vmatpush2.msra.mxu0 0.0
        %2634 = vmatprep.subr.mxu0 0.0
        %2635 = vmatpush2.msra.mxu0 0.0
        %2636 = vmatprep.subr.mxu0 0.0
        %2637 = vmatpush2.msra.mxu0 0.0
        %2638 = vmatprep.subr.mxu0 0.0
        %2639 = vmatpush2.msra.mxu0 0.0
        %2640 = vmatprep.subr.mxu0 0.0
        %2641 = vmatpush2.msra.mxu0 0.0
        %2642 = vmatprep.subr.mxu0 0.0
        %2643 = vmatpush2.msra.mxu0 0.0
        %2644 = vmatprep.subr.mxu0 0.0
        %2645 = vmatpush2.msra.mxu0 0.0
        %2646 = vmatprep.subr.mxu0 0.0
        %2647 = vmatpush2.msra.mxu0 0.0
        %2648 = vmatprep.subr.mxu0 0.0
        %2649 = vmatpush2.msra.mxu0 0.0
        %2650 = vmatprep.subr.mxu0 0.0
        %2651 = vmatpush2.msra.mxu0 0.0
        %2652 = vmatprep.subr.mxu0 0.0
        %2653 = vmatpush2.msra.mxu0 0.0
        %2654 = vmatprep.subr.mxu0 0.0
        %2655 = vmatpush2.msra.mxu0 0.0
        %2656 = vmatprep.subr.mxu0 0.0
        %2657 = vmatpush2.msra.mxu0 0.0
        %2658 = vmatprep.subr.mxu0 0.0
        %2659 = vmatpush2.msra.mxu0 0.0
        %2660 = vmatprep.subr.mxu0 0.0
        %2661 = vmatpush2.msra.mxu0 0.0
        %2662 = vmatprep.subr.mxu0 0.0
        %2663 = vmatpush2.msra.mxu0 0.0
        %2664 = vmatprep.mubr.f32.mxu0 0.0
        %v2665 = vand.u32 %v1752, 4294901760
        %2666 = vmatmul.mubr.f32.gmra.mxu0 %v2665
        %v2667 = vpop.f32.mrf.mxu0
        %v2668 = vadd.f32 %v2517, %v2667
        %v2669 = vpop.f32.mrf.mxu0
        %2670 = vdwg.mxu0
        %2671 = vmatprep.subr.mxu0 0.0
        %v2672 = vand.u32 %v1771, 4294901760
        %v2673 = vsub.f32 %v1771, %v2672
        %2674 = vmatpush1.msra.mxu0 %v2673
        %2675 = vmatprep.subr.mxu0 0.0
        %v2676 = vand.u32 %v1770, 4294901760
        %v2677 = vsub.f32 %v1770, %v2676
        %2678 = vmatpush1.msra.mxu0 %v2677
        %2679 = vmatprep.subr.mxu0 0.0
        %v2680 = vand.u32 %v1769, 4294901760
        %v2681 = vsub.f32 %v1769, %v2680
        %2682 = vmatpush1.msra.mxu0 %v2681
        %2683 = vmatprep.subr.mxu0 0.0
        %v2684 = vand.u32 %v1768, 4294901760
        %v2685 = vsub.f32 %v1768, %v2684
        %2686 = vmatpush1.msra.mxu0 %v2685
        %2687 = vmatprep.subr.mxu0 0.0
        %v2688 = vand.u32 %v1767, 4294901760
        %v2689 = vsub.f32 %v1767, %v2688
        %2690 = vmatpush1.msra.mxu0 %v2689
        %2691 = vmatprep.subr.mxu0 0.0
        %v2692 = vand.u32 %v1766, 4294901760
        %v2693 = vsub.f32 %v1766, %v2692
        %2694 = vmatpush1.msra.mxu0 %v2693
        %2695 = vmatprep.subr.mxu0 0.0
        %v2696 = vand.u32 %v1765, 4294901760
        %v2697 = vsub.f32 %v1765, %v2696
        %2698 = vmatpush1.msra.mxu0 %v2697
        %2699 = vmatprep.subr.mxu0 0.0
        %v2700 = vand.u32 %v1764, 4294901760
        %v2701 = vsub.f32 %v1764, %v2700
        %2702 = vmatpush1.msra.mxu0 %v2701
        %2703 = vmatprep.subr.mxu0 0.0
        %v2704 = vand.u32 %v1763, 4294901760
        %v2705 = vsub.f32 %v1763, %v2704
        %2706 = vmatpush1.msra.mxu0 %v2705
        %2707 = vmatprep.subr.mxu0 0.0
        %v2708 = vand.u32 %v1762, 4294901760
        %v2709 = vsub.f32 %v1762, %v2708
        %2710 = vmatpush1.msra.mxu0 %v2709
        %2711 = vmatprep.subr.mxu0 0.0
        %v2712 = vand.u32 %v1761, 4294901760
        %v2713 = vsub.f32 %v1761, %v2712
        %2714 = vmatpush1.msra.mxu0 %v2713
        %2715 = vmatprep.subr.mxu0 0.0
        %v2716 = vand.u32 %v1760, 4294901760
        %v2717 = vsub.f32 %v1760, %v2716
        %2718 = vmatpush1.msra.mxu0 %v2717
        %2719 = vmatprep.subr.mxu0 0.0
        %v2720 = vand.u32 %v1759, 4294901760
        %v2721 = vsub.f32 %v1759, %v2720
        %2722 = vmatpush1.msra.mxu0 %v2721
        %2723 = vmatprep.subr.mxu0 0.0
        %v2724 = vand.u32 %v1758, 4294901760
        %v2725 = vsub.f32 %v1758, %v2724
        %2726 = vmatpush1.msra.mxu0 %v2725
        %2727 = vmatprep.subr.mxu0 0.0
        %v2728 = vand.u32 %v1757, 4294901760
        %v2729 = vsub.f32 %v1757, %v2728
        %2730 = vmatpush1.msra.mxu0 %v2729
        %2731 = vmatprep.subr.mxu0 0.0
        %v2732 = vand.u32 %v1756, 4294901760
        %v2733 = vsub.f32 %v1756, %v2732
        %2734 = vmatpush1.msra.mxu0 %v2733
        %2735 = vmatprep.subr.mxu0 0.0
        %2736 = vmatpush2.msra.mxu0 0.0
        %2737 = vmatprep.subr.mxu0 0.0
        %2738 = vmatpush2.msra.mxu0 0.0
        %2739 = vmatprep.subr.mxu0 0.0
        %2740 = vmatpush2.msra.mxu0 0.0
        %2741 = vmatprep.subr.mxu0 0.0
        %2742 = vmatpush2.msra.mxu0 0.0
        %2743 = vmatprep.subr.mxu0 0.0
        %2744 = vmatpush2.msra.mxu0 0.0
        %2745 = vmatprep.subr.mxu0 0.0
        %2746 = vmatpush2.msra.mxu0 0.0
        %2747 = vmatprep.subr.mxu0 0.0
        %2748 = vmatpush2.msra.mxu0 0.0
        %2749 = vmatprep.subr.mxu0 0.0
        %2750 = vmatpush2.msra.mxu0 0.0
        %2751 = vmatprep.subr.mxu0 0.0
        %2752 = vmatpush2.msra.mxu0 0.0
        %2753 = vmatprep.subr.mxu0 0.0
        %2754 = vmatpush2.msra.mxu0 0.0
        %2755 = vmatprep.subr.mxu0 0.0
        %2756 = vmatpush2.msra.mxu0 0.0
        %2757 = vmatprep.subr.mxu0 0.0
        %2758 = vmatpush2.msra.mxu0 0.0
        %2759 = vmatprep.subr.mxu0 0.0
        %2760 = vmatpush2.msra.mxu0 0.0
        %2761 = vmatprep.subr.mxu0 0.0
        %2762 = vmatpush2.msra.mxu0 0.0
        %2763 = vmatprep.subr.mxu0 0.0
        %2764 = vmatpush2.msra.mxu0 0.0
        %2765 = vmatprep.subr.mxu0 0.0
        %2766 = vmatpush2.msra.mxu0 0.0
        %2767 = vmatprep.mubr.f32.mxu0 0.0
        %v2768 = vand.u32 %v1752, 4294901760
        %v2769 = vsub.f32 %v1752, %v2768
        %2770 = vmatmul.mubr.f32.gmra.mxu0 %v2769
        %v2771 = vpop.f32.mrf.mxu0
        %v2772 = vadd.f32 %v2668, %v2771
        %v2773 = vpop.f32.mrf.mxu0
        %2774 = vdwg.mxu0
        %2775 = vmatprep.subr.mxu0 0.0
        %v2776 = vand.u32 %v1771, 4294901760
        %2777 = vmatpush1.msra.mxu0 %v2776
        %2778 = vmatprep.subr.mxu0 0.0
        %v2779 = vand.u32 %v1770, 4294901760
        %2780 = vmatpush1.msra.mxu0 %v2779
        %2781 = vmatprep.subr.mxu0 0.0
        %v2782 = vand.u32 %v1769, 4294901760
        %2783 = vmatpush1.msra.mxu0 %v2782
        %2784 = vmatprep.subr.mxu0 0.0
        %v2785 = vand.u32 %v1768, 4294901760
        %2786 = vmatpush1.msra.mxu0 %v2785
        %2787 = vmatprep.subr.mxu0 0.0
        %v2788 = vand.u32 %v1767, 4294901760
        %2789 = vmatpush1.msra.mxu0 %v2788
        %2790 = vmatprep.subr.mxu0 0.0
        %v2791 = vand.u32 %v1766, 4294901760
        %2792 = vmatpush1.msra.mxu0 %v2791
        %2793 = vmatprep.subr.mxu0 0.0
        %v2794 = vand.u32 %v1765, 4294901760
        %2795 = vmatpush1.msra.mxu0 %v2794
        %2796 = vmatprep.subr.mxu0 0.0
        %v2797 = vand.u32 %v1764, 4294901760
        %2798 = vmatpush1.msra.mxu0 %v2797
        %2799 = vmatprep.subr.mxu0 0.0
        %v2800 = vand.u32 %v1763, 4294901760
        %2801 = vmatpush1.msra.mxu0 %v2800
        %2802 = vmatprep.subr.mxu0 0.0
        %v2803 = vand.u32 %v1762, 4294901760
        %2804 = vmatpush1.msra.mxu0 %v2803
        %2805 = vmatprep.subr.mxu0 0.0
        %v2806 = vand.u32 %v1761, 4294901760
        %2807 = vmatpush1.msra.mxu0 %v2806
        %2808 = vmatprep.subr.mxu0 0.0
        %v2809 = vand.u32 %v1760, 4294901760
        %2810 = vmatpush1.msra.mxu0 %v2809
        %2811 = vmatprep.subr.mxu0 0.0
        %v2812 = vand.u32 %v1759, 4294901760
        %2813 = vmatpush1.msra.mxu0 %v2812
        %2814 = vmatprep.subr.mxu0 0.0
        %v2815 = vand.u32 %v1758, 4294901760
        %2816 = vmatpush1.msra.mxu0 %v2815
        %2817 = vmatprep.subr.mxu0 0.0
        %v2818 = vand.u32 %v1757, 4294901760
        %2819 = vmatpush1.msra.mxu0 %v2818
        %2820 = vmatprep.subr.mxu0 0.0
        %v2821 = vand.u32 %v1756, 4294901760
        %2822 = vmatpush1.msra.mxu0 %v2821
        %2823 = vmatprep.subr.mxu0 0.0
        %2824 = vmatpush2.msra.mxu0 0.0
        %2825 = vmatprep.subr.mxu0 0.0
        %2826 = vmatpush2.msra.mxu0 0.0
        %2827 = vmatprep.subr.mxu0 0.0
        %2828 = vmatpush2.msra.mxu0 0.0
        %2829 = vmatprep.subr.mxu0 0.0
        %2830 = vmatpush2.msra.mxu0 0.0
        %2831 = vmatprep.subr.mxu0 0.0
        %2832 = vmatpush2.msra.mxu0 0.0
        %2833 = vmatprep.subr.mxu0 0.0
        %2834 = vmatpush2.msra.mxu0 0.0
        %2835 = vmatprep.subr.mxu0 0.0
        %2836 = vmatpush2.msra.mxu0 0.0
        %2837 = vmatprep.subr.mxu0 0.0
        %2838 = vmatpush2.msra.mxu0 0.0
        %2839 = vmatprep.subr.mxu0 0.0
        %2840 = vmatpush2.msra.mxu0 0.0
        %2841 = vmatprep.subr.mxu0 0.0
        %2842 = vmatpush2.msra.mxu0 0.0
        %2843 = vmatprep.subr.mxu0 0.0
        %2844 = vmatpush2.msra.mxu0 0.0
        %2845 = vmatprep.subr.mxu0 0.0
        %2846 = vmatpush2.msra.mxu0 0.0
        %2847 = vmatprep.subr.mxu0 0.0
        %2848 = vmatpush2.msra.mxu0 0.0
        %2849 = vmatprep.subr.mxu0 0.0
        %2850 = vmatpush2.msra.mxu0 0.0
        %2851 = vmatprep.subr.mxu0 0.0
        %2852 = vmatpush2.msra.mxu0 0.0
        %2853 = vmatprep.subr.mxu0 0.0
        %2854 = vmatpush2.msra.mxu0 0.0
        %2855 = vmatprep.mubr.f32.mxu0 0.0
        %v2856 = vand.u32 %v1752, 4294901760
        %v2857 = vsub.f32 %v1752, %v2856
        %v2858 = vand.u32 %v2857, 4294901760
        %2859 = vmatmul.mubr.f32.gmra.mxu0 %v2858
        %v2860 = vpop.f32.mrf.mxu0
        %v2861 = vadd.f32 %v2772, %v2860
        %v2862 = vpop.f32.mrf.mxu0
        %2863 = vdwg.mxu0
        %2864 = vmatprep.subr.mxu0 0.0
        %v2865 = vand.u32 %v1771, 4294901760
        %v2866 = vsub.f32 %v1771, %v2865
        %v2867 = vand.u32 %v2866, 4294901760
        %2868 = vmatpush1.msra.mxu0 %v2867
        %2869 = vmatprep.subr.mxu0 0.0
        %v2870 = vand.u32 %v1770, 4294901760
        %v2871 = vsub.f32 %v1770, %v2870
        %v2872 = vand.u32 %v2871, 4294901760
        %2873 = vmatpush1.msra.mxu0 %v2872
        %2874 = vmatprep.subr.mxu0 0.0
        %v2875 = vand.u32 %v1769, 4294901760
        %v2876 = vsub.f32 %v1769, %v2875
        %v2877 = vand.u32 %v2876, 4294901760
        %2878 = vmatpush1.msra.mxu0 %v2877
        %2879 = vmatprep.subr.mxu0 0.0
        %v2880 = vand.u32 %v1768, 4294901760
        %v2881 = vsub.f32 %v1768, %v2880
        %v2882 = vand.u32 %v2881, 4294901760
        %2883 = vmatpush1.msra.mxu0 %v2882
        %2884 = vmatprep.subr.mxu0 0.0
        %v2885 = vand.u32 %v1767, 4294901760
        %v2886 = vsub.f32 %v1767, %v2885
        %v2887 = vand.u32 %v2886, 4294901760
        %2888 = vmatpush1.msra.mxu0 %v2887
        %2889 = vmatprep.subr.mxu0 0.0
        %v2890 = vand.u32 %v1766, 4294901760
        %v2891 = vsub.f32 %v1766, %v2890
        %v2892 = vand.u32 %v2891, 4294901760
        %2893 = vmatpush1.msra.mxu0 %v2892
        %2894 = vmatprep.subr.mxu0 0.0
        %v2895 = vand.u32 %v1765, 4294901760
        %v2896 = vsub.f32 %v1765, %v2895
        %v2897 = vand.u32 %v2896, 4294901760
        %2898 = vmatpush1.msra.mxu0 %v2897
        %2899 = vmatprep.subr.mxu0 0.0
        %v2900 = vand.u32 %v1764, 4294901760
        %v2901 = vsub.f32 %v1764, %v2900
        %v2902 = vand.u32 %v2901, 4294901760
        %2903 = vmatpush1.msra.mxu0 %v2902
        %2904 = vmatprep.subr.mxu0 0.0
        %v2905 = vand.u32 %v1763, 4294901760
        %v2906 = vsub.f32 %v1763, %v2905
        %v2907 = vand.u32 %v2906, 4294901760
        %2908 = vmatpush1.msra.mxu0 %v2907
        %2909 = vmatprep.subr.mxu0 0.0
        %v2910 = vand.u32 %v1762, 4294901760
        %v2911 = vsub.f32 %v1762, %v2910
        %v2912 = vand.u32 %v2911, 4294901760
        %2913 = vmatpush1.msra.mxu0 %v2912
        %2914 = vmatprep.subr.mxu0 0.0
        %v2915 = vand.u32 %v1761, 4294901760
        %v2916 = vsub.f32 %v1761, %v2915
        %v2917 = vand.u32 %v2916, 4294901760
        %2918 = vmatpush1.msra.mxu0 %v2917
        %2919 = vmatprep.subr.mxu0 0.0
        %v2920 = vand.u32 %v1760, 4294901760
        %v2921 = vsub.f32 %v1760, %v2920
        %v2922 = vand.u32 %v2921, 4294901760
        %2923 = vmatpush1.msra.mxu0 %v2922
        %2924 = vmatprep.subr.mxu0 0.0
        %v2925 = vand.u32 %v1759, 4294901760
        %v2926 = vsub.f32 %v1759, %v2925
        %v2927 = vand.u32 %v2926, 4294901760
        %2928 = vmatpush1.msra.mxu0 %v2927
        %2929 = vmatprep.subr.mxu0 0.0
        %v2930 = vand.u32 %v1758, 4294901760
        %v2931 = vsub.f32 %v1758, %v2930
        %v2932 = vand.u32 %v2931, 4294901760
        %2933 = vmatpush1.msra.mxu0 %v2932
        %2934 = vmatprep.subr.mxu0 0.0
        %v2935 = vand.u32 %v1757, 4294901760
        %v2936 = vsub.f32 %v1757, %v2935
        %v2937 = vand.u32 %v2936, 4294901760
        %2938 = vmatpush1.msra.mxu0 %v2937
        %2939 = vmatprep.subr.mxu0 0.0
        %v2940 = vand.u32 %v1756, 4294901760
        %v2941 = vsub.f32 %v1756, %v2940
        %v2942 = vand.u32 %v2941, 4294901760
        %2943 = vmatpush1.msra.mxu0 %v2942
        %2944 = vmatprep.subr.mxu0 0.0
        %2945 = vmatpush2.msra.mxu0 0.0
        %2946 = vmatprep.subr.mxu0 0.0
        %2947 = vmatpush2.msra.mxu0 0.0
        %2948 = vmatprep.subr.mxu0 0.0
        %2949 = vmatpush2.msra.mxu0 0.0
        %2950 = vmatprep.subr.mxu0 0.0
        %2951 = vmatpush2.msra.mxu0 0.0
        %2952 = vmatprep.subr.mxu0 0.0
        %2953 = vmatpush2.msra.mxu0 0.0
        %2954 = vmatprep.subr.mxu0 0.0
        %2955 = vmatpush2.msra.mxu0 0.0
        %2956 = vmatprep.subr.mxu0 0.0
        %2957 = vmatpush2.msra.mxu0 0.0
        %2958 = vmatprep.subr.mxu0 0.0
        %2959 = vmatpush2.msra.mxu0 0.0
        %2960 = vmatprep.subr.mxu0 0.0
        %2961 = vmatpush2.msra.mxu0 0.0
        %2962 = vmatprep.subr.mxu0 0.0
        %2963 = vmatpush2.msra.mxu0 0.0
        %2964 = vmatprep.subr.mxu0 0.0
        %2965 = vmatpush2.msra.mxu0 0.0
        %2966 = vmatprep.subr.mxu0 0.0
        %2967 = vmatpush2.msra.mxu0 0.0
        %2968 = vmatprep.subr.mxu0 0.0
        %2969 = vmatpush2.msra.mxu0 0.0
        %2970 = vmatprep.subr.mxu0 0.0
        %2971 = vmatpush2.msra.mxu0 0.0
        %2972 = vmatprep.subr.mxu0 0.0
        %2973 = vmatpush2.msra.mxu0 0.0
        %2974 = vmatprep.subr.mxu0 0.0
        %2975 = vmatpush2.msra.mxu0 0.0
        %2976 = vmatprep.mubr.f32.mxu0 0.0
        %v2977 = vand.u32 %v1752, 4294901760
        %2978 = vmatmul.mubr.f32.gmra.mxu0 %v2977
        %v2979 = vpop.f32.mrf.mxu0
        %v2980 = vadd.f32 %v2861, %v2979
        %v2981 = vpop.f32.mrf.mxu0
        %2982 = vdwg.mxu0
        %2983 = vmatprep.subr.mxu0 0.0
        %v2984 = vand.u32 %v1771, 4294901760
        %2985 = vmatpush1.msra.mxu0 %v2984
        %2986 = vmatprep.subr.mxu0 0.0
        %v2987 = vand.u32 %v1770, 4294901760
        %2988 = vmatpush1.msra.mxu0 %v2987
        %2989 = vmatprep.subr.mxu0 0.0
        %v2990 = vand.u32 %v1769, 4294901760
        %2991 = vmatpush1.msra.mxu0 %v2990
        %2992 = vmatprep.subr.mxu0 0.0
        %v2993 = vand.u32 %v1768, 4294901760
        %2994 = vmatpush1.msra.mxu0 %v2993
        %2995 = vmatprep.subr.mxu0 0.0
        %v2996 = vand.u32 %v1767, 4294901760
        %2997 = vmatpush1.msra.mxu0 %v2996
        %2998 = vmatprep.subr.mxu0 0.0
        %v2999 = vand.u32 %v1766, 4294901760
        %3000 = vmatpush1.msra.mxu0 %v2999
        %3001 = vmatprep.subr.mxu0 0.0
        %v3002 = vand.u32 %v1765, 4294901760
        %3003 = vmatpush1.msra.mxu0 %v3002
        %3004 = vmatprep.subr.mxu0 0.0
        %v3005 = vand.u32 %v1764, 4294901760
        %3006 = vmatpush1.msra.mxu0 %v3005
        %3007 = vmatprep.subr.mxu0 0.0
        %v3008 = vand.u32 %v1763, 4294901760
        %3009 = vmatpush1.msra.mxu0 %v3008
        %3010 = vmatprep.subr.mxu0 0.0
        %v3011 = vand.u32 %v1762, 4294901760
        %3012 = vmatpush1.msra.mxu0 %v3011
        %3013 = vmatprep.subr.mxu0 0.0
        %v3014 = vand.u32 %v1761, 4294901760
        %3015 = vmatpush1.msra.mxu0 %v3014
        %3016 = vmatprep.subr.mxu0 0.0
        %v3017 = vand.u32 %v1760, 4294901760
        %3018 = vmatpush1.msra.mxu0 %v3017
        %3019 = vmatprep.subr.mxu0 0.0
        %v3020 = vand.u32 %v1759, 4294901760
        %3021 = vmatpush1.msra.mxu0 %v3020
        %3022 = vmatprep.subr.mxu0 0.0
        %v3023 = vand.u32 %v1758, 4294901760
        %3024 = vmatpush1.msra.mxu0 %v3023
        %3025 = vmatprep.subr.mxu0 0.0
        %v3026 = vand.u32 %v1757, 4294901760
        %3027 = vmatpush1.msra.mxu0 %v3026
        %3028 = vmatprep.subr.mxu0 0.0
        %v3029 = vand.u32 %v1756, 4294901760
        %3030 = vmatpush1.msra.mxu0 %v3029
        %3031 = vmatprep.subr.mxu0 0.0
        %3032 = vmatpush2.msra.mxu0 0.0
        %3033 = vmatprep.subr.mxu0 0.0
        %3034 = vmatpush2.msra.mxu0 0.0
        %3035 = vmatprep.subr.mxu0 0.0
        %3036 = vmatpush2.msra.mxu0 0.0
        %3037 = vmatprep.subr.mxu0 0.0
        %3038 = vmatpush2.msra.mxu0 0.0
        %3039 = vmatprep.subr.mxu0 0.0
        %3040 = vmatpush2.msra.mxu0 0.0
        %3041 = vmatprep.subr.mxu0 0.0
        %3042 = vmatpush2.msra.mxu0 0.0
        %3043 = vmatprep.subr.mxu0 0.0
        %3044 = vmatpush2.msra.mxu0 0.0
        %3045 = vmatprep.subr.mxu0 0.0
        %3046 = vmatpush2.msra.mxu0 0.0
        %3047 = vmatprep.subr.mxu0 0.0
        %3048 = vmatpush2.msra.mxu0 0.0
        %3049 = vmatprep.subr.mxu0 0.0
        %3050 = vmatpush2.msra.mxu0 0.0
        %3051 = vmatprep.subr.mxu0 0.0
        %3052 = vmatpush2.msra.mxu0 0.0
        %3053 = vmatprep.subr.mxu0 0.0
        %3054 = vmatpush2.msra.mxu0 0.0
        %3055 = vmatprep.subr.mxu0 0.0
        %3056 = vmatpush2.msra.mxu0 0.0
        %3057 = vmatprep.subr.mxu0 0.0
        %3058 = vmatpush2.msra.mxu0 0.0
        %3059 = vmatprep.subr.mxu0 0.0
        %3060 = vmatpush2.msra.mxu0 0.0
        %3061 = vmatprep.subr.mxu0 0.0
        %3062 = vmatpush2.msra.mxu0 0.0
        %3063 = vmatprep.mubr.f32.mxu0 0.0
        %v3064 = vand.u32 %v1752, 4294901760
        %3065 = vmatmul.mubr.f32.gmra.mxu0 %v3064
        %v3066 = vpop.f32.mrf.mxu0
        %v3067 = vadd.f32 %v2980, %v3066
        %v3068 = vpop.f32.mrf.mxu0
        %3069 = vdwg.mxu0
        %v3070 = vld [vmem:[%s7] sm:$0x1]
        %v3072 = vlaneseq
        %v3073 = vshrl.u32 %v3072, 7
        %v3074 = vsub.s32 0, %v3073
        %v3075 = vrot.slane %v3070, %v3074
        %v3077 = vadd.f32 %v3067, %v3075
        %v3078 = vtanh.pop %v3077
        %3079 = vst [vmem:[%s1754] sm:$0xff] %v3078
        %3080 = vst [vmem:[%s417] sm:$0xff] %v3078
        %s3081 = sand.u32 %s212, 1
        %s3082 = scalar_lea.sflag [#allocation4], %s3081
        %s3083 = sand.u32 %s212, 1
        %s3084 = smul.addr %s3083, 8
        %s3085 = scalar_lea.vmem [#allocation13], %s3084
        // Predicated region
        $region81: #{tpu_custom_call.1} parent=51 // pred_check
          %p3086 = pneg %p222
        $region82: #{tpu_custom_call.1} parent=51 // pred_check_branch
          %3088 = sbr.rel (%p3086) target = $region84
        $region83: #{tpu_custom_call.1} parent=51 // pred_region
          %s3090 = ssub.s32 128, 128
          %3091 = vsyncadd %s3082, %s3090
          %s3092 = smul.addr %s31, 128
          %s3093 = scalar_lea.hbm %s8, %s3092
          %s3095 = sshll.u32 %s3085, 4
          %s3096 = int_to_ptr.vmem [resolvable:$true] %s3095
          %3098 = dma.vmem_to_hbm [thread:$0]  %s3096, 128, %s3093, %s3082
        $region84: #{tpu_custom_call.1} parent=51 // pred_fallthru
          _
        // Predicated region
        $region85: #{tpu_custom_call.1} parent=51 // pred_check
          %p3099 = pneg %p243
        $region86: #{tpu_custom_call.1} parent=51 // pred_check_branch
          %3101 = sbr.rel (%p3099) target = $region88
        $region87: #{tpu_custom_call.1} parent=51 // pred_region
          %s3103 = ssub.s32 256, 256
          %3104 = vsyncadd [#allocation15], %s3103
          %s3105 = sshll.u32 [#allocation14], 4
          %s3106 = int_to_ptr.vmem [resolvable:$true] %s3105
          %3111 = dma.vmem_to_hbm [thread:$0]  %s3106, 256, %s9, [#allocation15], 128, 128, 8
        $region88: #{tpu_custom_call.1} parent=51 // pred_fallthru
          _
        // Predicated region
        $region89: #{tpu_custom_call.1} parent=51 // pred_check
          %p3112 = pneg %p243
        $region90: #{tpu_custom_call.1} parent=51 // pred_check_branch
          %3114 = sbr.rel (%p3112) target = $region92
        $region91: #{tpu_custom_call.1} parent=51 // pred_region
          %3115 = dma.done [#allocation15], 256
        $region92: #{tpu_custom_call.1} parent=51 // pred_fallthru
          _
      $region52: #{tpu_custom_call.1} parent=5 // pred_fallthru
        _
      %p3116 = scmp.le.s32.totalorder 2, %s26
      // Predicated region
      $region93: #{tpu_custom_call.1} parent=5 // pred_check
        %p3117 = pneg %p3116
      $region94: #{tpu_custom_call.1} parent=5 // pred_check_branch
        %3119 = sbr.rel (%p3117) target = $region96
      $region95: #{tpu_custom_call.1} parent=5 // pred_region
        %s3120 = ssub.s32 %s26, 2
        // Predicated region
        $region97: #{tpu_custom_call.1} parent=95 // pred_check
          %p3121 = pneg %p228
        $region98: #{tpu_custom_call.1} parent=95 // pred_check_branch
          %3123 = sbr.rel (%p3121) target = $region100
        $region99: #{tpu_custom_call.1} parent=95 // pred_region
          %s3124 = sand.u32 %s213, 1
          %s3125 = scalar_lea.sflag [#allocation4], %s3124
          %s3126 = sand.u32 %s213, 1
          %s3127 = smul.addr %s3126, 8
          %s3128 = scalar_lea.vmem [#allocation13], %s3127
          %3129 = dma.done %s3125, 128
        $region100: #{tpu_custom_call.1} parent=95 // pred_fallthru
          _
      $region96: #{tpu_custom_call.1} parent=5 // pred_fallthru
        _
    $region6: #{tpu_custom_call.1} parent=1 // loop_footer
      %s30 = sadd.s32 1, %s26
    $region7: #{tpu_custom_call.1} parent=1 // loop_footer_branch
      %25 = sbr.rel target = $region3
    $region8: #{tpu_custom_call.1} parent=1 // loop_exit
      _
    %3130 = vsyncpa [#allocation3], 1
    %s3131 = scalar_lea.sflag [#allocation3], 1
    %3132 = vsyncpa %s3131, 1
    %3133 = vsyncpa [#allocation6], 1
    %3134 = vsyncpa [#allocation9], 1
    %3135 = vsyncpa [#allocation12], 1
    %3136 = vsyncpa [#allocation4], 1
    %s3137 = scalar_lea.sflag [#allocation4], 1
    %3138 = vsyncpa %s3137, 1
    %3139 = vsyncpa [#allocation15], 1

</llo_original>
